<compile_context>
chip_gen: v7x
topology: tpu7x:2x2x1
jax: 0.10.0
libtpu: 0.0.40
codegen_flags: <defaults>
</compile_context>

<pallas_src>
import numpy as np
import jax
import jax.numpy as jnp
from jax.experimental import pallas as pl
from jax.experimental.pallas import tpu as pltpu

# ---------------- small, module-consistent configuration ----------------
BATCH = 8          # batch_size (multiple of 8 -> fills sublanes); scales up freely
MEMORY = 4         # memory_size
STORY = 8          # story_size (query length must equal this for the encoding broadcast)
EMBED = 32         # embedding_size
FEAT = 16          # feature_size
VOCAB = 50         # vocab_size
HOPS = 3           # hops

VPAD = 128                          # vocab padded to a full lane tile
NQTOK = BATCH * STORY               # 64  query tokens
NMTOK = BATCH * MEMORY * STORY      # 256 memory tokens (keys; same for values)
NTOK = NQTOK + 2 * NMTOK            # 576 total gathered tokens
NGROUP = NTOK // STORY              # 72  position-encoded groups (q | keys | values)
NKV = BATCH * MEMORY                # 32  flattened per-batch memory rows

assert STORY & (STORY - 1) == 0, "STORY must be a power of two (in-kernel bit-and modulo)"


def position_encoding(sentence_size, embedding_size):
    """Vectorized version of the torch position_encoding (returns (S, E) numpy)."""
    i = np.arange(1, embedding_size + 1, dtype=np.float64)[:, None]   # rows: embedding
    j = np.arange(1, sentence_size + 1, dtype=np.float64)[None, :]    # cols: sentence
    enc = (i - embedding_size / 2.0) * (j - sentence_size / 2.0)
    enc = 1.0 + 4.0 * enc / embedding_size / sentence_size
    return np.asarray(enc.T, dtype=np.float32)                        # (S, E)


_ENC = position_encoding(STORY, EMBED)   # used ONLY by the pure-JAX reference


def _mm_t(x, w):
    """x @ w.T via dot_general (contract the last dim of each), f32 accumulation."""
    return jax.lax.dot_general(
        x, w, (((x.ndim - 1,), (w.ndim - 1,)), ((), ())),
        preferred_element_type=jnp.float32)


# ------------------------------ Pallas kernel ------------------------------
def kvmemnet_kernel(tok_ref, wcat_ref, a_ref, bias_ref, rs_ref, wout_ref,
                    labels_ref, probs_ref, loss_ref, pred_ref):
    f32 = jnp.float32
    neg_inf = f32(-jnp.inf)

    # ---- all embedding gathers as ONE one-hot MXU matmul (bf16 in, f32 acc) ----
    tok = tok_ref[...]                                               # (NTOK, 1) int32
    tab_iota = jax.lax.broadcasted_iota(jnp.int32, (NTOK, 2 * VPAD), 1)
    onehot = (tab_iota == tok).astype(jnp.bfloat16)                  # exact 0/1
    emb = jnp.dot(onehot, wcat_ref[...], preferred_element_type=f32)  # (NTOK, E)

    # ---- position encoding rebuilt in-kernel from iotas (no captured constants) ----
    t_idx = jax.lax.broadcasted_iota(jnp.int32, (NTOK, EMBED), 0)
    e_idx = jax.lax.broadcasted_iota(jnp.int32, (NTOK, EMBED), 1)
    s_idx = jnp.bitwise_and(t_idx, STORY - 1)        # token position inside its group
    enc = (f32(1.0)
           + (e_idx.astype(f32) + f32(1.0 - EMBED * 0.5))
           * (s_idx.astype(f32) + f32(1.0 - STORY * 0.5))
           * f32(4.0 / (EMBED * STORY)))
    # position-weighted bag-of-words over every group of STORY consecutive tokens
    red = jnp.sum((emb * enc).reshape(NGROUP, STORY, EMBED), axis=1)  # (NGROUP, E)

    # ---- one MXU call projects q_r, doc_r+TK, value_r+TV through A ----
    x = red + bias_ref[...]            # bias rows: [zeros | TK tiled | TV tiled]
    y = _mm_t(x, a_ref[...])                                          # (NGROUP, F)
    u = y[:BATCH]                                                     # (B, F)   u_0
    a_k = y[BATCH:BATCH + NKV]                                        # (B*M, F)
    a_v = y[BATCH + NKV:]                                             # (B*M, F)

    # block-diagonal mask selecting each batch's own M memory slots
    rows = jax.lax.broadcasted_iota(jnp.int32, (BATCH, NKV), 0)
    cols = jax.lax.broadcasted_iota(jnp.int32, (BATCH, NKV), 1)
    in_block = (cols >= rows * MEMORY) & (cols < rows * MEMORY + MEMORY)

    # loop-invariant rotated keys a_k @ R_h: feed hop h+1's scores directly,
    # taking the R-apply off the serial hop critical path.
    a_k_rot = [jnp.dot(a_k, rs_ref[h], preferred_element_type=f32)
               for h in range(HOPS - 1)]

    carry = u          # score operand: u_0 at hop 0, s_{h-1} afterwards
    u_cur = u          # u_h; only needed to form s_h (overlaps next hop's softmax)
    s = u
    for h in range(HOPS):
        key_h = a_k if h == 0 else a_k_rot[h - 1]
        dotted = _mm_t(carry, key_h)                                  # (B, B*M)
        dotted = jnp.where(in_block, dotted, neg_inf)
        d_max = jnp.max(dotted, axis=1, keepdims=True)
        e = jnp.exp(dotted - d_max)
        p = e * pl.reciprocal(jnp.sum(e, axis=1, keepdims=True), approx=True)
        o_k = jnp.dot(p, a_v, preferred_element_type=f32)             # (B, F)
        s = u_cur + o_k                                               # s_h
        if h + 1 < HOPS:
            u_cur = _mm_t(s, rs_ref[h])                               # u_{h+1}, off the chain
        carry = s

    # ---- logits via the folded projection W_out = R_last^T A W_memory^T (padded) ----
    logits = jnp.dot(s, wout_ref[...], preferred_element_type=f32)    # (B, VPAD)
    vcol = jax.lax.broadcasted_iota(jnp.int32, (BATCH, VPAD), 1)
    logits = jnp.where(vcol < VOCAB, logits, neg_inf)                 # mask padded vocab

    l_max = jnp.max(logits, axis=1, keepdims=True)
    shifted = logits - l_max
    ex = jnp.exp(shifted)
    denom = jnp.sum(ex, axis=1, keepdims=True)
    probs_ref[...] = ex / denom                                       # exact normalization

    # ---- fully vectorized cross entropy + argmax epilogue ----
    labels_col = labels_ref[...]                                      # (B, 1) int32
    sel = jnp.sum(jnp.where(vcol == labels_col, shifted, f32(0.0)),
                  axis=1, keepdims=True)                              # logits[label]-l_max
    nll = jnp.log(denom) - sel                                        # (B, 1)
    loss_ref[0] = jnp.sum(nll) * f32(1.0 / BATCH)

    cand = jnp.where(logits >= l_max, vcol.astype(f32), f32(VPAD))
    pred_col = jnp.min(cand, axis=1, keepdims=True).astype(jnp.int32)  # first-max index
    pred_ref[...] = jnp.broadcast_to(pred_col, (BATCH, VPAD))


# ------------------------------ wrapper (glue) ------------------------------
def prepare_params(params):
    """Param-only preprocessing: run once per parameter update, not per forward."""
    f32 = jnp.float32
    A = params["A"].astype(f32)
    Rs = params["Rs"].astype(f32)
    W = params["W"].astype(f32)
    Wm = params["W_memory"].astype(f32)

    # pad both embedding tables to 128 vocab rows and stack: rows [0,128) = W,
    # rows [128,256) = W_memory (memory token ids are offset by VPAD). bf16 for MXU.
    w_pad = jnp.pad(W, ((0, VPAD - VOCAB), (0, 0)))
    wm_pad = jnp.pad(Wm, ((0, VPAD - VOCAB), (0, 0)))
    w_cat = jnp.concatenate([w_pad, wm_pad], axis=0).astype(jnp.bfloat16)   # (2*VPAD, E)

    # additive bias applied after the position-encoded reduction:
    # zeros for query rows, TK tiled over batch for key rows, TV for value rows.
    bias = jnp.concatenate([
        jnp.zeros((BATCH, EMBED), f32),
        jnp.tile(params["TK"].astype(f32), (BATCH, 1)),
        jnp.tile(params["TV"].astype(f32), (BATCH, 1)),
    ], axis=0)                                                              # (NGROUP, E)

    # folded output projection: logits = s_last @ (R_last^T A W_memory^T), lane-padded.
    w_out = jnp.pad(Rs[HOPS - 1].T @ A @ Wm.T, ((0, 0), (0, VPAD - VOCAB)))  # (F, VPAD)

    return {"w_cat": w_cat, "a": A, "bias": bias, "rs": Rs, "w_out": w_out}


@jax.jit
def kvmemnet_forward(prep, memory_key, memory_value, query, labels):
    tok = jnp.concatenate([
        query.reshape(-1).astype(jnp.int32),
        memory_key.reshape(-1).astype(jnp.int32) + VPAD,
        memory_value.reshape(-1).astype(jnp.int32) + VPAD,
    ]).reshape(NTOK, 1)
    labels_col = labels.reshape(BATCH, 1).astype(jnp.int32)

    vmem = pl.BlockSpec(memory_space=pltpu.MemorySpace.VMEM)
    smem = pl.BlockSpec(memory_space=pltpu.MemorySpace.SMEM)
    probs_pad, loss, pred_pad = pl.pallas_call(
        kvmemnet_kernel,
        out_shape=(
            jax.ShapeDtypeStruct((BATCH, VPAD), jnp.float32),   # lane-dense probs slab
            jax.ShapeDtypeStruct((1,), jnp.float32),            # cross entropy (SMEM scalar)
            jax.ShapeDtypeStruct((BATCH, VPAD), jnp.int32),     # lane-dense predict_op slab
        ),
        in_specs=[vmem] * 7,
        out_specs=(vmem, smem, vmem),
        cost_estimate=pl.CostEstimate(flops=10_200_000,
                                      transcendentals=1_900,
                                      bytes_accessed=64_000),
    )(tok, prep["w_cat"], prep["a"], prep["bias"], prep["rs"], prep["w_out"],
      labels_col)

    return loss[0], pred_pad[:, 0], probs_pad[:, :VOCAB]


# ------------------------------ pure-JAX reference ------------------------------
def reference_forward(params, memory_key, memory_value, query, labels):
    W, Wm = params["W"], params["W_memory"]
    A, TK, TV, Rs = params["A"], params["TK"], params["TV"], params["Rs"]
    enc = jnp.asarray(_ENC)
    q_emb = W[query]
    mk_emb = Wm[memory_key]
    mv_emb = Wm[memory_value]
    q_r = jnp.sum(q_emb * enc, axis=1)
    doc_r = jnp.sum(mk_emb * enc, axis=2)
    value_r = jnp.sum(mv_emb * enc, axis=2)
    u = A @ q_r.T                                              # (F, B) torch orientation
    for h in range(HOPS):
        a_k = jnp.einsum('bme,fe->bmf', doc_r + TK, A)
        dotted = jnp.sum(a_k * u.T[:, None, :], axis=2)
        p = jax.nn.softmax(dotted, axis=1)
        a_v = jnp.einsum('bme,fe->bmf', value_r + TV, A)
        o_k = jnp.sum(p[:, :, None] * a_v, axis=1).T
        u = Rs[h] @ (u + o_k)
    o = u.T
    logits = o @ (A @ Wm.T)
    probs = jax.nn.softmax(logits, axis=1)
    logp = jax.nn.log_softmax(logits, axis=1)
    loss = -jnp.mean(logp[jnp.arange(BATCH), labels])
    pred = jnp.argmax(probs, axis=1)
    return loss, pred, probs


if __name__ == "__main__":
    key = jax.random.PRNGKey(0)
    ks = jax.random.split(key, 10)

    def xavier(k, shape):
        fan_in, fan_out = shape[-1], shape[-2]
        lim = float(np.sqrt(6.0 / (fan_in + fan_out)))
        return jax.random.uniform(k, shape, jnp.float32, -lim, lim)

    params = {
        "A":        xavier(ks[0], (FEAT, EMBED)),
        "TK":       xavier(ks[1], (MEMORY, EMBED)),
        "TV":       xavier(ks[2], (MEMORY, EMBED)),
        "W":        xavier(ks[3], (VOCAB, EMBED)),
        "W_memory": xavier(ks[4], (VOCAB, EMBED)),
        "Rs":       xavier(ks[5], (HOPS, FEAT, FEAT)),
    }

    memory_key   = jax.random.randint(ks[6], (BATCH, MEMORY, STORY), 0, VOCAB, jnp.int32)
    memory_value = jax.random.randint(ks[7], (BATCH, MEMORY, STORY), 0, VOCAB, jnp.int32)
    query        = jax.random.randint(ks[8], (BATCH, STORY), 0, VOCAB, jnp.int32)
    labels       = jax.random.randint(ks[9], (BATCH,), 0, VOCAB, jnp.int32)

    prep = prepare_params(params)                       # once per parameter update
    loss, pred, probs = kvmemnet_forward(prep, memory_key, memory_value, query, labels)
    jax.block_until_ready((loss, pred, probs))

    # sanity check against the pure-JAX reference
    ref_loss, ref_pred, ref_probs = reference_forward(params, memory_key, memory_value,
                                                      query, labels)
    probs_np = np.asarray(probs)
    ref_probs_np = np.asarray(ref_probs)
    pred_np = np.asarray(pred)
    assert np.allclose(probs_np, ref_probs_np, atol=1e-2, rtol=1e-2)
    assert np.allclose(float(loss), float(ref_loss), atol=1e-2, rtol=1e-2)
    # predicted class must achieve (numerically) the maximum reference probability
    assert np.all(ref_probs_np[np.arange(BATCH), pred_np] >= ref_probs_np.max(axis=1) - 1e-3)

    print("KERNEL_OK")
</pallas_src>

<mosaic_0001>
module attributes {stable_mosaic.version = 11 : i64} {
  func.func @kvmemnet_kernel(%arg0: memref<576x1xi32, #tpu.memory_space<vmem>>, %arg1: memref<256x32xbf16, #tpu.memory_space<vmem>>, %arg2: memref<16x32xf32, #tpu.memory_space<vmem>>, %arg3: memref<72x32xf32, #tpu.memory_space<vmem>>, %arg4: memref<3x16x16xf32, #tpu.memory_space<vmem>>, %arg5: memref<16x128xf32, #tpu.memory_space<vmem>>, %arg6: memref<8x1xi32, #tpu.memory_space<vmem>>, %arg7: memref<8x128xf32, #tpu.memory_space<vmem>>, %arg8: memref<1xf32, #tpu.memory_space<smem>>, %arg9: memref<8x128xi32, #tpu.memory_space<vmem>>) attributes {dimension_semantics = [], scalar_prefetch = 0 : i64, scratch_operands = 0 : i64, tpu.core_type = #tpu.core_type<tc>} {
    %c0 = arith.constant 0 : index
    %c0_0 = arith.constant 0 : index
    %0 = vector.load %arg0[%c0, %c0_0] : memref<576x1xi32, #tpu.memory_space<vmem>>, vector<576x1xi32>
    %1 = tpu.iota {dimensions = array<i32: 1>} : vector<576x256xi32>
    %2 = vector.broadcast %0 : vector<576x1xi32> to vector<576x256xi32>
    %3 = arith.cmpi eq, %1, %2 : vector<576x256xi32>
    %4 = arith.extui %3 : vector<576x256xi1> to vector<576x256xi32>
    %5 = arith.sitofp %4 : vector<576x256xi32> to vector<576x256xf32>
    %6 = arith.truncf %5 : vector<576x256xf32> to vector<576x256xbf16>
    %c0_1 = arith.constant 0 : index
    %c0_2 = arith.constant 0 : index
    %7 = vector.load %arg1[%c0_1, %c0_2] : memref<256x32xbf16, #tpu.memory_space<vmem>>, vector<256x32xbf16>
    %cst = arith.constant dense<0.000000e+00> : vector<576x32xf32>
    %8 = tpu.matmul %6, %7, %cst {dimension_numbers = #tpu.dot_dimension_numbers<[1], [0], [0], [1], [0, 0, 1, 1], [], []>} : vector<576x256xbf16>, vector<256x32xbf16>, vector<576x32xf32> -> vector<576x32xf32>
    %9 = tpu.iota {dimensions = array<i32: 0>} : vector<576x32xi32>
    %10 = tpu.iota {dimensions = array<i32: 1>} : vector<576x32xi32>
    %c7_i32 = arith.constant 7 : i32
    %11 = vector.broadcast %c7_i32 : i32 to vector<576x32xi32>
    %12 = arith.andi %9, %11 : vector<576x32xi32>
    %13 = arith.sitofp %10 : vector<576x32xi32> to vector<576x32xf32>
    %cst_3 = arith.constant -1.500000e+01 : f32
    %14 = vector.broadcast %cst_3 : f32 to vector<576x32xf32>
    %15 = arith.addf %13, %14 : vector<576x32xf32>
    %16 = arith.sitofp %12 : vector<576x32xi32> to vector<576x32xf32>
    %cst_4 = arith.constant -3.000000e+00 : f32
    %17 = vector.broadcast %cst_4 : f32 to vector<576x32xf32>
    %18 = arith.addf %16, %17 : vector<576x32xf32>
    %19 = arith.mulf %15, %18 : vector<576x32xf32>
    %cst_5 = arith.constant 1.562500e-02 : f32
    %20 = vector.broadcast %cst_5 : f32 to vector<576x32xf32>
    %21 = arith.mulf %19, %20 : vector<576x32xf32>
    %cst_6 = arith.constant 1.000000e+00 : f32
    %22 = vector.broadcast %cst_6 : f32 to vector<576x32xf32>
    %23 = arith.addf %22, %21 : vector<576x32xf32>
    %24 = arith.mulf %8, %23 : vector<576x32xf32>
    %25 = vector.shape_cast %24 : vector<576x32xf32> to vector<72x8x32xf32>
    %cst_7 = arith.constant dense<0.000000e+00> : vector<72x32xf32>
    %26 = vector.multi_reduction <add>, %25, %cst_7 [1] : vector<72x8x32xf32> to vector<72x32xf32>
    %c0_8 = arith.constant 0 : index
    %c0_9 = arith.constant 0 : index
    %27 = vector.load %arg3[%c0_8, %c0_9] : memref<72x32xf32, #tpu.memory_space<vmem>>, vector<72x32xf32>
    %28 = arith.addf %26, %27 : vector<72x32xf32>
    %c0_10 = arith.constant 0 : index
    %c0_11 = arith.constant 0 : index
    %29 = vector.load %arg2[%c0_10, %c0_11] : memref<16x32xf32, #tpu.memory_space<vmem>>, vector<16x32xf32>
    %cst_12 = arith.constant dense<0.000000e+00> : vector<72x16xf32>
    %30 = tpu.matmul %28, %29, %cst_12 {dimension_numbers = #tpu.dot_dimension_numbers<[1], [1], [0], [0], [0, 0, 1, 0], [], []>} : vector<72x32xf32>, vector<16x32xf32>, vector<72x16xf32> -> vector<72x16xf32>
    %31 = vector.extract_strided_slice %30 {offsets = [0, 0], sizes = [8, 16], strides = [1, 1]} : vector<72x16xf32> to vector<8x16xf32>
    %32 = vector.extract_strided_slice %30 {offsets = [8, 0], sizes = [32, 16], strides = [1, 1]} : vector<72x16xf32> to vector<32x16xf32>
    %33 = vector.extract_strided_slice %30 {offsets = [40, 0], sizes = [32, 16], strides = [1, 1]} : vector<72x16xf32> to vector<32x16xf32>
    %34 = tpu.iota {dimensions = array<i32: 0>} : vector<8x32xi32>
    %35 = tpu.iota {dimensions = array<i32: 1>} : vector<8x32xi32>
    %c4_i32 = arith.constant 4 : i32
    %36 = vector.broadcast %c4_i32 : i32 to vector<8x32xi32>
    %37 = arith.muli %34, %36 : vector<8x32xi32>
    %38 = arith.cmpi sge, %35, %37 : vector<8x32xi32>
    %c4_i32_13 = arith.constant 4 : i32
    %39 = vector.broadcast %c4_i32_13 : i32 to vector<8x32xi32>
    %40 = arith.muli %34, %39 : vector<8x32xi32>
    %c4_i32_14 = arith.constant 4 : i32
    %41 = vector.broadcast %c4_i32_14 : i32 to vector<8x32xi32>
    %42 = arith.addi %40, %41 : vector<8x32xi32>
    %43 = arith.cmpi slt, %35, %42 : vector<8x32xi32>
    %44 = arith.andi %38, %43 : vector<8x32xi1>
    %c0_15 = arith.constant 0 : index
    %c0_16 = arith.constant 0 : index
    %c0_17 = arith.constant 0 : index
    %45 = vector.load %arg4[%c0_15, %c0_16, %c0_17] : memref<3x16x16xf32, #tpu.memory_space<vmem>>, vector<1x16x16xf32>
    %46 = vector.shape_cast %45 : vector<1x16x16xf32> to vector<16x16xf32>
    %cst_18 = arith.constant dense<0.000000e+00> : vector<32x16xf32>
    %47 = tpu.matmul %32, %46, %cst_18 {dimension_numbers = #tpu.dot_dimension_numbers<[1], [0], [0], [1], [0, 0, 1, 1], [], []>} : vector<32x16xf32>, vector<16x16xf32>, vector<32x16xf32> -> vector<32x16xf32>
    %c1 = arith.constant 1 : index
    %c0_19 = arith.constant 0 : index
    %c0_20 = arith.constant 0 : index
    %48 = vector.load %arg4[%c1, %c0_19, %c0_20] : memref<3x16x16xf32, #tpu.memory_space<vmem>>, vector<1x16x16xf32>
    %49 = vector.shape_cast %48 : vector<1x16x16xf32> to vector<16x16xf32>
    %cst_21 = arith.constant dense<0.000000e+00> : vector<32x16xf32>
    %50 = tpu.matmul %32, %49, %cst_21 {dimension_numbers = #tpu.dot_dimension_numbers<[1], [0], [0], [1], [0, 0, 1, 1], [], []>} : vector<32x16xf32>, vector<16x16xf32>, vector<32x16xf32> -> vector<32x16xf32>
    %cst_22 = arith.constant dense<0.000000e+00> : vector<8x32xf32>
    %51 = tpu.matmul %31, %32, %cst_22 {dimension_numbers = #tpu.dot_dimension_numbers<[1], [1], [0], [0], [0, 0, 1, 0], [], []>} : vector<8x16xf32>, vector<32x16xf32>, vector<8x32xf32> -> vector<8x32xf32>
    %cst_23 = arith.constant 0xFF800000 : f32
    %52 = vector.broadcast %cst_23 : f32 to vector<8x32xf32>
    %53 = arith.select %44, %51, %52 : vector<8x32xi1>, vector<8x32xf32>
    %cst_24 = arith.constant dense<0xFF800000> : vector<8xf32>
    %54 = vector.multi_reduction <maximumf>, %53, %cst_24 [1] : vector<8x32xf32> to vector<8xf32>
    %55 = vector.shape_cast %54 : vector<8xf32> to vector<8x1xf32>
    %56 = vector.broadcast %55 : vector<8x1xf32> to vector<8x32xf32>
    %57 = arith.subf %53, %56 : vector<8x32xf32>
    %58 = math.exp %57 : vector<8x32xf32>
    %cst_25 = arith.constant dense<0.000000e+00> : vector<8xf32>
    %59 = vector.multi_reduction <add>, %58, %cst_25 [1] : vector<8x32xf32> to vector<8xf32>
    %60 = vector.shape_cast %59 : vector<8xf32> to vector<8x1xf32>
    %61 = tpu.reciprocal %60 {approx = true} : vector<8x1xf32> -> vector<8x1xf32>
    %62 = vector.broadcast %61 : vector<8x1xf32> to vector<8x32xf32>
    %63 = arith.mulf %58, %62 : vector<8x32xf32>
    %cst_26 = arith.constant dense<0.000000e+00> : vector<8x16xf32>
    %64 = tpu.matmul %63, %33, %cst_26 {dimension_numbers = #tpu.dot_dimension_numbers<[1], [0], [0], [1], [0, 0, 1, 1], [], []>} : vector<8x32xf32>, vector<32x16xf32>, vector<8x16xf32> -> vector<8x16xf32>
    %65 = arith.addf %31, %64 : vector<8x16xf32>
    %c0_27 = arith.constant 0 : index
    %c0_28 = arith.constant 0 : index
    %c0_29 = arith.constant 0 : index
    %66 = vector.load %arg4[%c0_27, %c0_28, %c0_29] : memref<3x16x16xf32, #tpu.memory_space<vmem>>, vector<1x16x16xf32>
    %67 = vector.shape_cast %66 : vector<1x16x16xf32> to vector<16x16xf32>
    %cst_30 = arith.constant dense<0.000000e+00> : vector<8x16xf32>
    %68 = tpu.matmul %65, %67, %cst_30 {dimension_numbers = #tpu.dot_dimension_numbers<[1], [1], [0], [0], [0, 0, 1, 0], [], []>} : vector<8x16xf32>, vector<16x16xf32>, vector<8x16xf32> -> vector<8x16xf32>
    %cst_31 = arith.constant dense<0.000000e+00> : vector<8x32xf32>
    %69 = tpu.matmul %65, %47, %cst_31 {dimension_numbers = #tpu.dot_dimension_numbers<[1], [1], [0], [0], [0, 0, 1, 0], [], []>} : vector<8x16xf32>, vector<32x16xf32>, vector<8x32xf32> -> vector<8x32xf32>
    %cst_32 = arith.constant 0xFF800000 : f32
    %70 = vector.broadcast %cst_32 : f32 to vector<8x32xf32>
    %71 = arith.select %44, %69, %70 : vector<8x32xi1>, vector<8x32xf32>
    %cst_33 = arith.constant dense<0xFF800000> : vector<8xf32>
    %72 = vector.multi_reduction <maximumf>, %71, %cst_33 [1] : vector<8x32xf32> to vector<8xf32>
    %73 = vector.shape_cast %72 : vector<8xf32> to vector<8x1xf32>
    %74 = vector.broadcast %73 : vector<8x1xf32> to vector<8x32xf32>
    %75 = arith.subf %71, %74 : vector<8x32xf32>
    %76 = math.exp %75 : vector<8x32xf32>
    %cst_34 = arith.constant dense<0.000000e+00> : vector<8xf32>
    %77 = vector.multi_reduction <add>, %76, %cst_34 [1] : vector<8x32xf32> to vector<8xf32>
    %78 = vector.shape_cast %77 : vector<8xf32> to vector<8x1xf32>
    %79 = tpu.reciprocal %78 {approx = true} : vector<8x1xf32> -> vector<8x1xf32>
    %80 = vector.broadcast %79 : vector<8x1xf32> to vector<8x32xf32>
    %81 = arith.mulf %76, %80 : vector<8x32xf32>
    %cst_35 = arith.constant dense<0.000000e+00> : vector<8x16xf32>
    %82 = tpu.matmul %81, %33, %cst_35 {dimension_numbers = #tpu.dot_dimension_numbers<[1], [0], [0], [1], [0, 0, 1, 1], [], []>} : vector<8x32xf32>, vector<32x16xf32>, vector<8x16xf32> -> vector<8x16xf32>
    %83 = arith.addf %68, %82 : vector<8x16xf32>
    %c1_36 = arith.constant 1 : index
    %c0_37 = arith.constant 0 : index
    %c0_38 = arith.constant 0 : index
    %84 = vector.load %arg4[%c1_36, %c0_37, %c0_38] : memref<3x16x16xf32, #tpu.memory_space<vmem>>, vector<1x16x16xf32>
    %85 = vector.shape_cast %84 : vector<1x16x16xf32> to vector<16x16xf32>
    %cst_39 = arith.constant dense<0.000000e+00> : vector<8x16xf32>
    %86 = tpu.matmul %83, %85, %cst_39 {dimension_numbers = #tpu.dot_dimension_numbers<[1], [1], [0], [0], [0, 0, 1, 0], [], []>} : vector<8x16xf32>, vector<16x16xf32>, vector<8x16xf32> -> vector<8x16xf32>
    %cst_40 = arith.constant dense<0.000000e+00> : vector<8x32xf32>
    %87 = tpu.matmul %83, %50, %cst_40 {dimension_numbers = #tpu.dot_dimension_numbers<[1], [1], [0], [0], [0, 0, 1, 0], [], []>} : vector<8x16xf32>, vector<32x16xf32>, vector<8x32xf32> -> vector<8x32xf32>
    %cst_41 = arith.constant 0xFF800000 : f32
    %88 = vector.broadcast %cst_41 : f32 to vector<8x32xf32>
    %89 = arith.select %44, %87, %88 : vector<8x32xi1>, vector<8x32xf32>
    %cst_42 = arith.constant dense<0xFF800000> : vector<8xf32>
    %90 = vector.multi_reduction <maximumf>, %89, %cst_42 [1] : vector<8x32xf32> to vector<8xf32>
    %91 = vector.shape_cast %90 : vector<8xf32> to vector<8x1xf32>
    %92 = vector.broadcast %91 : vector<8x1xf32> to vector<8x32xf32>
    %93 = arith.subf %89, %92 : vector<8x32xf32>
    %94 = math.exp %93 : vector<8x32xf32>
    %cst_43 = arith.constant dense<0.000000e+00> : vector<8xf32>
    %95 = vector.multi_reduction <add>, %94, %cst_43 [1] : vector<8x32xf32> to vector<8xf32>
    %96 = vector.shape_cast %95 : vector<8xf32> to vector<8x1xf32>
    %97 = tpu.reciprocal %96 {approx = true} : vector<8x1xf32> -> vector<8x1xf32>
    %98 = vector.broadcast %97 : vector<8x1xf32> to vector<8x32xf32>
    %99 = arith.mulf %94, %98 : vector<8x32xf32>
    %cst_44 = arith.constant dense<0.000000e+00> : vector<8x16xf32>
    %100 = tpu.matmul %99, %33, %cst_44 {dimension_numbers = #tpu.dot_dimension_numbers<[1], [0], [0], [1], [0, 0, 1, 1], [], []>} : vector<8x32xf32>, vector<32x16xf32>, vector<8x16xf32> -> vector<8x16xf32>
    %101 = arith.addf %86, %100 : vector<8x16xf32>
    %c0_45 = arith.constant 0 : index
    %c0_46 = arith.constant 0 : index
    %102 = vector.load %arg5[%c0_45, %c0_46] : memref<16x128xf32, #tpu.memory_space<vmem>>, vector<16x128xf32>
    %cst_47 = arith.constant dense<0.000000e+00> : vector<8x128xf32>
    %103 = tpu.matmul %101, %102, %cst_47 {dimension_numbers = #tpu.dot_dimension_numbers<[1], [0], [0], [1], [0, 0, 1, 1], [], []>} : vector<8x16xf32>, vector<16x128xf32>, vector<8x128xf32> -> vector<8x128xf32>
    %104 = tpu.iota {dimensions = array<i32: 1>} : vector<8x128xi32>
    %c50_i32 = arith.constant 50 : i32
    %105 = vector.broadcast %c50_i32 : i32 to vector<8x128xi32>
    %106 = arith.cmpi slt, %104, %105 : vector<8x128xi32>
    %cst_48 = arith.constant 0xFF800000 : f32
    %107 = vector.broadcast %cst_48 : f32 to vector<8x128xf32>
    %108 = arith.select %106, %103, %107 : vector<8x128xi1>, vector<8x128xf32>
    %cst_49 = arith.constant dense<0xFF800000> : vector<8xf32>
    %109 = vector.multi_reduction <maximumf>, %108, %cst_49 [1] : vector<8x128xf32> to vector<8xf32>
    %110 = vector.shape_cast %109 : vector<8xf32> to vector<8x1xf32>
    %111 = vector.broadcast %110 : vector<8x1xf32> to vector<8x128xf32>
    %112 = arith.subf %108, %111 : vector<8x128xf32>
    %113 = math.exp %112 : vector<8x128xf32>
    %cst_50 = arith.constant dense<0.000000e+00> : vector<8xf32>
    %114 = vector.multi_reduction <add>, %113, %cst_50 [1] : vector<8x128xf32> to vector<8xf32>
    %115 = vector.shape_cast %114 : vector<8xf32> to vector<8x1xf32>
    %116 = vector.broadcast %115 : vector<8x1xf32> to vector<8x128xf32>
    %117 = arith.divf %113, %116 : vector<8x128xf32>
    %c0_51 = arith.constant 0 : index
    %c0_52 = arith.constant 0 : index
    %118 = vector.load %arg7[%c0_51, %c0_52] : memref<8x128xf32, #tpu.memory_space<vmem>>, vector<8x128xf32>
    tpu.vector_store %arg7[%c0_51, %c0_52], %117 {strides = array<i32>} : memref<8x128xf32, #tpu.memory_space<vmem>>, vector<8x128xf32>,
    %c0_53 = arith.constant 0 : index
    %c0_54 = arith.constant 0 : index
    %119 = vector.load %arg6[%c0_53, %c0_54] : memref<8x1xi32, #tpu.memory_space<vmem>>, vector<8x1xi32>
    %120 = vector.broadcast %119 : vector<8x1xi32> to vector<8x128xi32>
    %121 = arith.cmpi eq, %104, %120 : vector<8x128xi32>
    %cst_55 = arith.constant 0.000000e+00 : f32
    %122 = vector.broadcast %cst_55 : f32 to vector<8x128xf32>
    %123 = arith.select %121, %112, %122 : vector<8x128xi1>, vector<8x128xf32>
    %cst_56 = arith.constant dense<0.000000e+00> : vector<8xf32>
    %124 = vector.multi_reduction <add>, %123, %cst_56 [1] : vector<8x128xf32> to vector<8xf32>
    %125 = vector.shape_cast %124 : vector<8xf32> to vector<8x1xf32>
    %126 = math.log %115 : vector<8x1xf32>
    %127 = arith.subf %126, %125 : vector<8x1xf32>
    %128 = vector.shape_cast %127 : vector<8x1xf32> to vector<1x8x1xf32>
    %cst_57 = arith.constant dense<0.000000e+00> : vector<1xf32>
    %129 = vector.multi_reduction <add>, %128, %cst_57 [1, 2] : vector<1x8x1xf32> to vector<1xf32>
    %130 = vector.shape_cast %129 : vector<1xf32> to vector<1x1x1xf32>
    %131 = vector.extract %130[0, 0, 0] : f32 from vector<1x1x1xf32>
    %cst_58 = arith.constant 1.250000e-01 : f32
    %132 = arith.mulf %131, %cst_58 : f32
    %c0_59 = arith.constant 0 : index
    %133 = memref.load %arg8[%c0_59] : memref<1xf32, #tpu.memory_space<smem>>
    memref.store %132, %arg8[%c0_59] : memref<1xf32, #tpu.memory_space<smem>>
    %134 = vector.broadcast %110 : vector<8x1xf32> to vector<8x128xf32>
    %135 = arith.cmpf oge, %108, %134 : vector<8x128xf32>
    %136 = arith.sitofp %104 : vector<8x128xi32> to vector<8x128xf32>
    %cst_60 = arith.constant 1.280000e+02 : f32
    %137 = vector.broadcast %cst_60 : f32 to vector<8x128xf32>
    %138 = arith.select %135, %136, %137 : vector<8x128xi1>, vector<8x128xf32>
    %cst_61 = arith.constant dense<0x7F800000> : vector<8xf32>
    %139 = vector.multi_reduction <minimumf>, %138, %cst_61 [1] : vector<8x128xf32> to vector<8xf32>
    %140 = vector.shape_cast %139 : vector<8xf32> to vector<8x1xf32>
    %141 = arith.fptosi %140 : vector<8x1xf32> to vector<8x1xi32>
    %142 = vector.shape_cast %141 : vector<8x1xi32> to vector<8x1xi32>
    %143 = vector.broadcast %142 : vector<8x1xi32> to vector<8x128xi32>
    %c0_62 = arith.constant 0 : index
    %c0_63 = arith.constant 0 : index
    %144 = vector.load %arg9[%c0_62, %c0_63] : memref<8x128xi32, #tpu.memory_space<vmem>>, vector<8x128xi32>
    tpu.vector_store %arg9[%c0_62, %c0_63], %143 {strides = array<i32>} : memref<8x128xi32, #tpu.memory_space<vmem>>, vector<8x128xi32>,
    return
  }
}

</mosaic_0001>

<llo_original>
// kernel: kvmemnet_forward.1
$region0: #{kvmemnet_forward.1}
  #allocation0 [shape = 'u32[]', space=smem, size = 0x4, offset = 0x4, fixed_abs, tag = 'smem constant byte address 0x4 - core index']
  #allocation1 [shape = 'u32[144,128]{1,0:T(1,128)}', space=vmem, size = 0x12000, scoped, tag = 'internal scratch']
  %s0 = inlined_call_operand.vmem [shape: s32[576,1], index: 0, kind: input, shape index: {}]
  %s1 = inlined_call_operand.vmem [shape: bf16[256,32], index: 1, kind: input, shape index: {}]
  %s2 = inlined_call_operand.vmem [shape: f32[16,32], index: 2, kind: input, shape index: {}]
  %s3 = inlined_call_operand.vmem [shape: f32[72,32], index: 3, kind: input, shape index: {}]
  %s4 = inlined_call_operand.vmem [shape: f32[3,16,16], index: 4, kind: input, shape index: {}]
  %s5 = inlined_call_operand.vmem [shape: f32[16,128], index: 5, kind: input, shape index: {}]
  %s6 = inlined_call_operand.vmem [shape: s32[8,1], index: 6, kind: input, shape index: {}]
  %s7 = inlined_call_operand.hbm [shape: f32[8,128], index: 7, kind: output, shape index: {0}]
  %s8 = inlined_call_operand.hbm [shape: f32[1], index: 8, kind: output, shape index: {1}]
  %s9 = inlined_call_operand.vmem [shape: s32[8,128], index: 9, kind: output, shape index: {2}]
  %10 = xla_tuple %s7, %s8, %s9
  %s11 = sld [smem:[#allocation0]]
  $region54: #{kvmemnet_forward.1} parent=0
    _
  %s13 = ssub.s32 1, %s11
  %s14 = scalar_select 0, %s13, %s11
  $region1: #{kvmemnet_forward.1} parent=0
    #allocation2 [shape = 'u8[4096]{0}', space=vmem, size = 0x1000, scoped, tag = 'output window, operand 0, single buffered']
    #allocation3 [shape = 's32[1]{0}', space=sflag, size = 0x4, scoped, tag = 'scoped memory for kvmemnet_forward.1']
    #allocation4 [shape = 's32[1]{0}', space=sflag, size = 0x4, scoped, tag = 'scoped memory for kvmemnet_forward.1']
    #allocation5 [shape = 'u8[512]{0}', space=smem, size = 0x200, scoped, tag = 'output window, operand 1, single buffered']
    %15 = vsyncpa [#allocation3], 0
    %16 = vsyncpa [#allocation4], 0
    // Predicated region
    $region2: #{kvmemnet_forward.1} parent=1 // pred_check
      _
    $region3: #{kvmemnet_forward.1} parent=1 // pred_check_branch
      %18 = sbr.rel (0) target = $region5
    $region4: #{kvmemnet_forward.1} parent=1 // pred_region
      _
    $region5: #{kvmemnet_forward.1} parent=1 // pred_fallthru
      _
    // Predicated region
    $region6: #{kvmemnet_forward.1} parent=1 // pred_check
      _
    $region7: #{kvmemnet_forward.1} parent=1 // pred_check_branch
      %20 = sbr.rel (0) target = $region9
    $region8: #{kvmemnet_forward.1} parent=1 // pred_region
      _
    $region9: #{kvmemnet_forward.1} parent=1 // pred_fallthru
      _
    // Predicated region
    $region10: #{kvmemnet_forward.1} parent=1 // pred_check
      _
    $region11: #{kvmemnet_forward.1} parent=1 // pred_check_branch
      %22 = sbr.rel (0) target = $region13
    $region12: #{kvmemnet_forward.1} parent=1 // pred_region
      _
    $region13: #{kvmemnet_forward.1} parent=1 // pred_fallthru
      _
    // Predicated region
    $region14: #{kvmemnet_forward.1} parent=1 // pred_check
      _
    $region15: #{kvmemnet_forward.1} parent=1 // pred_check_branch
      %24 = sbr.rel (0) target = $region17
    $region16: #{kvmemnet_forward.1} parent=1 // pred_region
      _
    $region17: #{kvmemnet_forward.1} parent=1 // pred_fallthru
      _
    // Predicated region
    $region18: #{kvmemnet_forward.1} parent=1 // pred_check
      _
    $region19: #{kvmemnet_forward.1} parent=1 // pred_check_branch
      %26 = sbr.rel (0) target = $region21
    $region20: #{kvmemnet_forward.1} parent=1 // pred_region
      _
    $region21: #{kvmemnet_forward.1} parent=1 // pred_fallthru
      _
    // Predicated region
    $region22: #{kvmemnet_forward.1} parent=1 // pred_check
      _
    $region23: #{kvmemnet_forward.1} parent=1 // pred_check_branch
      %28 = sbr.rel (0) target = $region25
    $region24: #{kvmemnet_forward.1} parent=1 // pred_region
      _
    $region25: #{kvmemnet_forward.1} parent=1 // pred_fallthru
      _
    // Predicated region
    $region26: #{kvmemnet_forward.1} parent=1 // pred_check
      _
    $region27: #{kvmemnet_forward.1} parent=1 // pred_check_branch
      %30 = sbr.rel (0) target = $region29
    $region28: #{kvmemnet_forward.1} parent=1 // pred_region
      _
    $region29: #{kvmemnet_forward.1} parent=1 // pred_fallthru
      _
    %v32 = vld [vmem:[%s0] sm:$0xff]
    %v33 = vld [vmem:[%s0 + $0x8] sm:$0xff]
    %v34 = vld [vmem:[%s0 + $0x10] sm:$0xff]
    %v35 = vld [vmem:[%s0 + $0x18] sm:$0xff]
    %v36 = vld [vmem:[%s0 + $0x20] sm:$0xff]
    %v37 = vld [vmem:[%s0 + $0x28] sm:$0xff]
    %v38 = vld [vmem:[%s0 + $0x30] sm:$0xff]
    %v39 = vld [vmem:[%s0 + $0x38] sm:$0xff]
    %v40 = vld [vmem:[%s0 + $0x40] sm:$0xff]
    %v41 = vld [vmem:[%s0 + $0x48] sm:$0xff]
    %v42 = vld [vmem:[%s0 + $0x50] sm:$0xff]
    %v43 = vld [vmem:[%s0 + $0x58] sm:$0xff]
    %v44 = vld [vmem:[%s0 + $0x60] sm:$0xff]
    %v45 = vld [vmem:[%s0 + $0x68] sm:$0xff]
    %v46 = vld [vmem:[%s0 + $0x70] sm:$0xff]
    %v47 = vld [vmem:[%s0 + $0x78] sm:$0xff]
    %v48 = vld [vmem:[%s0 + $0x80] sm:$0xff]
    %v49 = vld [vmem:[%s0 + $0x88] sm:$0xff]
    %v50 = vld [vmem:[%s0 + $0x90] sm:$0xff]
    %v51 = vld [vmem:[%s0 + $0x98] sm:$0xff]
    %v52 = vld [vmem:[%s0 + $0xa0] sm:$0xff]
    %v53 = vld [vmem:[%s0 + $0xa8] sm:$0xff]
    %v54 = vld [vmem:[%s0 + $0xb0] sm:$0xff]
    %v55 = vld [vmem:[%s0 + $0xb8] sm:$0xff]
    %v56 = vld [vmem:[%s0 + $0xc0] sm:$0xff]
    %v57 = vld [vmem:[%s0 + $0xc8] sm:$0xff]
    %v58 = vld [vmem:[%s0 + $0xd0] sm:$0xff]
    %v59 = vld [vmem:[%s0 + $0xd8] sm:$0xff]
    %v60 = vld [vmem:[%s0 + $0xe0] sm:$0xff]
    %v61 = vld [vmem:[%s0 + $0xe8] sm:$0xff]
    %v62 = vld [vmem:[%s0 + $0xf0] sm:$0xff]
    %v63 = vld [vmem:[%s0 + $0xf8] sm:$0xff]
    %v64 = vld [vmem:[%s0 + $0x100] sm:$0xff]
    %v65 = vld [vmem:[%s0 + $0x108] sm:$0xff]
    %v66 = vld [vmem:[%s0 + $0x110] sm:$0xff]
    %v67 = vld [vmem:[%s0 + $0x118] sm:$0xff]
    %v68 = vld [vmem:[%s0 + $0x120] sm:$0xff]
    %v69 = vld [vmem:[%s0 + $0x128] sm:$0xff]
    %v70 = vld [vmem:[%s0 + $0x130] sm:$0xff]
    %v71 = vld [vmem:[%s0 + $0x138] sm:$0xff]
    %v72 = vld [vmem:[%s0 + $0x140] sm:$0xff]
    %v73 = vld [vmem:[%s0 + $0x148] sm:$0xff]
    %v74 = vld [vmem:[%s0 + $0x150] sm:$0xff]
    %v75 = vld [vmem:[%s0 + $0x158] sm:$0xff]
    %v76 = vld [vmem:[%s0 + $0x160] sm:$0xff]
    %v77 = vld [vmem:[%s0 + $0x168] sm:$0xff]
    %v78 = vld [vmem:[%s0 + $0x170] sm:$0xff]
    %v79 = vld [vmem:[%s0 + $0x178] sm:$0xff]
    %v80 = vld [vmem:[%s0 + $0x180] sm:$0xff]
    %v81 = vld [vmem:[%s0 + $0x188] sm:$0xff]
    %v82 = vld [vmem:[%s0 + $0x190] sm:$0xff]
    %v83 = vld [vmem:[%s0 + $0x198] sm:$0xff]
    %v84 = vld [vmem:[%s0 + $0x1a0] sm:$0xff]
    %v85 = vld [vmem:[%s0 + $0x1a8] sm:$0xff]
    %v86 = vld [vmem:[%s0 + $0x1b0] sm:$0xff]
    %v87 = vld [vmem:[%s0 + $0x1b8] sm:$0xff]
    %v88 = vld [vmem:[%s0 + $0x1c0] sm:$0xff]
    %v89 = vld [vmem:[%s0 + $0x1c8] sm:$0xff]
    %v90 = vld [vmem:[%s0 + $0x1d0] sm:$0xff]
    %v91 = vld [vmem:[%s0 + $0x1d8] sm:$0xff]
    %v92 = vld [vmem:[%s0 + $0x1e0] sm:$0xff]
    %v93 = vld [vmem:[%s0 + $0x1e8] sm:$0xff]
    %v94 = vld [vmem:[%s0 + $0x1f0] sm:$0xff]
    %v95 = vld [vmem:[%s0 + $0x1f8] sm:$0xff]
    %v96 = vld [vmem:[%s0 + $0x200] sm:$0xff]
    %v97 = vld [vmem:[%s0 + $0x208] sm:$0xff]
    %v98 = vld [vmem:[%s0 + $0x210] sm:$0xff]
    %v99 = vld [vmem:[%s0 + $0x218] sm:$0xff]
    %v100 = vld [vmem:[%s0 + $0x220] sm:$0xff]
    %v101 = vld [vmem:[%s0 + $0x228] sm:$0xff]
    %v102 = vld [vmem:[%s0 + $0x230] sm:$0xff]
    %v103 = vld [vmem:[%s0 + $0x238] sm:$0xff]
    %v104 = vlaneseq
    %v105 = vand.u32 %v104, 127
    %v106 = vadd.s32 %v105, 128
    %107 = vset.pattern.permute.xlu0 0
    %108 = vperm.xlu0 %107, %v32
    %v109 = vpop.permute.xlu0 %108
    %110 = vset.pattern.permute.xlu0 0
    %111 = vperm.xlu0 %110, %v33
    %v112 = vpop.permute.xlu0 %111
    %113 = vset.pattern.permute.xlu0 0
    %114 = vperm.xlu0 %113, %v34
    %v115 = vpop.permute.xlu0 %114
    %116 = vset.pattern.permute.xlu0 0
    %117 = vperm.xlu0 %116, %v35
    %v118 = vpop.permute.xlu0 %117
    %119 = vset.pattern.permute.xlu0 0
    %120 = vperm.xlu0 %119, %v36
    %v121 = vpop.permute.xlu0 %120
    %122 = vset.pattern.permute.xlu0 0
    %123 = vperm.xlu0 %122, %v37
    %v124 = vpop.permute.xlu0 %123
    %125 = vset.pattern.permute.xlu0 0
    %126 = vperm.xlu0 %125, %v38
    %v127 = vpop.permute.xlu0 %126
    %128 = vset.pattern.permute.xlu0 0
    %129 = vperm.xlu0 %128, %v39
    %v130 = vpop.permute.xlu0 %129
    %131 = vset.pattern.permute.xlu0 0
    %132 = vperm.xlu0 %131, %v40
    %v133 = vpop.permute.xlu0 %132
    %134 = vset.pattern.permute.xlu0 0
    %135 = vperm.xlu0 %134, %v41
    %v136 = vpop.permute.xlu0 %135
    %137 = vset.pattern.permute.xlu0 0
    %138 = vperm.xlu0 %137, %v42
    %v139 = vpop.permute.xlu0 %138
    %140 = vset.pattern.permute.xlu0 0
    %141 = vperm.xlu0 %140, %v43
    %v142 = vpop.permute.xlu0 %141
    %143 = vset.pattern.permute.xlu0 0
    %144 = vperm.xlu0 %143, %v44
    %v145 = vpop.permute.xlu0 %144
    %146 = vset.pattern.permute.xlu0 0
    %147 = vperm.xlu0 %146, %v45
    %v148 = vpop.permute.xlu0 %147
    %149 = vset.pattern.permute.xlu0 0
    %150 = vperm.xlu0 %149, %v46
    %v151 = vpop.permute.xlu0 %150
    %152 = vset.pattern.permute.xlu0 0
    %153 = vperm.xlu0 %152, %v47
    %v154 = vpop.permute.xlu0 %153
    %155 = vset.pattern.permute.xlu0 0
    %156 = vperm.xlu0 %155, %v48
    %v157 = vpop.permute.xlu0 %156
    %158 = vset.pattern.permute.xlu0 0
    %159 = vperm.xlu0 %158, %v49
    %v160 = vpop.permute.xlu0 %159
    %161 = vset.pattern.permute.xlu0 0
    %162 = vperm.xlu0 %161, %v50
    %v163 = vpop.permute.xlu0 %162
    %164 = vset.pattern.permute.xlu0 0
    %165 = vperm.xlu0 %164, %v51
    %v166 = vpop.permute.xlu0 %165
    %167 = vset.pattern.permute.xlu0 0
    %168 = vperm.xlu0 %167, %v52
    %v169 = vpop.permute.xlu0 %168
    %170 = vset.pattern.permute.xlu0 0
    %171 = vperm.xlu0 %170, %v53
    %v172 = vpop.permute.xlu0 %171
    %173 = vset.pattern.permute.xlu0 0
    %174 = vperm.xlu0 %173, %v54
    %v175 = vpop.permute.xlu0 %174
    %176 = vset.pattern.permute.xlu0 0
    %177 = vperm.xlu0 %176, %v55
    %v178 = vpop.permute.xlu0 %177
    %179 = vset.pattern.permute.xlu0 0
    %180 = vperm.xlu0 %179, %v56
    %v181 = vpop.permute.xlu0 %180
    %182 = vset.pattern.permute.xlu0 0
    %183 = vperm.xlu0 %182, %v57
    %v184 = vpop.permute.xlu0 %183
    %185 = vset.pattern.permute.xlu0 0
    %186 = vperm.xlu0 %185, %v58
    %v187 = vpop.permute.xlu0 %186
    %188 = vset.pattern.permute.xlu0 0
    %189 = vperm.xlu0 %188, %v59
    %v190 = vpop.permute.xlu0 %189
    %191 = vset.pattern.permute.xlu0 0
    %192 = vperm.xlu0 %191, %v60
    %v193 = vpop.permute.xlu0 %192
    %194 = vset.pattern.permute.xlu0 0
    %195 = vperm.xlu0 %194, %v61
    %v196 = vpop.permute.xlu0 %195
    %197 = vset.pattern.permute.xlu0 0
    %198 = vperm.xlu0 %197, %v62
    %v199 = vpop.permute.xlu0 %198
    %200 = vset.pattern.permute.xlu0 0
    %201 = vperm.xlu0 %200, %v63
    %v202 = vpop.permute.xlu0 %201
    %203 = vset.pattern.permute.xlu0 0
    %204 = vperm.xlu0 %203, %v64
    %v205 = vpop.permute.xlu0 %204
    %206 = vset.pattern.permute.xlu0 0
    %207 = vperm.xlu0 %206, %v65
    %v208 = vpop.permute.xlu0 %207
    %209 = vset.pattern.permute.xlu0 0
    %210 = vperm.xlu0 %209, %v66
    %v211 = vpop.permute.xlu0 %210
    %212 = vset.pattern.permute.xlu0 0
    %213 = vperm.xlu0 %212, %v67
    %v214 = vpop.permute.xlu0 %213
    %215 = vset.pattern.permute.xlu0 0
    %216 = vperm.xlu0 %215, %v68
    %v217 = vpop.permute.xlu0 %216
    %218 = vset.pattern.permute.xlu0 0
    %219 = vperm.xlu0 %218, %v69
    %v220 = vpop.permute.xlu0 %219
    %221 = vset.pattern.permute.xlu0 0
    %222 = vperm.xlu0 %221, %v70
    %v223 = vpop.permute.xlu0 %222
    %224 = vset.pattern.permute.xlu0 0
    %225 = vperm.xlu0 %224, %v71
    %v226 = vpop.permute.xlu0 %225
    %227 = vset.pattern.permute.xlu0 0
    %228 = vperm.xlu0 %227, %v72
    %v229 = vpop.permute.xlu0 %228
    %230 = vset.pattern.permute.xlu0 0
    %231 = vperm.xlu0 %230, %v73
    %v232 = vpop.permute.xlu0 %231
    %233 = vset.pattern.permute.xlu0 0
    %234 = vperm.xlu0 %233, %v74
    %v235 = vpop.permute.xlu0 %234
    %236 = vset.pattern.permute.xlu0 0
    %237 = vperm.xlu0 %236, %v75
    %v238 = vpop.permute.xlu0 %237
    %239 = vset.pattern.permute.xlu0 0
    %240 = vperm.xlu0 %239, %v76
    %v241 = vpop.permute.xlu0 %240
    %242 = vset.pattern.permute.xlu0 0
    %243 = vperm.xlu0 %242, %v77
    %v244 = vpop.permute.xlu0 %243
    %245 = vset.pattern.permute.xlu0 0
    %246 = vperm.xlu0 %245, %v78
    %v247 = vpop.permute.xlu0 %246
    %248 = vset.pattern.permute.xlu0 0
    %249 = vperm.xlu0 %248, %v79
    %v250 = vpop.permute.xlu0 %249
    %251 = vset.pattern.permute.xlu0 0
    %252 = vperm.xlu0 %251, %v80
    %v253 = vpop.permute.xlu0 %252
    %254 = vset.pattern.permute.xlu0 0
    %255 = vperm.xlu0 %254, %v81
    %v256 = vpop.permute.xlu0 %255
    %257 = vset.pattern.permute.xlu0 0
    %258 = vperm.xlu0 %257, %v82
    %v259 = vpop.permute.xlu0 %258
    %260 = vset.pattern.permute.xlu0 0
    %261 = vperm.xlu0 %260, %v83
    %v262 = vpop.permute.xlu0 %261
    %263 = vset.pattern.permute.xlu0 0
    %264 = vperm.xlu0 %263, %v84
    %v265 = vpop.permute.xlu0 %264
    %266 = vset.pattern.permute.xlu0 0
    %267 = vperm.xlu0 %266, %v85
    %v268 = vpop.permute.xlu0 %267
    %269 = vset.pattern.permute.xlu0 0
    %270 = vperm.xlu0 %269, %v86
    %v271 = vpop.permute.xlu0 %270
    %272 = vset.pattern.permute.xlu0 0
    %273 = vperm.xlu0 %272, %v87
    %v274 = vpop.permute.xlu0 %273
    %275 = vset.pattern.permute.xlu0 0
    %276 = vperm.xlu0 %275, %v88
    %v277 = vpop.permute.xlu0 %276
    %278 = vset.pattern.permute.xlu0 0
    %279 = vperm.xlu0 %278, %v89
    %v280 = vpop.permute.xlu0 %279
    %281 = vset.pattern.permute.xlu0 0
    %282 = vperm.xlu0 %281, %v90
    %v283 = vpop.permute.xlu0 %282
    %284 = vset.pattern.permute.xlu0 0
    %285 = vperm.xlu0 %284, %v91
    %v286 = vpop.permute.xlu0 %285
    %287 = vset.pattern.permute.xlu0 0
    %288 = vperm.xlu0 %287, %v92
    %v289 = vpop.permute.xlu0 %288
    %290 = vset.pattern.permute.xlu0 0
    %291 = vperm.xlu0 %290, %v93
    %v292 = vpop.permute.xlu0 %291
    %293 = vset.pattern.permute.xlu0 0
    %294 = vperm.xlu0 %293, %v94
    %v295 = vpop.permute.xlu0 %294
    %296 = vset.pattern.permute.xlu0 0
    %297 = vperm.xlu0 %296, %v95
    %v298 = vpop.permute.xlu0 %297
    %299 = vset.pattern.permute.xlu0 0
    %300 = vperm.xlu0 %299, %v96
    %v301 = vpop.permute.xlu0 %300
    %302 = vset.pattern.permute.xlu0 0
    %303 = vperm.xlu0 %302, %v97
    %v304 = vpop.permute.xlu0 %303
    %305 = vset.pattern.permute.xlu0 0
    %306 = vperm.xlu0 %305, %v98
    %v307 = vpop.permute.xlu0 %306
    %308 = vset.pattern.permute.xlu0 0
    %309 = vperm.xlu0 %308, %v99
    %v310 = vpop.permute.xlu0 %309
    %311 = vset.pattern.permute.xlu0 0
    %312 = vperm.xlu0 %311, %v100
    %v313 = vpop.permute.xlu0 %312
    %314 = vset.pattern.permute.xlu0 0
    %315 = vperm.xlu0 %314, %v101
    %v316 = vpop.permute.xlu0 %315
    %317 = vset.pattern.permute.xlu0 0
    %318 = vperm.xlu0 %317, %v102
    %v319 = vpop.permute.xlu0 %318
    %320 = vset.pattern.permute.xlu0 0
    %321 = vperm.xlu0 %320, %v103
    %v322 = vpop.permute.xlu0 %321
    %vm323 = vcmp.eq.s32.totalorder %v105, %v109
    %vm324 = vcmp.eq.s32.totalorder %v106, %v109
    %vm325 = vcmp.eq.s32.totalorder %v105, %v112
    %vm326 = vcmp.eq.s32.totalorder %v106, %v112
    %vm327 = vcmp.eq.s32.totalorder %v105, %v115
    %vm328 = vcmp.eq.s32.totalorder %v106, %v115
    %vm329 = vcmp.eq.s32.totalorder %v105, %v118
    %vm330 = vcmp.eq.s32.totalorder %v106, %v118
    %vm331 = vcmp.eq.s32.totalorder %v105, %v121
    %vm332 = vcmp.eq.s32.totalorder %v106, %v121
    %vm333 = vcmp.eq.s32.totalorder %v105, %v124
    %vm334 = vcmp.eq.s32.totalorder %v106, %v124
    %vm335 = vcmp.eq.s32.totalorder %v105, %v127
    %vm336 = vcmp.eq.s32.totalorder %v106, %v127
    %vm337 = vcmp.eq.s32.totalorder %v105, %v130
    %vm338 = vcmp.eq.s32.totalorder %v106, %v130
    %vm339 = vcmp.eq.s32.totalorder %v105, %v133
    %vm340 = vcmp.eq.s32.totalorder %v106, %v133
    %vm341 = vcmp.eq.s32.totalorder %v105, %v136
    %vm342 = vcmp.eq.s32.totalorder %v106, %v136
    %vm343 = vcmp.eq.s32.totalorder %v105, %v139
    %vm344 = vcmp.eq.s32.totalorder %v106, %v139
    %vm345 = vcmp.eq.s32.totalorder %v105, %v142
    %vm346 = vcmp.eq.s32.totalorder %v106, %v142
    %vm347 = vcmp.eq.s32.totalorder %v105, %v145
    %vm348 = vcmp.eq.s32.totalorder %v106, %v145
    %vm349 = vcmp.eq.s32.totalorder %v105, %v148
    %vm350 = vcmp.eq.s32.totalorder %v106, %v148
    %vm351 = vcmp.eq.s32.totalorder %v105, %v151
    %vm352 = vcmp.eq.s32.totalorder %v106, %v151
    %vm353 = vcmp.eq.s32.totalorder %v105, %v154
    %vm354 = vcmp.eq.s32.totalorder %v106, %v154
    %vm355 = vcmp.eq.s32.totalorder %v105, %v157
    %vm356 = vcmp.eq.s32.totalorder %v106, %v157
    %vm357 = vcmp.eq.s32.totalorder %v105, %v160
    %vm358 = vcmp.eq.s32.totalorder %v106, %v160
    %vm359 = vcmp.eq.s32.totalorder %v105, %v163
    %vm360 = vcmp.eq.s32.totalorder %v106, %v163
    %vm361 = vcmp.eq.s32.totalorder %v105, %v166
    %vm362 = vcmp.eq.s32.totalorder %v106, %v166
    %vm363 = vcmp.eq.s32.totalorder %v105, %v169
    %vm364 = vcmp.eq.s32.totalorder %v106, %v169
    %vm365 = vcmp.eq.s32.totalorder %v105, %v172
    %vm366 = vcmp.eq.s32.totalorder %v106, %v172
    %vm367 = vcmp.eq.s32.totalorder %v105, %v175
    %vm368 = vcmp.eq.s32.totalorder %v106, %v175
    %vm369 = vcmp.eq.s32.totalorder %v105, %v178
    %vm370 = vcmp.eq.s32.totalorder %v106, %v178
    %vm371 = vcmp.eq.s32.totalorder %v105, %v181
    %vm372 = vcmp.eq.s32.totalorder %v106, %v181
    %vm373 = vcmp.eq.s32.totalorder %v105, %v184
    %vm374 = vcmp.eq.s32.totalorder %v106, %v184
    %vm375 = vcmp.eq.s32.totalorder %v105, %v187
    %vm376 = vcmp.eq.s32.totalorder %v106, %v187
    %vm377 = vcmp.eq.s32.totalorder %v105, %v190
    %vm378 = vcmp.eq.s32.totalorder %v106, %v190
    %vm379 = vcmp.eq.s32.totalorder %v105, %v193
    %vm380 = vcmp.eq.s32.totalorder %v106, %v193
    %vm381 = vcmp.eq.s32.totalorder %v105, %v196
    %vm382 = vcmp.eq.s32.totalorder %v106, %v196
    %vm383 = vcmp.eq.s32.totalorder %v105, %v199
    %vm384 = vcmp.eq.s32.totalorder %v106, %v199
    %vm385 = vcmp.eq.s32.totalorder %v105, %v202
    %vm386 = vcmp.eq.s32.totalorder %v106, %v202
    %vm387 = vcmp.eq.s32.totalorder %v105, %v205
    %vm388 = vcmp.eq.s32.totalorder %v106, %v205
    %vm389 = vcmp.eq.s32.totalorder %v105, %v208
    %vm390 = vcmp.eq.s32.totalorder %v106, %v208
    %vm391 = vcmp.eq.s32.totalorder %v105, %v211
    %vm392 = vcmp.eq.s32.totalorder %v106, %v211
    %vm393 = vcmp.eq.s32.totalorder %v105, %v214
    %vm394 = vcmp.eq.s32.totalorder %v106, %v214
    %vm395 = vcmp.eq.s32.totalorder %v105, %v217
    %vm396 = vcmp.eq.s32.totalorder %v106, %v217
    %vm397 = vcmp.eq.s32.totalorder %v105, %v220
    %vm398 = vcmp.eq.s32.totalorder %v106, %v220
    %vm399 = vcmp.eq.s32.totalorder %v105, %v223
    %vm400 = vcmp.eq.s32.totalorder %v106, %v223
    %vm401 = vcmp.eq.s32.totalorder %v105, %v226
    %vm402 = vcmp.eq.s32.totalorder %v106, %v226
    %vm403 = vcmp.eq.s32.totalorder %v105, %v229
    %vm404 = vcmp.eq.s32.totalorder %v106, %v229
    %vm405 = vcmp.eq.s32.totalorder %v105, %v232
    %vm406 = vcmp.eq.s32.totalorder %v106, %v232
    %vm407 = vcmp.eq.s32.totalorder %v105, %v235
    %vm408 = vcmp.eq.s32.totalorder %v106, %v235
    %vm409 = vcmp.eq.s32.totalorder %v105, %v238
    %vm410 = vcmp.eq.s32.totalorder %v106, %v238
    %vm411 = vcmp.eq.s32.totalorder %v105, %v241
    %vm412 = vcmp.eq.s32.totalorder %v106, %v241
    %vm413 = vcmp.eq.s32.totalorder %v105, %v244
    %vm414 = vcmp.eq.s32.totalorder %v106, %v244
    %vm415 = vcmp.eq.s32.totalorder %v105, %v247
    %vm416 = vcmp.eq.s32.totalorder %v106, %v247
    %vm417 = vcmp.eq.s32.totalorder %v105, %v250
    %vm418 = vcmp.eq.s32.totalorder %v106, %v250
    %vm419 = vcmp.eq.s32.totalorder %v105, %v253
    %vm420 = vcmp.eq.s32.totalorder %v106, %v253
    %vm421 = vcmp.eq.s32.totalorder %v105, %v256
    %vm422 = vcmp.eq.s32.totalorder %v106, %v256
    %vm423 = vcmp.eq.s32.totalorder %v105, %v259
    %vm424 = vcmp.eq.s32.totalorder %v106, %v259
    %vm425 = vcmp.eq.s32.totalorder %v105, %v262
    %vm426 = vcmp.eq.s32.totalorder %v106, %v262
    %vm427 = vcmp.eq.s32.totalorder %v105, %v265
    %vm428 = vcmp.eq.s32.totalorder %v106, %v265
    %vm429 = vcmp.eq.s32.totalorder %v105, %v268
    %vm430 = vcmp.eq.s32.totalorder %v106, %v268
    %vm431 = vcmp.eq.s32.totalorder %v105, %v271
    %vm432 = vcmp.eq.s32.totalorder %v106, %v271
    %vm433 = vcmp.eq.s32.totalorder %v105, %v274
    %vm434 = vcmp.eq.s32.totalorder %v106, %v274
    %vm435 = vcmp.eq.s32.totalorder %v105, %v277
    %vm436 = vcmp.eq.s32.totalorder %v106, %v277
    %vm437 = vcmp.eq.s32.totalorder %v105, %v280
    %vm438 = vcmp.eq.s32.totalorder %v106, %v280
    %vm439 = vcmp.eq.s32.totalorder %v105, %v283
    %vm440 = vcmp.eq.s32.totalorder %v106, %v283
    %vm441 = vcmp.eq.s32.totalorder %v105, %v286
    %vm442 = vcmp.eq.s32.totalorder %v106, %v286
    %vm443 = vcmp.eq.s32.totalorder %v105, %v289
    %vm444 = vcmp.eq.s32.totalorder %v106, %v289
    %vm445 = vcmp.eq.s32.totalorder %v105, %v292
    %vm446 = vcmp.eq.s32.totalorder %v106, %v292
    %vm447 = vcmp.eq.s32.totalorder %v105, %v295
    %vm448 = vcmp.eq.s32.totalorder %v106, %v295
    %vm449 = vcmp.eq.s32.totalorder %v105, %v298
    %vm450 = vcmp.eq.s32.totalorder %v106, %v298
    %vm451 = vcmp.eq.s32.totalorder %v105, %v301
    %vm452 = vcmp.eq.s32.totalorder %v106, %v301
    %vm453 = vcmp.eq.s32.totalorder %v105, %v304
    %vm454 = vcmp.eq.s32.totalorder %v106, %v304
    %vm455 = vcmp.eq.s32.totalorder %v105, %v307
    %vm456 = vcmp.eq.s32.totalorder %v106, %v307
    %vm457 = vcmp.eq.s32.totalorder %v105, %v310
    %vm458 = vcmp.eq.s32.totalorder %v106, %v310
    %vm459 = vcmp.eq.s32.totalorder %v105, %v313
    %vm460 = vcmp.eq.s32.totalorder %v106, %v313
    %vm461 = vcmp.eq.s32.totalorder %v105, %v316
    %vm462 = vcmp.eq.s32.totalorder %v106, %v316
    %vm463 = vcmp.eq.s32.totalorder %v105, %v319
    %vm464 = vcmp.eq.s32.totalorder %v106, %v319
    %vm465 = vcmp.eq.s32.totalorder %v105, %v322
    %vm466 = vcmp.eq.s32.totalorder %v106, %v322
    %v467 = vsel %vm323, 1, 0
    %v468 = vsel %vm324, 1, 0
    %v469 = vsel %vm325, 1, 0
    %v470 = vsel %vm326, 1, 0
    %v471 = vsel %vm327, 1, 0
    %v472 = vsel %vm328, 1, 0
    %v473 = vsel %vm329, 1, 0
    %v474 = vsel %vm330, 1, 0
    %v475 = vsel %vm331, 1, 0
    %v476 = vsel %vm332, 1, 0
    %v477 = vsel %vm333, 1, 0
    %v478 = vsel %vm334, 1, 0
    %v479 = vsel %vm335, 1, 0
    %v480 = vsel %vm336, 1, 0
    %v481 = vsel %vm337, 1, 0
    %v482 = vsel %vm338, 1, 0
    %v483 = vsel %vm339, 1, 0
    %v484 = vsel %vm340, 1, 0
    %v485 = vsel %vm341, 1, 0
    %v486 = vsel %vm342, 1, 0
    %v487 = vsel %vm343, 1, 0
    %v488 = vsel %vm344, 1, 0
    %v489 = vsel %vm345, 1, 0
    %v490 = vsel %vm346, 1, 0
    %v491 = vsel %vm347, 1, 0
    %v492 = vsel %vm348, 1, 0
    %v493 = vsel %vm349, 1, 0
    %v494 = vsel %vm350, 1, 0
    %v495 = vsel %vm351, 1, 0
    %v496 = vsel %vm352, 1, 0
    %v497 = vsel %vm353, 1, 0
    %v498 = vsel %vm354, 1, 0
    %v499 = vsel %vm355, 1, 0
    %v500 = vsel %vm356, 1, 0
    %v501 = vsel %vm357, 1, 0
    %v502 = vsel %vm358, 1, 0
    %v503 = vsel %vm359, 1, 0
    %v504 = vsel %vm360, 1, 0
    %v505 = vsel %vm361, 1, 0
    %v506 = vsel %vm362, 1, 0
    %v507 = vsel %vm363, 1, 0
    %v508 = vsel %vm364, 1, 0
    %v509 = vsel %vm365, 1, 0
    %v510 = vsel %vm366, 1, 0
    %v511 = vsel %vm367, 1, 0
    %v512 = vsel %vm368, 1, 0
    %v513 = vsel %vm369, 1, 0
    %v514 = vsel %vm370, 1, 0
    %v515 = vsel %vm371, 1, 0
    %v516 = vsel %vm372, 1, 0
    %v517 = vsel %vm373, 1, 0
    %v518 = vsel %vm374, 1, 0
    %v519 = vsel %vm375, 1, 0
    %v520 = vsel %vm376, 1, 0
    %v521 = vsel %vm377, 1, 0
    %v522 = vsel %vm378, 1, 0
    %v523 = vsel %vm379, 1, 0
    %v524 = vsel %vm380, 1, 0
    %v525 = vsel %vm381, 1, 0
    %v526 = vsel %vm382, 1, 0
    %v527 = vsel %vm383, 1, 0
    %v528 = vsel %vm384, 1, 0
    %v529 = vsel %vm385, 1, 0
    %v530 = vsel %vm386, 1, 0
    %v531 = vsel %vm387, 1, 0
    %v532 = vsel %vm388, 1, 0
    %v533 = vsel %vm389, 1, 0
    %v534 = vsel %vm390, 1, 0
    %v535 = vsel %vm391, 1, 0
    %v536 = vsel %vm392, 1, 0
    %v537 = vsel %vm393, 1, 0
    %v538 = vsel %vm394, 1, 0
    %v539 = vsel %vm395, 1, 0
    %v540 = vsel %vm396, 1, 0
    %v541 = vsel %vm397, 1, 0
    %v542 = vsel %vm398, 1, 0
    %v543 = vsel %vm399, 1, 0
    %v544 = vsel %vm400, 1, 0
    %v545 = vsel %vm401, 1, 0
    %v546 = vsel %vm402, 1, 0
    %v547 = vsel %vm403, 1, 0
    %v548 = vsel %vm404, 1, 0
    %v549 = vsel %vm405, 1, 0
    %v550 = vsel %vm406, 1, 0
    %v551 = vsel %vm407, 1, 0
    %v552 = vsel %vm408, 1, 0
    %v553 = vsel %vm409, 1, 0
    %v554 = vsel %vm410, 1, 0
    %v555 = vsel %vm411, 1, 0
    %v556 = vsel %vm412, 1, 0
    %v557 = vsel %vm413, 1, 0
    %v558 = vsel %vm414, 1, 0
    %v559 = vsel %vm415, 1, 0
    %v560 = vsel %vm416, 1, 0
    %v561 = vsel %vm417, 1, 0
    %v562 = vsel %vm418, 1, 0
    %v563 = vsel %vm419, 1, 0
    %v564 = vsel %vm420, 1, 0
    %v565 = vsel %vm421, 1, 0
    %v566 = vsel %vm422, 1, 0
    %v567 = vsel %vm423, 1, 0
    %v568 = vsel %vm424, 1, 0
    %v569 = vsel %vm425, 1, 0
    %v570 = vsel %vm426, 1, 0
    %v571 = vsel %vm427, 1, 0
    %v572 = vsel %vm428, 1, 0
    %v573 = vsel %vm429, 1, 0
    %v574 = vsel %vm430, 1, 0
    %v575 = vsel %vm431, 1, 0
    %v576 = vsel %vm432, 1, 0
    %v577 = vsel %vm433, 1, 0
    %v578 = vsel %vm434, 1, 0
    %v579 = vsel %vm435, 1, 0
    %v580 = vsel %vm436, 1, 0
    %v581 = vsel %vm437, 1, 0
    %v582 = vsel %vm438, 1, 0
    %v583 = vsel %vm439, 1, 0
    %v584 = vsel %vm440, 1, 0
    %v585 = vsel %vm441, 1, 0
    %v586 = vsel %vm442, 1, 0
    %v587 = vsel %vm443, 1, 0
    %v588 = vsel %vm444, 1, 0
    %v589 = vsel %vm445, 1, 0
    %v590 = vsel %vm446, 1, 0
    %v591 = vsel %vm447, 1, 0
    %v592 = vsel %vm448, 1, 0
    %v593 = vsel %vm449, 1, 0
    %v594 = vsel %vm450, 1, 0
    %v595 = vsel %vm451, 1, 0
    %v596 = vsel %vm452, 1, 0
    %v597 = vsel %vm453, 1, 0
    %v598 = vsel %vm454, 1, 0
    %v599 = vsel %vm455, 1, 0
    %v600 = vsel %vm456, 1, 0
    %v601 = vsel %vm457, 1, 0
    %v602 = vsel %vm458, 1, 0
    %v603 = vsel %vm459, 1, 0
    %v604 = vsel %vm460, 1, 0
    %v605 = vsel %vm461, 1, 0
    %v606 = vsel %vm462, 1, 0
    %v607 = vsel %vm463, 1, 0
    %v608 = vsel %vm464, 1, 0
    %v609 = vsel %vm465, 1, 0
    %v610 = vsel %vm466, 1, 0
    %v611 = vcvt.s32.f32 %v467
    %v612 = vcvt.s32.f32 %v468
    %v613 = vcvt.s32.f32 %v469
    %v614 = vcvt.s32.f32 %v470
    %v615 = vcvt.s32.f32 %v471
    %v616 = vcvt.s32.f32 %v472
    %v617 = vcvt.s32.f32 %v473
    %v618 = vcvt.s32.f32 %v474
    %v619 = vcvt.s32.f32 %v475
    %v620 = vcvt.s32.f32 %v476
    %v621 = vcvt.s32.f32 %v477
    %v622 = vcvt.s32.f32 %v478
    %v623 = vcvt.s32.f32 %v479
    %v624 = vcvt.s32.f32 %v480
    %v625 = vcvt.s32.f32 %v481
    %v626 = vcvt.s32.f32 %v482
    %v627 = vcvt.s32.f32 %v483
    %v628 = vcvt.s32.f32 %v484
    %v629 = vcvt.s32.f32 %v485
    %v630 = vcvt.s32.f32 %v486
    %v631 = vcvt.s32.f32 %v487
    %v632 = vcvt.s32.f32 %v488
    %v633 = vcvt.s32.f32 %v489
    %v634 = vcvt.s32.f32 %v490
    %v635 = vcvt.s32.f32 %v491
    %v636 = vcvt.s32.f32 %v492
    %v637 = vcvt.s32.f32 %v493
    %v638 = vcvt.s32.f32 %v494
    %v639 = vcvt.s32.f32 %v495
    %v640 = vcvt.s32.f32 %v496
    %v641 = vcvt.s32.f32 %v497
    %v642 = vcvt.s32.f32 %v498
    %v643 = vcvt.s32.f32 %v499
    %v644 = vcvt.s32.f32 %v500
    %v645 = vcvt.s32.f32 %v501
    %v646 = vcvt.s32.f32 %v502
    %v647 = vcvt.s32.f32 %v503
    %v648 = vcvt.s32.f32 %v504
    %v649 = vcvt.s32.f32 %v505
    %v650 = vcvt.s32.f32 %v506
    %v651 = vcvt.s32.f32 %v507
    %v652 = vcvt.s32.f32 %v508
    %v653 = vcvt.s32.f32 %v509
    %v654 = vcvt.s32.f32 %v510
    %v655 = vcvt.s32.f32 %v511
    %v656 = vcvt.s32.f32 %v512
    %v657 = vcvt.s32.f32 %v513
    %v658 = vcvt.s32.f32 %v514
    %v659 = vcvt.s32.f32 %v515
    %v660 = vcvt.s32.f32 %v516
    %v661 = vcvt.s32.f32 %v517
    %v662 = vcvt.s32.f32 %v518
    %v663 = vcvt.s32.f32 %v519
    %v664 = vcvt.s32.f32 %v520
    %v665 = vcvt.s32.f32 %v521
    %v666 = vcvt.s32.f32 %v522
    %v667 = vcvt.s32.f32 %v523
    %v668 = vcvt.s32.f32 %v524
    %v669 = vcvt.s32.f32 %v525
    %v670 = vcvt.s32.f32 %v526
    %v671 = vcvt.s32.f32 %v527
    %v672 = vcvt.s32.f32 %v528
    %v673 = vcvt.s32.f32 %v529
    %v674 = vcvt.s32.f32 %v530
    %v675 = vcvt.s32.f32 %v531
    %v676 = vcvt.s32.f32 %v532
    %v677 = vcvt.s32.f32 %v533
    %v678 = vcvt.s32.f32 %v534
    %v679 = vcvt.s32.f32 %v535
    %v680 = vcvt.s32.f32 %v536
    %v681 = vcvt.s32.f32 %v537
    %v682 = vcvt.s32.f32 %v538
    %v683 = vcvt.s32.f32 %v539
    %v684 = vcvt.s32.f32 %v540
    %v685 = vcvt.s32.f32 %v541
    %v686 = vcvt.s32.f32 %v542
    %v687 = vcvt.s32.f32 %v543
    %v688 = vcvt.s32.f32 %v544
    %v689 = vcvt.s32.f32 %v545
    %v690 = vcvt.s32.f32 %v546
    %v691 = vcvt.s32.f32 %v547
    %v692 = vcvt.s32.f32 %v548
    %v693 = vcvt.s32.f32 %v549
    %v694 = vcvt.s32.f32 %v550
    %v695 = vcvt.s32.f32 %v551
    %v696 = vcvt.s32.f32 %v552
    %v697 = vcvt.s32.f32 %v553
    %v698 = vcvt.s32.f32 %v554
    %v699 = vcvt.s32.f32 %v555
    %v700 = vcvt.s32.f32 %v556
    %v701 = vcvt.s32.f32 %v557
    %v702 = vcvt.s32.f32 %v558
    %v703 = vcvt.s32.f32 %v559
    %v704 = vcvt.s32.f32 %v560
    %v705 = vcvt.s32.f32 %v561
    %v706 = vcvt.s32.f32 %v562
    %v707 = vcvt.s32.f32 %v563
    %v708 = vcvt.s32.f32 %v564
    %v709 = vcvt.s32.f32 %v565
    %v710 = vcvt.s32.f32 %v566
    %v711 = vcvt.s32.f32 %v567
    %v712 = vcvt.s32.f32 %v568
    %v713 = vcvt.s32.f32 %v569
    %v714 = vcvt.s32.f32 %v570
    %v715 = vcvt.s32.f32 %v571
    %v716 = vcvt.s32.f32 %v572
    %v717 = vcvt.s32.f32 %v573
    %v718 = vcvt.s32.f32 %v574
    %v719 = vcvt.s32.f32 %v575
    %v720 = vcvt.s32.f32 %v576
    %v721 = vcvt.s32.f32 %v577
    %v722 = vcvt.s32.f32 %v578
    %v723 = vcvt.s32.f32 %v579
    %v724 = vcvt.s32.f32 %v580
    %v725 = vcvt.s32.f32 %v581
    %v726 = vcvt.s32.f32 %v582
    %v727 = vcvt.s32.f32 %v583
    %v728 = vcvt.s32.f32 %v584
    %v729 = vcvt.s32.f32 %v585
    %v730 = vcvt.s32.f32 %v586
    %v731 = vcvt.s32.f32 %v587
    %v732 = vcvt.s32.f32 %v588
    %v733 = vcvt.s32.f32 %v589
    %v734 = vcvt.s32.f32 %v590
    %v735 = vcvt.s32.f32 %v591
    %v736 = vcvt.s32.f32 %v592
    %v737 = vcvt.s32.f32 %v593
    %v738 = vcvt.s32.f32 %v594
    %v739 = vcvt.s32.f32 %v595
    %v740 = vcvt.s32.f32 %v596
    %v741 = vcvt.s32.f32 %v597
    %v742 = vcvt.s32.f32 %v598
    %v743 = vcvt.s32.f32 %v599
    %v744 = vcvt.s32.f32 %v600
    %v745 = vcvt.s32.f32 %v601
    %v746 = vcvt.s32.f32 %v602
    %v747 = vcvt.s32.f32 %v603
    %v748 = vcvt.s32.f32 %v604
    %v749 = vcvt.s32.f32 %v605
    %v750 = vcvt.s32.f32 %v606
    %v751 = vcvt.s32.f32 %v607
    %v752 = vcvt.s32.f32 %v608
    %v753 = vcvt.s32.f32 %v609
    %v754 = vcvt.s32.f32 %v610
    %v755 = vpack.c.bf16 %v613, %v611
    %v756 = vpack.c.bf16 %v614, %v612
    %v757 = vpack.c.bf16 %v617, %v615
    %v758 = vpack.c.bf16 %v618, %v616
    %v759 = vpack.c.bf16 %v621, %v619
    %v760 = vpack.c.bf16 %v622, %v620
    %v761 = vpack.c.bf16 %v625, %v623
    %v762 = vpack.c.bf16 %v626, %v624
    %v763 = vpack.c.bf16 %v629, %v627
    %v764 = vpack.c.bf16 %v630, %v628
    %v765 = vpack.c.bf16 %v633, %v631
    %v766 = vpack.c.bf16 %v634, %v632
    %v767 = vpack.c.bf16 %v637, %v635
    %v768 = vpack.c.bf16 %v638, %v636
    %v769 = vpack.c.bf16 %v641, %v639
    %v770 = vpack.c.bf16 %v642, %v640
    %v771 = vpack.c.bf16 %v645, %v643
    %v772 = vpack.c.bf16 %v646, %v644
    %v773 = vpack.c.bf16 %v649, %v647
    %v774 = vpack.c.bf16 %v650, %v648
    %v775 = vpack.c.bf16 %v653, %v651
    %v776 = vpack.c.bf16 %v654, %v652
    %v777 = vpack.c.bf16 %v657, %v655
    %v778 = vpack.c.bf16 %v658, %v656
    %v779 = vpack.c.bf16 %v661, %v659
    %v780 = vpack.c.bf16 %v662, %v660
    %v781 = vpack.c.bf16 %v665, %v663
    %v782 = vpack.c.bf16 %v666, %v664
    %v783 = vpack.c.bf16 %v669, %v667
    %v784 = vpack.c.bf16 %v670, %v668
    %v785 = vpack.c.bf16 %v673, %v671
    %v786 = vpack.c.bf16 %v674, %v672
    %v787 = vpack.c.bf16 %v677, %v675
    %v788 = vpack.c.bf16 %v678, %v676
    %v789 = vpack.c.bf16 %v681, %v679
    %v790 = vpack.c.bf16 %v682, %v680
    %v791 = vpack.c.bf16 %v685, %v683
    %v792 = vpack.c.bf16 %v686, %v684
    %v793 = vpack.c.bf16 %v689, %v687
    %v794 = vpack.c.bf16 %v690, %v688
    %v795 = vpack.c.bf16 %v693, %v691
    %v796 = vpack.c.bf16 %v694, %v692
    %v797 = vpack.c.bf16 %v697, %v695
    %v798 = vpack.c.bf16 %v698, %v696
    %v799 = vpack.c.bf16 %v701, %v699
    %v800 = vpack.c.bf16 %v702, %v700
    %v801 = vpack.c.bf16 %v705, %v703
    %v802 = vpack.c.bf16 %v706, %v704
    %v803 = vpack.c.bf16 %v709, %v707
    %v804 = vpack.c.bf16 %v710, %v708
    %v805 = vpack.c.bf16 %v713, %v711
    %v806 = vpack.c.bf16 %v714, %v712
    %v807 = vpack.c.bf16 %v717, %v715
    %v808 = vpack.c.bf16 %v718, %v716
    %v809 = vpack.c.bf16 %v721, %v719
    %v810 = vpack.c.bf16 %v722, %v720
    %v811 = vpack.c.bf16 %v725, %v723
    %v812 = vpack.c.bf16 %v726, %v724
    %v813 = vpack.c.bf16 %v729, %v727
    %v814 = vpack.c.bf16 %v730, %v728
    %v815 = vpack.c.bf16 %v733, %v731
    %v816 = vpack.c.bf16 %v734, %v732
    %v817 = vpack.c.bf16 %v737, %v735
    %v818 = vpack.c.bf16 %v738, %v736
    %v819 = vpack.c.bf16 %v741, %v739
    %v820 = vpack.c.bf16 %v742, %v740
    %v821 = vpack.c.bf16 %v745, %v743
    %v822 = vpack.c.bf16 %v746, %v744
    %v823 = vpack.c.bf16 %v749, %v747
    %v824 = vpack.c.bf16 %v750, %v748
    %v825 = vpack.c.bf16 %v753, %v751
    %v826 = vpack.c.bf16 %v754, %v752
    %v827 = vld [vmem:[%s1] sm:$0xf]
    %v828 = vld [vmem:[%s1 + $0x4] sm:$0xf]
    %v829 = vld [vmem:[%s1 + $0x8] sm:$0xf]
    %v830 = vld [vmem:[%s1 + $0xc] sm:$0xf]
    %v831 = vld [vmem:[%s1 + $0x10] sm:$0xf]
    %v832 = vld [vmem:[%s1 + $0x14] sm:$0xf]
    %v833 = vld [vmem:[%s1 + $0x18] sm:$0xf]
    %v834 = vld [vmem:[%s1 + $0x1c] sm:$0xf]
    %v835 = vld [vmem:[%s1 + $0x20] sm:$0xf]
    %v836 = vld [vmem:[%s1 + $0x24] sm:$0xf]
    %v837 = vld [vmem:[%s1 + $0x28] sm:$0xf]
    %v838 = vld [vmem:[%s1 + $0x2c] sm:$0xf]
    %v839 = vld [vmem:[%s1 + $0x30] sm:$0xf]
    %v840 = vld [vmem:[%s1 + $0x34] sm:$0xf]
    %v841 = vld [vmem:[%s1 + $0x38] sm:$0xf]
    %v842 = vld [vmem:[%s1 + $0x3c] sm:$0xf]
    %v843 = vld [vmem:[%s1 + $0x40] sm:$0xf]
    %v844 = vld [vmem:[%s1 + $0x44] sm:$0xf]
    %v845 = vld [vmem:[%s1 + $0x48] sm:$0xf]
    %v846 = vld [vmem:[%s1 + $0x4c] sm:$0xf]
    %v847 = vld [vmem:[%s1 + $0x50] sm:$0xf]
    %v848 = vld [vmem:[%s1 + $0x54] sm:$0xf]
    %v849 = vld [vmem:[%s1 + $0x58] sm:$0xf]
    %v850 = vld [vmem:[%s1 + $0x5c] sm:$0xf]
    %v851 = vld [vmem:[%s1 + $0x60] sm:$0xf]
    %v852 = vld [vmem:[%s1 + $0x64] sm:$0xf]
    %v853 = vld [vmem:[%s1 + $0x68] sm:$0xf]
    %v854 = vld [vmem:[%s1 + $0x6c] sm:$0xf]
    %v855 = vld [vmem:[%s1 + $0x70] sm:$0xf]
    %v856 = vld [vmem:[%s1 + $0x74] sm:$0xf]
    %v857 = vld [vmem:[%s1 + $0x78] sm:$0xf]
    %v858 = vld [vmem:[%s1 + $0x7c] sm:$0xf]
    %v891 = vunpack.c.l.b16 %v827
    %v892 = vunpack.c.l.b16 %v828
    %v893 = vunpack.c.l.b16 %v829
    %v894 = vunpack.c.l.b16 %v830
    %v895 = vunpack.c.l.b16 %v831
    %v896 = vunpack.c.l.b16 %v832
    %v897 = vunpack.c.l.b16 %v833
    %v898 = vunpack.c.l.b16 %v834
    %v899 = vunpack.c.l.b16 %v835
    %v900 = vunpack.c.l.b16 %v836
    %v901 = vunpack.c.l.b16 %v837
    %v902 = vunpack.c.l.b16 %v838
    %v903 = vunpack.c.l.b16 %v839
    %v904 = vunpack.c.l.b16 %v840
    %v905 = vunpack.c.l.b16 %v841
    %v906 = vunpack.c.l.b16 %v842
    %v907 = vunpack.c.l.b16 %v843
    %v908 = vunpack.c.l.b16 %v844
    %v909 = vunpack.c.l.b16 %v845
    %v910 = vunpack.c.l.b16 %v846
    %v911 = vunpack.c.l.b16 %v847
    %v912 = vunpack.c.l.b16 %v848
    %v913 = vunpack.c.l.b16 %v849
    %v914 = vunpack.c.l.b16 %v850
    %v915 = vunpack.c.l.b16 %v851
    %v916 = vunpack.c.l.b16 %v852
    %v917 = vunpack.c.l.b16 %v853
    %v918 = vunpack.c.l.b16 %v854
    %v919 = vunpack.c.l.b16 %v855
    %v920 = vunpack.c.l.b16 %v856
    %v921 = vunpack.c.l.b16 %v857
    %v922 = vunpack.c.l.b16 %v858
    %v923 = vpack.c.b16 %v892, %v891
    %v924 = vpack.c.b16 %v894, %v893
    %v925 = vpack.c.b16 %v896, %v895
    %v926 = vpack.c.b16 %v898, %v897
    %v927 = vpack.c.b16 %v900, %v899
    %v928 = vpack.c.b16 %v902, %v901
    %v929 = vpack.c.b16 %v904, %v903
    %v930 = vpack.c.b16 %v906, %v905
    %v931 = vpack.c.b16 %v908, %v907
    %v932 = vpack.c.b16 %v910, %v909
    %v933 = vpack.c.b16 %v912, %v911
    %v934 = vpack.c.b16 %v914, %v913
    %v935 = vpack.c.b16 %v916, %v915
    %v936 = vpack.c.b16 %v918, %v917
    %v937 = vpack.c.b16 %v920, %v919
    %v938 = vpack.c.b16 %v922, %v921
    %955 = vmatprep.subr.bf16.mxu0 0
    %956 = vmatpush1.bf16.msra.mxu0 %v923
    %957 = vmatprep.subr.bf16.mxu0 0
    %958 = vmatpush1.bf16.msra.mxu0 %v924
    %959 = vmatprep.subr.bf16.mxu0 0
    %960 = vmatpush1.bf16.msra.mxu0 %v925
    %961 = vmatprep.subr.bf16.mxu0 0
    %962 = vmatpush1.bf16.msra.mxu0 %v926
    %963 = vmatprep.subr.bf16.mxu0 0
    %964 = vmatpush1.bf16.msra.mxu0 %v927
    %965 = vmatprep.subr.bf16.mxu0 0
    %966 = vmatpush1.bf16.msra.mxu0 %v928
    %967 = vmatprep.subr.bf16.mxu0 0
    %968 = vmatpush1.bf16.msra.mxu0 %v929
    %969 = vmatprep.subr.bf16.mxu0 0
    %970 = vmatpush1.bf16.msra.mxu0 %v930
    %971 = vmatprep.subr.bf16.mxu0 0
    %972 = vmatpush1.bf16.msra.mxu0 %v931
    %973 = vmatprep.subr.bf16.mxu0 0
    %974 = vmatpush1.bf16.msra.mxu0 %v932
    %975 = vmatprep.subr.bf16.mxu0 0
    %976 = vmatpush1.bf16.msra.mxu0 %v933
    %977 = vmatprep.subr.bf16.mxu0 0
    %978 = vmatpush1.bf16.msra.mxu0 %v934
    %979 = vmatprep.subr.bf16.mxu0 0
    %980 = vmatpush1.bf16.msra.mxu0 %v935
    %981 = vmatprep.subr.bf16.mxu0 0
    %982 = vmatpush1.bf16.msra.mxu0 %v936
    %983 = vmatprep.subr.bf16.mxu0 0
    %984 = vmatpush1.bf16.msra.mxu0 %v937
    %985 = vmatprep.subr.bf16.mxu0 0
    %986 = vmatpush1.bf16.msra.mxu0 %v938
    %987 = vmatprep.mubr.bf16.mxu0 %v756
    %988 = vmatmul.mubr.bf16.gmra.mrb[0].mxu0 %v755
    %v989 = vpop.f32.mrb[0].mxu0
    %v990 = vadd.f32 0.0, %v989
    %v991 = vpop.f32.mrb[0].mxu0
    %v992 = vpop.f32.mrb[0].mxu0
    %v993 = vadd.f32 0.0, %v992
    %v994 = vpop.f32.mrb[0].mxu0
    %995 = vmatprep.mubr.bf16.mxu0 %v758
    %996 = vmatmul.mubr.bf16.gmra.mrb[0].mxu0 %v757
    %v997 = vpop.f32.mrb[0].mxu0
    %v998 = vadd.f32 0.0, %v997
    %v999 = vpop.f32.mrb[0].mxu0
    %v1000 = vpop.f32.mrb[0].mxu0
    %v1001 = vadd.f32 0.0, %v1000
    %v1002 = vpop.f32.mrb[0].mxu0
    %1003 = vmatprep.mubr.bf16.mxu0 %v760
    %1004 = vmatmul.mubr.bf16.gmra.mrb[0].mxu0 %v759
    %v1005 = vpop.f32.mrb[0].mxu0
    %v1006 = vadd.f32 0.0, %v1005
    %v1007 = vpop.f32.mrb[0].mxu0
    %v1008 = vpop.f32.mrb[0].mxu0
    %v1009 = vadd.f32 0.0, %v1008
    %v1010 = vpop.f32.mrb[0].mxu0
    %1011 = vmatprep.mubr.bf16.mxu0 %v762
    %1012 = vmatmul.mubr.bf16.gmra.mrb[0].mxu0 %v761
    %v1013 = vpop.f32.mrb[0].mxu0
    %v1014 = vadd.f32 0.0, %v1013
    %v1015 = vpop.f32.mrb[0].mxu0
    %v1016 = vpop.f32.mrb[0].mxu0
    %v1017 = vadd.f32 0.0, %v1016
    %v1018 = vpop.f32.mrb[0].mxu0
    %1019 = vmatprep.mubr.bf16.mxu0 %v764
    %1020 = vmatmul.mubr.bf16.gmra.mrb[0].mxu0 %v763
    %v1021 = vpop.f32.mrb[0].mxu0
    %v1022 = vadd.f32 0.0, %v1021
    %v1023 = vpop.f32.mrb[0].mxu0
    %v1024 = vpop.f32.mrb[0].mxu0
    %v1025 = vadd.f32 0.0, %v1024
    %v1026 = vpop.f32.mrb[0].mxu0
    %1027 = vmatprep.mubr.bf16.mxu0 %v766
    %1028 = vmatmul.mubr.bf16.gmra.mrb[0].mxu0 %v765
    %v1029 = vpop.f32.mrb[0].mxu0
    %v1030 = vadd.f32 0.0, %v1029
    %v1031 = vpop.f32.mrb[0].mxu0
    %v1032 = vpop.f32.mrb[0].mxu0
    %v1033 = vadd.f32 0.0, %v1032
    %v1034 = vpop.f32.mrb[0].mxu0
    %1035 = vmatprep.mubr.bf16.mxu0 %v768
    %1036 = vmatmul.mubr.bf16.gmra.mrb[0].mxu0 %v767
    %v1037 = vpop.f32.mrb[0].mxu0
    %v1038 = vadd.f32 0.0, %v1037
    %v1039 = vpop.f32.mrb[0].mxu0
    %v1040 = vpop.f32.mrb[0].mxu0
    %v1041 = vadd.f32 0.0, %v1040
    %v1042 = vpop.f32.mrb[0].mxu0
    %1043 = vmatprep.mubr.bf16.mxu0 %v770
    %1044 = vmatmul.mubr.bf16.gmra.mrb[0].mxu0 %v769
    %v1045 = vpop.f32.mrb[0].mxu0
    %v1046 = vadd.f32 0.0, %v1045
    %v1047 = vpop.f32.mrb[0].mxu0
    %v1048 = vpop.f32.mrb[0].mxu0
    %v1049 = vadd.f32 0.0, %v1048
    %v1050 = vpop.f32.mrb[0].mxu0
    %1051 = vmatprep.mubr.bf16.mxu0 %v772
    %1052 = vmatmul.mubr.bf16.gmra.mrb[0].mxu0 %v771
    %v1053 = vpop.f32.mrb[0].mxu0
    %v1054 = vadd.f32 0.0, %v1053
    %v1055 = vpop.f32.mrb[0].mxu0
    %v1056 = vpop.f32.mrb[0].mxu0
    %v1057 = vadd.f32 0.0, %v1056
    %v1058 = vpop.f32.mrb[0].mxu0
    %1059 = vmatprep.mubr.bf16.mxu0 %v774
    %1060 = vmatmul.mubr.bf16.gmra.mrb[0].mxu0 %v773
    %v1061 = vpop.f32.mrb[0].mxu0
    %v1062 = vadd.f32 0.0, %v1061
    %v1063 = vpop.f32.mrb[0].mxu0
    %v1064 = vpop.f32.mrb[0].mxu0
    %v1065 = vadd.f32 0.0, %v1064
    %v1066 = vpop.f32.mrb[0].mxu0
    %1067 = vmatprep.mubr.bf16.mxu0 %v776
    %1068 = vmatmul.mubr.bf16.gmra.mrb[0].mxu0 %v775
    %v1069 = vpop.f32.mrb[0].mxu0
    %v1070 = vadd.f32 0.0, %v1069
    %v1071 = vpop.f32.mrb[0].mxu0
    %v1072 = vpop.f32.mrb[0].mxu0
    %v1073 = vadd.f32 0.0, %v1072
    %v1074 = vpop.f32.mrb[0].mxu0
    %1075 = vmatprep.mubr.bf16.mxu0 %v778
    %1076 = vmatmul.mubr.bf16.gmra.mrb[0].mxu0 %v777
    %v1077 = vpop.f32.mrb[0].mxu0
    %v1078 = vadd.f32 0.0, %v1077
    %v1079 = vpop.f32.mrb[0].mxu0
    %v1080 = vpop.f32.mrb[0].mxu0
    %v1081 = vadd.f32 0.0, %v1080
    %v1082 = vpop.f32.mrb[0].mxu0
    %1083 = vmatprep.mubr.bf16.mxu0 %v780
    %1084 = vmatmul.mubr.bf16.gmra.mrb[0].mxu0 %v779
    %v1085 = vpop.f32.mrb[0].mxu0
    %v1086 = vadd.f32 0.0, %v1085
    %v1087 = vpop.f32.mrb[0].mxu0
    %v1088 = vpop.f32.mrb[0].mxu0
    %v1089 = vadd.f32 0.0, %v1088
    %v1090 = vpop.f32.mrb[0].mxu0
    %1091 = vmatprep.mubr.bf16.mxu0 %v782
    %1092 = vmatmul.mubr.bf16.gmra.mrb[0].mxu0 %v781
    %v1093 = vpop.f32.mrb[0].mxu0
    %v1094 = vadd.f32 0.0, %v1093
    %v1095 = vpop.f32.mrb[0].mxu0
    %v1096 = vpop.f32.mrb[0].mxu0
    %v1097 = vadd.f32 0.0, %v1096
    %v1098 = vpop.f32.mrb[0].mxu0
    %1099 = vmatprep.mubr.bf16.mxu0 %v784
    %1100 = vmatmul.mubr.bf16.gmra.mrb[0].mxu0 %v783
    %v1101 = vpop.f32.mrb[0].mxu0
    %v1102 = vadd.f32 0.0, %v1101
    %v1103 = vpop.f32.mrb[0].mxu0
    %v1104 = vpop.f32.mrb[0].mxu0
    %v1105 = vadd.f32 0.0, %v1104
    %v1106 = vpop.f32.mrb[0].mxu0
    %1107 = vmatprep.mubr.bf16.mxu0 %v786
    %1108 = vmatmul.mubr.bf16.gmra.mrb[0].mxu0 %v785
    %v1109 = vpop.f32.mrb[0].mxu0
    %v1110 = vadd.f32 0.0, %v1109
    %v1111 = vpop.f32.mrb[0].mxu0
    %v1112 = vpop.f32.mrb[0].mxu0
    %v1113 = vadd.f32 0.0, %v1112
    %v1114 = vpop.f32.mrb[0].mxu0
    %1115 = vmatprep.mubr.bf16.mxu0 %v788
    %1116 = vmatmul.mubr.bf16.gmra.mrb[0].mxu0 %v787
    %v1117 = vpop.f32.mrb[0].mxu0
    %v1118 = vadd.f32 0.0, %v1117
    %v1119 = vpop.f32.mrb[0].mxu0
    %v1120 = vpop.f32.mrb[0].mxu0
    %v1121 = vadd.f32 0.0, %v1120
    %v1122 = vpop.f32.mrb[0].mxu0
    %1123 = vmatprep.mubr.bf16.mxu0 %v790
    %1124 = vmatmul.mubr.bf16.gmra.mrb[0].mxu0 %v789
    %v1125 = vpop.f32.mrb[0].mxu0
    %v1126 = vadd.f32 0.0, %v1125
    %v1127 = vpop.f32.mrb[0].mxu0
    %v1128 = vpop.f32.mrb[0].mxu0
    %v1129 = vadd.f32 0.0, %v1128
    %v1130 = vpop.f32.mrb[0].mxu0
    %1131 = vmatprep.mubr.bf16.mxu0 %v792
    %1132 = vmatmul.mubr.bf16.gmra.mrb[0].mxu0 %v791
    %v1133 = vpop.f32.mrb[0].mxu0
    %v1134 = vadd.f32 0.0, %v1133
    %v1135 = vpop.f32.mrb[0].mxu0
    %v1136 = vpop.f32.mrb[0].mxu0
    %v1137 = vadd.f32 0.0, %v1136
    %v1138 = vpop.f32.mrb[0].mxu0
    %1139 = vmatprep.mubr.bf16.mxu0 %v794
    %1140 = vmatmul.mubr.bf16.gmra.mrb[0].mxu0 %v793
    %v1141 = vpop.f32.mrb[0].mxu0
    %v1142 = vadd.f32 0.0, %v1141
    %v1143 = vpop.f32.mrb[0].mxu0
    %v1144 = vpop.f32.mrb[0].mxu0
    %v1145 = vadd.f32 0.0, %v1144
    %v1146 = vpop.f32.mrb[0].mxu0
    %1147 = vmatprep.mubr.bf16.mxu0 %v796
    %1148 = vmatmul.mubr.bf16.gmra.mrb[0].mxu0 %v795
    %v1149 = vpop.f32.mrb[0].mxu0
    %v1150 = vadd.f32 0.0, %v1149
    %v1151 = vpop.f32.mrb[0].mxu0
    %v1152 = vpop.f32.mrb[0].mxu0
    %v1153 = vadd.f32 0.0, %v1152
    %v1154 = vpop.f32.mrb[0].mxu0
    %1155 = vmatprep.mubr.bf16.mxu0 %v798
    %1156 = vmatmul.mubr.bf16.gmra.mrb[0].mxu0 %v797
    %v1157 = vpop.f32.mrb[0].mxu0
    %v1158 = vadd.f32 0.0, %v1157
    %v1159 = vpop.f32.mrb[0].mxu0
    %v1160 = vpop.f32.mrb[0].mxu0
    %v1161 = vadd.f32 0.0, %v1160
    %v1162 = vpop.f32.mrb[0].mxu0
    %1163 = vmatprep.mubr.bf16.mxu0 %v800
    %1164 = vmatmul.mubr.bf16.gmra.mrb[0].mxu0 %v799
    %v1165 = vpop.f32.mrb[0].mxu0
    %v1166 = vadd.f32 0.0, %v1165
    %v1167 = vpop.f32.mrb[0].mxu0
    %v1168 = vpop.f32.mrb[0].mxu0
    %v1169 = vadd.f32 0.0, %v1168
    %v1170 = vpop.f32.mrb[0].mxu0
    %1171 = vmatprep.mubr.bf16.mxu0 %v802
    %1172 = vmatmul.mubr.bf16.gmra.mrb[0].mxu0 %v801
    %v1173 = vpop.f32.mrb[0].mxu0
    %v1174 = vadd.f32 0.0, %v1173
    %v1175 = vpop.f32.mrb[0].mxu0
    %v1176 = vpop.f32.mrb[0].mxu0
    %v1177 = vadd.f32 0.0, %v1176
    %v1178 = vpop.f32.mrb[0].mxu0
    %1179 = vmatprep.mubr.bf16.mxu0 %v804
    %1180 = vmatmul.mubr.bf16.gmra.mrb[0].mxu0 %v803
    %v1181 = vpop.f32.mrb[0].mxu0
    %v1182 = vadd.f32 0.0, %v1181
    %v1183 = vpop.f32.mrb[0].mxu0
    %v1184 = vpop.f32.mrb[0].mxu0
    %v1185 = vadd.f32 0.0, %v1184
    %v1186 = vpop.f32.mrb[0].mxu0
    %1187 = vmatprep.mubr.bf16.mxu0 %v806
    %1188 = vmatmul.mubr.bf16.gmra.mrb[0].mxu0 %v805
    %v1189 = vpop.f32.mrb[0].mxu0
    %v1190 = vadd.f32 0.0, %v1189
    %v1191 = vpop.f32.mrb[0].mxu0
    %v1192 = vpop.f32.mrb[0].mxu0
    %v1193 = vadd.f32 0.0, %v1192
    %v1194 = vpop.f32.mrb[0].mxu0
    %1195 = vmatprep.mubr.bf16.mxu0 %v808
    %1196 = vmatmul.mubr.bf16.gmra.mrb[0].mxu0 %v807
    %v1197 = vpop.f32.mrb[0].mxu0
    %v1198 = vadd.f32 0.0, %v1197
    %v1199 = vpop.f32.mrb[0].mxu0
    %v1200 = vpop.f32.mrb[0].mxu0
    %v1201 = vadd.f32 0.0, %v1200
    %v1202 = vpop.f32.mrb[0].mxu0
    %1203 = vmatprep.mubr.bf16.mxu0 %v810
    %1204 = vmatmul.mubr.bf16.gmra.mrb[0].mxu0 %v809
    %v1205 = vpop.f32.mrb[0].mxu0
    %v1206 = vadd.f32 0.0, %v1205
    %v1207 = vpop.f32.mrb[0].mxu0
    %v1208 = vpop.f32.mrb[0].mxu0
    %v1209 = vadd.f32 0.0, %v1208
    %v1210 = vpop.f32.mrb[0].mxu0
    %1211 = vmatprep.mubr.bf16.mxu0 %v812
    %1212 = vmatmul.mubr.bf16.gmra.mrb[0].mxu0 %v811
    %v1213 = vpop.f32.mrb[0].mxu0
    %v1214 = vadd.f32 0.0, %v1213
    %v1215 = vpop.f32.mrb[0].mxu0
    %v1216 = vpop.f32.mrb[0].mxu0
    %v1217 = vadd.f32 0.0, %v1216
    %v1218 = vpop.f32.mrb[0].mxu0
    %1219 = vmatprep.mubr.bf16.mxu0 %v814
    %1220 = vmatmul.mubr.bf16.gmra.mrb[0].mxu0 %v813
    %v1221 = vpop.f32.mrb[0].mxu0
    %v1222 = vadd.f32 0.0, %v1221
    %v1223 = vpop.f32.mrb[0].mxu0
    %v1224 = vpop.f32.mrb[0].mxu0
    %v1225 = vadd.f32 0.0, %v1224
    %v1226 = vpop.f32.mrb[0].mxu0
    %1227 = vmatprep.mubr.bf16.mxu0 %v816
    %1228 = vmatmul.mubr.bf16.gmra.mrb[0].mxu0 %v815
    %v1229 = vpop.f32.mrb[0].mxu0
    %v1230 = vadd.f32 0.0, %v1229
    %v1231 = vpop.f32.mrb[0].mxu0
    %v1232 = vpop.f32.mrb[0].mxu0
    %v1233 = vadd.f32 0.0, %v1232
    %v1234 = vpop.f32.mrb[0].mxu0
    %1235 = vmatprep.mubr.bf16.mxu0 %v818
    %1236 = vmatmul.mubr.bf16.gmra.mrb[0].mxu0 %v817
    %v1237 = vpop.f32.mrb[0].mxu0
    %v1238 = vadd.f32 0.0, %v1237
    %v1239 = vpop.f32.mrb[0].mxu0
    %v1240 = vpop.f32.mrb[0].mxu0
    %v1241 = vadd.f32 0.0, %v1240
    %v1242 = vpop.f32.mrb[0].mxu0
    %1243 = vmatprep.mubr.bf16.mxu0 %v820
    %1244 = vmatmul.mubr.bf16.gmra.mrb[0].mxu0 %v819
    %v1245 = vpop.f32.mrb[0].mxu0
    %v1246 = vadd.f32 0.0, %v1245
    %v1247 = vpop.f32.mrb[0].mxu0
    %v1248 = vpop.f32.mrb[0].mxu0
    %v1249 = vadd.f32 0.0, %v1248
    %v1250 = vpop.f32.mrb[0].mxu0
    %1251 = vmatprep.mubr.bf16.mxu0 %v822
    %1252 = vmatmul.mubr.bf16.gmra.mrb[0].mxu0 %v821
    %v1253 = vpop.f32.mrb[0].mxu0
    %v1254 = vadd.f32 0.0, %v1253
    %v1255 = vpop.f32.mrb[0].mxu0
    %v1256 = vpop.f32.mrb[0].mxu0
    %v1257 = vadd.f32 0.0, %v1256
    %v1258 = vpop.f32.mrb[0].mxu0
    %1259 = vmatprep.mubr.bf16.mxu0 %v824
    %1260 = vmatmul.mubr.bf16.gmra.mrb[0].mxu0 %v823
    %v1261 = vpop.f32.mrb[0].mxu0
    %v1262 = vadd.f32 0.0, %v1261
    %v1263 = vpop.f32.mrb[0].mxu0
    %v1264 = vpop.f32.mrb[0].mxu0
    %v1265 = vadd.f32 0.0, %v1264
    %v1266 = vpop.f32.mrb[0].mxu0
    %1267 = vmatprep.mubr.bf16.mxu0 %v826
    %1268 = vmatmul.mubr.bf16.gmra.mrb[0].mxu0 %v825
    %v1269 = vpop.f32.mrb[0].mxu0
    %v1270 = vadd.f32 0.0, %v1269
    %v1271 = vpop.f32.mrb[0].mxu0
    %v1272 = vpop.f32.mrb[0].mxu0
    %v1273 = vadd.f32 0.0, %v1272
    %v1274 = vpop.f32.mrb[0].mxu0
    %1275 = vdwg.mxu0
    %v1276 = vlaneseq
    %v1277 = vshrl.u32 %v1276, 7
    %v1278 = vadd.s32 %v1277, 8
    %v1279 = vadd.s32 %v1277, 16
    %v1280 = vadd.s32 %v1277, 24
    %v1281 = vadd.s32 %v1277, 32
    %v1282 = vadd.s32 %v1277, 40
    %v1283 = vadd.s32 %v1277, 48
    %v1284 = vadd.s32 %v1277, 56
    %v1285 = vadd.s32 %v1277, 64
    %v1286 = vadd.s32 %v1277, 72
    %v1287 = vadd.s32 %v1277, 80
    %v1288 = vadd.s32 %v1277, 88
    %v1289 = vadd.s32 %v1277, 96
    %v1290 = vadd.s32 %v1277, 104
    %v1291 = vadd.s32 %v1277, 112
    %v1292 = vadd.s32 %v1277, 120
    %v1293 = vadd.s32 %v1277, 128
    %v1294 = vadd.s32 %v1277, 136
    %v1295 = vadd.s32 %v1277, 144
    %v1296 = vadd.s32 %v1277, 152
    %v1297 = vadd.s32 %v1277, 160
    %v1298 = vadd.s32 %v1277, 168
    %v1299 = vadd.s32 %v1277, 176
    %v1300 = vadd.s32 %v1277, 184
    %v1301 = vadd.s32 %v1277, 192
    %v1302 = vadd.s32 %v1277, 200
    %v1303 = vadd.s32 %v1277, 208
    %v1304 = vadd.s32 %v1277, 216
    %v1305 = vadd.s32 %v1277, 224
    %v1306 = vadd.s32 %v1277, 232
    %v1307 = vadd.s32 %v1277, 240
    %v1308 = vadd.s32 %v1277, 248
    %v1309 = vadd.s32 %v1277, 256
    %v1310 = vadd.s32 %v1277, 264
    %v1311 = vadd.s32 %v1277, 272
    %v1312 = vadd.s32 %v1277, 280
    %v1313 = vadd.s32 %v1277, 288
    %v1314 = vadd.s32 %v1277, 296
    %v1315 = vadd.s32 %v1277, 304
    %v1316 = vadd.s32 %v1277, 312
    %v1317 = vadd.s32 %v1277, 320
    %v1318 = vadd.s32 %v1277, 328
    %v1319 = vadd.s32 %v1277, 336
    %v1320 = vadd.s32 %v1277, 344
    %v1321 = vadd.s32 %v1277, 352
    %v1322 = vadd.s32 %v1277, 360
    %v1323 = vadd.s32 %v1277, 368
    %v1324 = vadd.s32 %v1277, 376
    %v1325 = vadd.s32 %v1277, 384
    %v1326 = vadd.s32 %v1277, 392
    %v1327 = vadd.s32 %v1277, 400
    %v1328 = vadd.s32 %v1277, 408
    %v1329 = vadd.s32 %v1277, 416
    %v1330 = vadd.s32 %v1277, 424
    %v1331 = vadd.s32 %v1277, 432
    %v1332 = vadd.s32 %v1277, 440
    %v1333 = vadd.s32 %v1277, 448
    %v1334 = vadd.s32 %v1277, 456
    %v1335 = vadd.s32 %v1277, 464
    %v1336 = vadd.s32 %v1277, 472
    %v1337 = vadd.s32 %v1277, 480
    %v1338 = vadd.s32 %v1277, 488
    %v1339 = vadd.s32 %v1277, 496
    %v1340 = vadd.s32 %v1277, 504
    %v1341 = vadd.s32 %v1277, 512
    %v1342 = vadd.s32 %v1277, 520
    %v1343 = vadd.s32 %v1277, 528
    %v1344 = vadd.s32 %v1277, 536
    %v1345 = vadd.s32 %v1277, 544
    %v1346 = vadd.s32 %v1277, 552
    %v1347 = vadd.s32 %v1277, 560
    %v1348 = vadd.s32 %v1277, 568
    %v1349 = vand.u32 %v1277, 7
    %v1350 = vand.u32 %v1278, 7
    %v1351 = vand.u32 %v1279, 7
    %v1352 = vand.u32 %v1280, 7
    %v1353 = vand.u32 %v1281, 7
    %v1354 = vand.u32 %v1282, 7
    %v1355 = vand.u32 %v1283, 7
    %v1356 = vand.u32 %v1284, 7
    %v1357 = vand.u32 %v1285, 7
    %v1358 = vand.u32 %v1286, 7
    %v1359 = vand.u32 %v1287, 7
    %v1360 = vand.u32 %v1288, 7
    %v1361 = vand.u32 %v1289, 7
    %v1362 = vand.u32 %v1290, 7
    %v1363 = vand.u32 %v1291, 7
    %v1364 = vand.u32 %v1292, 7
    %v1365 = vand.u32 %v1293, 7
    %v1366 = vand.u32 %v1294, 7
    %v1367 = vand.u32 %v1295, 7
    %v1368 = vand.u32 %v1296, 7
    %v1369 = vand.u32 %v1297, 7
    %v1370 = vand.u32 %v1298, 7
    %v1371 = vand.u32 %v1299, 7
    %v1372 = vand.u32 %v1300, 7
    %v1373 = vand.u32 %v1301, 7
    %v1374 = vand.u32 %v1302, 7
    %v1375 = vand.u32 %v1303, 7
    %v1376 = vand.u32 %v1304, 7
    %v1377 = vand.u32 %v1305, 7
    %v1378 = vand.u32 %v1306, 7
    %v1379 = vand.u32 %v1307, 7
    %v1380 = vand.u32 %v1308, 7
    %v1381 = vand.u32 %v1309, 7
    %v1382 = vand.u32 %v1310, 7
    %v1383 = vand.u32 %v1311, 7
    %v1384 = vand.u32 %v1312, 7
    %v1385 = vand.u32 %v1313, 7
    %v1386 = vand.u32 %v1314, 7
    %v1387 = vand.u32 %v1315, 7
    %v1388 = vand.u32 %v1316, 7
    %v1389 = vand.u32 %v1317, 7
    %v1390 = vand.u32 %v1318, 7
    %v1391 = vand.u32 %v1319, 7
    %v1392 = vand.u32 %v1320, 7
    %v1393 = vand.u32 %v1321, 7
    %v1394 = vand.u32 %v1322, 7
    %v1395 = vand.u32 %v1323, 7
    %v1396 = vand.u32 %v1324, 7
    %v1397 = vand.u32 %v1325, 7
    %v1398 = vand.u32 %v1326, 7
    %v1399 = vand.u32 %v1327, 7
    %v1400 = vand.u32 %v1328, 7
    %v1401 = vand.u32 %v1329, 7
    %v1402 = vand.u32 %v1330, 7
    %v1403 = vand.u32 %v1331, 7
    %v1404 = vand.u32 %v1332, 7
    %v1405 = vand.u32 %v1333, 7
    %v1406 = vand.u32 %v1334, 7
    %v1407 = vand.u32 %v1335, 7
    %v1408 = vand.u32 %v1336, 7
    %v1409 = vand.u32 %v1337, 7
    %v1410 = vand.u32 %v1338, 7
    %v1411 = vand.u32 %v1339, 7
    %v1412 = vand.u32 %v1340, 7
    %v1413 = vand.u32 %v1341, 7
    %v1414 = vand.u32 %v1342, 7
    %v1415 = vand.u32 %v1343, 7
    %v1416 = vand.u32 %v1344, 7
    %v1417 = vand.u32 %v1345, 7
    %v1418 = vand.u32 %v1346, 7
    %v1419 = vand.u32 %v1347, 7
    %v1420 = vand.u32 %v1348, 7
    %v1421 = vcvt.s32.f32 %v105
    %v1422 = vadd.f32 %v1421, -15.0
    %v1423 = vcvt.s32.f32 %v1349
    %v1424 = vcvt.s32.f32 %v1350
    %v1425 = vcvt.s32.f32 %v1351
    %v1426 = vcvt.s32.f32 %v1352
    %v1427 = vcvt.s32.f32 %v1353
    %v1428 = vcvt.s32.f32 %v1354
    %v1429 = vcvt.s32.f32 %v1355
    %v1430 = vcvt.s32.f32 %v1356
    %v1431 = vcvt.s32.f32 %v1357
    %v1432 = vcvt.s32.f32 %v1358
    %v1433 = vcvt.s32.f32 %v1359
    %v1434 = vcvt.s32.f32 %v1360
    %v1435 = vcvt.s32.f32 %v1361
    %v1436 = vcvt.s32.f32 %v1362
    %v1437 = vcvt.s32.f32 %v1363
    %v1438 = vcvt.s32.f32 %v1364
    %v1439 = vcvt.s32.f32 %v1365
    %v1440 = vcvt.s32.f32 %v1366
    %v1441 = vcvt.s32.f32 %v1367
    %v1442 = vcvt.s32.f32 %v1368
    %v1443 = vcvt.s32.f32 %v1369
    %v1444 = vcvt.s32.f32 %v1370
    %v1445 = vcvt.s32.f32 %v1371
    %v1446 = vcvt.s32.f32 %v1372
    %v1447 = vcvt.s32.f32 %v1373
    %v1448 = vcvt.s32.f32 %v1374
    %v1449 = vcvt.s32.f32 %v1375
    %v1450 = vcvt.s32.f32 %v1376
    %v1451 = vcvt.s32.f32 %v1377
    %v1452 = vcvt.s32.f32 %v1378
    %v1453 = vcvt.s32.f32 %v1379
    %v1454 = vcvt.s32.f32 %v1380
    %v1455 = vcvt.s32.f32 %v1381
    %v1456 = vcvt.s32.f32 %v1382
    %v1457 = vcvt.s32.f32 %v1383
    %v1458 = vcvt.s32.f32 %v1384
    %v1459 = vcvt.s32.f32 %v1385
    %v1460 = vcvt.s32.f32 %v1386
    %v1461 = vcvt.s32.f32 %v1387
    %v1462 = vcvt.s32.f32 %v1388
    %v1463 = vcvt.s32.f32 %v1389
    %v1464 = vcvt.s32.f32 %v1390
    %v1465 = vcvt.s32.f32 %v1391
    %v1466 = vcvt.s32.f32 %v1392
    %v1467 = vcvt.s32.f32 %v1393
    %v1468 = vcvt.s32.f32 %v1394
    %v1469 = vcvt.s32.f32 %v1395
    %v1470 = vcvt.s32.f32 %v1396
    %v1471 = vcvt.s32.f32 %v1397
    %v1472 = vcvt.s32.f32 %v1398
    %v1473 = vcvt.s32.f32 %v1399
    %v1474 = vcvt.s32.f32 %v1400
    %v1475 = vcvt.s32.f32 %v1401
    %v1476 = vcvt.s32.f32 %v1402
    %v1477 = vcvt.s32.f32 %v1403
    %v1478 = vcvt.s32.f32 %v1404
    %v1479 = vcvt.s32.f32 %v1405
    %v1480 = vcvt.s32.f32 %v1406
    %v1481 = vcvt.s32.f32 %v1407
    %v1482 = vcvt.s32.f32 %v1408
    %v1483 = vcvt.s32.f32 %v1409
    %v1484 = vcvt.s32.f32 %v1410
    %v1485 = vcvt.s32.f32 %v1411
    %v1486 = vcvt.s32.f32 %v1412
    %v1487 = vcvt.s32.f32 %v1413
    %v1488 = vcvt.s32.f32 %v1414
    %v1489 = vcvt.s32.f32 %v1415
    %v1490 = vcvt.s32.f32 %v1416
    %v1491 = vcvt.s32.f32 %v1417
    %v1492 = vcvt.s32.f32 %v1418
    %v1493 = vcvt.s32.f32 %v1419
    %v1494 = vcvt.s32.f32 %v1420
    %v1495 = vadd.f32 %v1423, -3.0
    %v1496 = vadd.f32 %v1424, -3.0
    %v1497 = vadd.f32 %v1425, -3.0
    %v1498 = vadd.f32 %v1426, -3.0
    %v1499 = vadd.f32 %v1427, -3.0
    %v1500 = vadd.f32 %v1428, -3.0
    %v1501 = vadd.f32 %v1429, -3.0
    %v1502 = vadd.f32 %v1430, -3.0
    %v1503 = vadd.f32 %v1431, -3.0
    %v1504 = vadd.f32 %v1432, -3.0
    %v1505 = vadd.f32 %v1433, -3.0
    %v1506 = vadd.f32 %v1434, -3.0
    %v1507 = vadd.f32 %v1435, -3.0
    %v1508 = vadd.f32 %v1436, -3.0
    %v1509 = vadd.f32 %v1437, -3.0
    %v1510 = vadd.f32 %v1438, -3.0
    %v1511 = vadd.f32 %v1439, -3.0
    %v1512 = vadd.f32 %v1440, -3.0
    %v1513 = vadd.f32 %v1441, -3.0
    %v1514 = vadd.f32 %v1442, -3.0
    %v1515 = vadd.f32 %v1443, -3.0
    %v1516 = vadd.f32 %v1444, -3.0
    %v1517 = vadd.f32 %v1445, -3.0
    %v1518 = vadd.f32 %v1446, -3.0
    %v1519 = vadd.f32 %v1447, -3.0
    %v1520 = vadd.f32 %v1448, -3.0
    %v1521 = vadd.f32 %v1449, -3.0
    %v1522 = vadd.f32 %v1450, -3.0
    %v1523 = vadd.f32 %v1451, -3.0
    %v1524 = vadd.f32 %v1452, -3.0
    %v1525 = vadd.f32 %v1453, -3.0
    %v1526 = vadd.f32 %v1454, -3.0
    %v1527 = vadd.f32 %v1455, -3.0
    %v1528 = vadd.f32 %v1456, -3.0
    %v1529 = vadd.f32 %v1457, -3.0
    %v1530 = vadd.f32 %v1458, -3.0
    %v1531 = vadd.f32 %v1459, -3.0
    %v1532 = vadd.f32 %v1460, -3.0
    %v1533 = vadd.f32 %v1461, -3.0
    %v1534 = vadd.f32 %v1462, -3.0
    %v1535 = vadd.f32 %v1463, -3.0
    %v1536 = vadd.f32 %v1464, -3.0
    %v1537 = vadd.f32 %v1465, -3.0
    %v1538 = vadd.f32 %v1466, -3.0
    %v1539 = vadd.f32 %v1467, -3.0
    %v1540 = vadd.f32 %v1468, -3.0
    %v1541 = vadd.f32 %v1469, -3.0
    %v1542 = vadd.f32 %v1470, -3.0
    %v1543 = vadd.f32 %v1471, -3.0
    %v1544 = vadd.f32 %v1472, -3.0
    %v1545 = vadd.f32 %v1473, -3.0
    %v1546 = vadd.f32 %v1474, -3.0
    %v1547 = vadd.f32 %v1475, -3.0
    %v1548 = vadd.f32 %v1476, -3.0
    %v1549 = vadd.f32 %v1477, -3.0
    %v1550 = vadd.f32 %v1478, -3.0
    %v1551 = vadd.f32 %v1479, -3.0
    %v1552 = vadd.f32 %v1480, -3.0
    %v1553 = vadd.f32 %v1481, -3.0
    %v1554 = vadd.f32 %v1482, -3.0
    %v1555 = vadd.f32 %v1483, -3.0
    %v1556 = vadd.f32 %v1484, -3.0
    %v1557 = vadd.f32 %v1485, -3.0
    %v1558 = vadd.f32 %v1486, -3.0
    %v1559 = vadd.f32 %v1487, -3.0
    %v1560 = vadd.f32 %v1488, -3.0
    %v1561 = vadd.f32 %v1489, -3.0
    %v1562 = vadd.f32 %v1490, -3.0
    %v1563 = vadd.f32 %v1491, -3.0
    %v1564 = vadd.f32 %v1492, -3.0
    %v1565 = vadd.f32 %v1493, -3.0
    %v1566 = vadd.f32 %v1494, -3.0
    %v1567 = vmul.f32 %v1422, %v1495
    %v1568 = vmul.f32 %v1422, %v1496
    %v1569 = vmul.f32 %v1422, %v1497
    %v1570 = vmul.f32 %v1422, %v1498
    %v1571 = vmul.f32 %v1422, %v1499
    %v1572 = vmul.f32 %v1422, %v1500
    %v1573 = vmul.f32 %v1422, %v1501
    %v1574 = vmul.f32 %v1422, %v1502
    %v1575 = vmul.f32 %v1422, %v1503
    %v1576 = vmul.f32 %v1422, %v1504
    %v1577 = vmul.f32 %v1422, %v1505
    %v1578 = vmul.f32 %v1422, %v1506
    %v1579 = vmul.f32 %v1422, %v1507
    %v1580 = vmul.f32 %v1422, %v1508
    %v1581 = vmul.f32 %v1422, %v1509
    %v1582 = vmul.f32 %v1422, %v1510
    %v1583 = vmul.f32 %v1422, %v1511
    %v1584 = vmul.f32 %v1422, %v1512
    %v1585 = vmul.f32 %v1422, %v1513
    %v1586 = vmul.f32 %v1422, %v1514
    %v1587 = vmul.f32 %v1422, %v1515
    %v1588 = vmul.f32 %v1422, %v1516
    %v1589 = vmul.f32 %v1422, %v1517
    %v1590 = vmul.f32 %v1422, %v1518
    %v1591 = vmul.f32 %v1422, %v1519
    %v1592 = vmul.f32 %v1422, %v1520
    %v1593 = vmul.f32 %v1422, %v1521
    %v1594 = vmul.f32 %v1422, %v1522
    %v1595 = vmul.f32 %v1422, %v1523
    %v1596 = vmul.f32 %v1422, %v1524
    %v1597 = vmul.f32 %v1422, %v1525
    %v1598 = vmul.f32 %v1422, %v1526
    %v1599 = vmul.f32 %v1422, %v1527
    %v1600 = vmul.f32 %v1422, %v1528
    %v1601 = vmul.f32 %v1422, %v1529
    %v1602 = vmul.f32 %v1422, %v1530
    %v1603 = vmul.f32 %v1422, %v1531
    %v1604 = vmul.f32 %v1422, %v1532
    %v1605 = vmul.f32 %v1422, %v1533
    %v1606 = vmul.f32 %v1422, %v1534
    %v1607 = vmul.f32 %v1422, %v1535
    %v1608 = vmul.f32 %v1422, %v1536
    %v1609 = vmul.f32 %v1422, %v1537
    %v1610 = vmul.f32 %v1422, %v1538
    %v1611 = vmul.f32 %v1422, %v1539
    %v1612 = vmul.f32 %v1422, %v1540
    %v1613 = vmul.f32 %v1422, %v1541
    %v1614 = vmul.f32 %v1422, %v1542
    %v1615 = vmul.f32 %v1422, %v1543
    %v1616 = vmul.f32 %v1422, %v1544
    %v1617 = vmul.f32 %v1422, %v1545
    %v1618 = vmul.f32 %v1422, %v1546
    %v1619 = vmul.f32 %v1422, %v1547
    %v1620 = vmul.f32 %v1422, %v1548
    %v1621 = vmul.f32 %v1422, %v1549
    %v1622 = vmul.f32 %v1422, %v1550
    %v1623 = vmul.f32 %v1422, %v1551
    %v1624 = vmul.f32 %v1422, %v1552
    %v1625 = vmul.f32 %v1422, %v1553
    %v1626 = vmul.f32 %v1422, %v1554
    %v1627 = vmul.f32 %v1422, %v1555
    %v1628 = vmul.f32 %v1422, %v1556
    %v1629 = vmul.f32 %v1422, %v1557
    %v1630 = vmul.f32 %v1422, %v1558
    %v1631 = vmul.f32 %v1422, %v1559
    %v1632 = vmul.f32 %v1422, %v1560
    %v1633 = vmul.f32 %v1422, %v1561
    %v1634 = vmul.f32 %v1422, %v1562
    %v1635 = vmul.f32 %v1422, %v1563
    %v1636 = vmul.f32 %v1422, %v1564
    %v1637 = vmul.f32 %v1422, %v1565
    %v1638 = vmul.f32 %v1422, %v1566
    %v1639 = vmul.f32 %v1567, 0.015625
    %v1640 = vmul.f32 %v1568, 0.015625
    %v1641 = vmul.f32 %v1569, 0.015625
    %v1642 = vmul.f32 %v1570, 0.015625
    %v1643 = vmul.f32 %v1571, 0.015625
    %v1644 = vmul.f32 %v1572, 0.015625
    %v1645 = vmul.f32 %v1573, 0.015625
    %v1646 = vmul.f32 %v1574, 0.015625
    %v1647 = vmul.f32 %v1575, 0.015625
    %v1648 = vmul.f32 %v1576, 0.015625
    %v1649 = vmul.f32 %v1577, 0.015625
    %v1650 = vmul.f32 %v1578, 0.015625
    %v1651 = vmul.f32 %v1579, 0.015625
    %v1652 = vmul.f32 %v1580, 0.015625
    %v1653 = vmul.f32 %v1581, 0.015625
    %v1654 = vmul.f32 %v1582, 0.015625
    %v1655 = vmul.f32 %v1583, 0.015625
    %v1656 = vmul.f32 %v1584, 0.015625
    %v1657 = vmul.f32 %v1585, 0.015625
    %v1658 = vmul.f32 %v1586, 0.015625
    %v1659 = vmul.f32 %v1587, 0.015625
    %v1660 = vmul.f32 %v1588, 0.015625
    %v1661 = vmul.f32 %v1589, 0.015625
    %v1662 = vmul.f32 %v1590, 0.015625
    %v1663 = vmul.f32 %v1591, 0.015625
    %v1664 = vmul.f32 %v1592, 0.015625
    %v1665 = vmul.f32 %v1593, 0.015625
    %v1666 = vmul.f32 %v1594, 0.015625
    %v1667 = vmul.f32 %v1595, 0.015625
    %v1668 = vmul.f32 %v1596, 0.015625
    %v1669 = vmul.f32 %v1597, 0.015625
    %v1670 = vmul.f32 %v1598, 0.015625
    %v1671 = vmul.f32 %v1599, 0.015625
    %v1672 = vmul.f32 %v1600, 0.015625
    %v1673 = vmul.f32 %v1601, 0.015625
    %v1674 = vmul.f32 %v1602, 0.015625
    %v1675 = vmul.f32 %v1603, 0.015625
    %v1676 = vmul.f32 %v1604, 0.015625
    %v1677 = vmul.f32 %v1605, 0.015625
    %v1678 = vmul.f32 %v1606, 0.015625
    %v1679 = vmul.f32 %v1607, 0.015625
    %v1680 = vmul.f32 %v1608, 0.015625
    %v1681 = vmul.f32 %v1609, 0.015625
    %v1682 = vmul.f32 %v1610, 0.015625
    %v1683 = vmul.f32 %v1611, 0.015625
    %v1684 = vmul.f32 %v1612, 0.015625
    %v1685 = vmul.f32 %v1613, 0.015625
    %v1686 = vmul.f32 %v1614, 0.015625
    %v1687 = vmul.f32 %v1615, 0.015625
    %v1688 = vmul.f32 %v1616, 0.015625
    %v1689 = vmul.f32 %v1617, 0.015625
    %v1690 = vmul.f32 %v1618, 0.015625
    %v1691 = vmul.f32 %v1619, 0.015625
    %v1692 = vmul.f32 %v1620, 0.015625
    %v1693 = vmul.f32 %v1621, 0.015625
    %v1694 = vmul.f32 %v1622, 0.015625
    %v1695 = vmul.f32 %v1623, 0.015625
    %v1696 = vmul.f32 %v1624, 0.015625
    %v1697 = vmul.f32 %v1625, 0.015625
    %v1698 = vmul.f32 %v1626, 0.015625
    %v1699 = vmul.f32 %v1627, 0.015625
    %v1700 = vmul.f32 %v1628, 0.015625
    %v1701 = vmul.f32 %v1629, 0.015625
    %v1702 = vmul.f32 %v1630, 0.015625
    %v1703 = vmul.f32 %v1631, 0.015625
    %v1704 = vmul.f32 %v1632, 0.015625
    %v1705 = vmul.f32 %v1633, 0.015625
    %v1706 = vmul.f32 %v1634, 0.015625
    %v1707 = vmul.f32 %v1635, 0.015625
    %v1708 = vmul.f32 %v1636, 0.015625
    %v1709 = vmul.f32 %v1637, 0.015625
    %v1710 = vmul.f32 %v1638, 0.015625
    %v1711 = vadd.f32 %v1639, 1.0
    %v1712 = vadd.f32 %v1640, 1.0
    %v1713 = vadd.f32 %v1641, 1.0
    %v1714 = vadd.f32 %v1642, 1.0
    %v1715 = vadd.f32 %v1643, 1.0
    %v1716 = vadd.f32 %v1644, 1.0
    %v1717 = vadd.f32 %v1645, 1.0
    %v1718 = vadd.f32 %v1646, 1.0
    %v1719 = vadd.f32 %v1647, 1.0
    %v1720 = vadd.f32 %v1648, 1.0
    %v1721 = vadd.f32 %v1649, 1.0
    %v1722 = vadd.f32 %v1650, 1.0
    %v1723 = vadd.f32 %v1651, 1.0
    %v1724 = vadd.f32 %v1652, 1.0
    %v1725 = vadd.f32 %v1653, 1.0
    %v1726 = vadd.f32 %v1654, 1.0
    %v1727 = vadd.f32 %v1655, 1.0
    %v1728 = vadd.f32 %v1656, 1.0
    %v1729 = vadd.f32 %v1657, 1.0
    %v1730 = vadd.f32 %v1658, 1.0
    %v1731 = vadd.f32 %v1659, 1.0
    %v1732 = vadd.f32 %v1660, 1.0
    %v1733 = vadd.f32 %v1661, 1.0
    %v1734 = vadd.f32 %v1662, 1.0
    %v1735 = vadd.f32 %v1663, 1.0
    %v1736 = vadd.f32 %v1664, 1.0
    %v1737 = vadd.f32 %v1665, 1.0
    %v1738 = vadd.f32 %v1666, 1.0
    %v1739 = vadd.f32 %v1667, 1.0
    %v1740 = vadd.f32 %v1668, 1.0
    %v1741 = vadd.f32 %v1669, 1.0
    %v1742 = vadd.f32 %v1670, 1.0
    %v1743 = vadd.f32 %v1671, 1.0
    %v1744 = vadd.f32 %v1672, 1.0
    %v1745 = vadd.f32 %v1673, 1.0
    %v1746 = vadd.f32 %v1674, 1.0
    %v1747 = vadd.f32 %v1675, 1.0
    %v1748 = vadd.f32 %v1676, 1.0
    %v1749 = vadd.f32 %v1677, 1.0
    %v1750 = vadd.f32 %v1678, 1.0
    %v1751 = vadd.f32 %v1679, 1.0
    %v1752 = vadd.f32 %v1680, 1.0
    %v1753 = vadd.f32 %v1681, 1.0
    %v1754 = vadd.f32 %v1682, 1.0
    %v1755 = vadd.f32 %v1683, 1.0
    %v1756 = vadd.f32 %v1684, 1.0
    %v1757 = vadd.f32 %v1685, 1.0
    %v1758 = vadd.f32 %v1686, 1.0
    %v1759 = vadd.f32 %v1687, 1.0
    %v1760 = vadd.f32 %v1688, 1.0
    %v1761 = vadd.f32 %v1689, 1.0
    %v1762 = vadd.f32 %v1690, 1.0
    %v1763 = vadd.f32 %v1691, 1.0
    %v1764 = vadd.f32 %v1692, 1.0
    %v1765 = vadd.f32 %v1693, 1.0
    %v1766 = vadd.f32 %v1694, 1.0
    %v1767 = vadd.f32 %v1695, 1.0
    %v1768 = vadd.f32 %v1696, 1.0
    %v1769 = vadd.f32 %v1697, 1.0
    %v1770 = vadd.f32 %v1698, 1.0
    %v1771 = vadd.f32 %v1699, 1.0
    %v1772 = vadd.f32 %v1700, 1.0
    %v1773 = vadd.f32 %v1701, 1.0
    %v1774 = vadd.f32 %v1702, 1.0
    %v1775 = vadd.f32 %v1703, 1.0
    %v1776 = vadd.f32 %v1704, 1.0
    %v1777 = vadd.f32 %v1705, 1.0
    %v1778 = vadd.f32 %v1706, 1.0
    %v1779 = vadd.f32 %v1707, 1.0
    %v1780 = vadd.f32 %v1708, 1.0
    %v1781 = vadd.f32 %v1709, 1.0
    %v1782 = vadd.f32 %v1710, 1.0
    %v1783 = vmul.f32 %v990, %v1711
    %v1784 = vmul.f32 %v993, %v1712
    %v1785 = vmul.f32 %v998, %v1713
    %v1786 = vmul.f32 %v1001, %v1714
    %v1787 = vmul.f32 %v1006, %v1715
    %v1788 = vmul.f32 %v1009, %v1716
    %v1789 = vmul.f32 %v1014, %v1717
    %v1790 = vmul.f32 %v1017, %v1718
    %v1791 = vmul.f32 %v1022, %v1719
    %v1792 = vmul.f32 %v1025, %v1720
    %v1793 = vmul.f32 %v1030, %v1721
    %v1794 = vmul.f32 %v1033, %v1722
    %v1795 = vmul.f32 %v1038, %v1723
    %v1796 = vmul.f32 %v1041, %v1724
    %v1797 = vmul.f32 %v1046, %v1725
    %v1798 = vmul.f32 %v1049, %v1726
    %v1799 = vmul.f32 %v1054, %v1727
    %v1800 = vmul.f32 %v1057, %v1728
    %v1801 = vmul.f32 %v1062, %v1729
    %v1802 = vmul.f32 %v1065, %v1730
    %v1803 = vmul.f32 %v1070, %v1731
    %v1804 = vmul.f32 %v1073, %v1732
    %v1805 = vmul.f32 %v1078, %v1733
    %v1806 = vmul.f32 %v1081, %v1734
    %v1807 = vmul.f32 %v1086, %v1735
    %v1808 = vmul.f32 %v1089, %v1736
    %v1809 = vmul.f32 %v1094, %v1737
    %v1810 = vmul.f32 %v1097, %v1738
    %v1811 = vmul.f32 %v1102, %v1739
    %v1812 = vmul.f32 %v1105, %v1740
    %v1813 = vmul.f32 %v1110, %v1741
    %v1814 = vmul.f32 %v1113, %v1742
    %v1815 = vmul.f32 %v1118, %v1743
    %v1816 = vmul.f32 %v1121, %v1744
    %v1817 = vmul.f32 %v1126, %v1745
    %v1818 = vmul.f32 %v1129, %v1746
    %v1819 = vmul.f32 %v1134, %v1747
    %v1820 = vmul.f32 %v1137, %v1748
    %v1821 = vmul.f32 %v1142, %v1749
    %v1822 = vmul.f32 %v1145, %v1750
    %v1823 = vmul.f32 %v1150, %v1751
    %v1824 = vmul.f32 %v1153, %v1752
    %v1825 = vmul.f32 %v1158, %v1753
    %v1826 = vmul.f32 %v1161, %v1754
    %v1827 = vmul.f32 %v1166, %v1755
    %v1828 = vmul.f32 %v1169, %v1756
    %v1829 = vmul.f32 %v1174, %v1757
    %v1830 = vmul.f32 %v1177, %v1758
    %v1831 = vmul.f32 %v1182, %v1759
    %v1832 = vmul.f32 %v1185, %v1760
    %v1833 = vmul.f32 %v1190, %v1761
    %v1834 = vmul.f32 %v1193, %v1762
    %v1835 = vmul.f32 %v1198, %v1763
    %v1836 = vmul.f32 %v1201, %v1764
    %v1837 = vmul.f32 %v1206, %v1765
    %v1838 = vmul.f32 %v1209, %v1766
    %v1839 = vmul.f32 %v1214, %v1767
    %v1840 = vmul.f32 %v1217, %v1768
    %v1841 = vmul.f32 %v1222, %v1769
    %v1842 = vmul.f32 %v1225, %v1770
    %v1843 = vmul.f32 %v1230, %v1771
    %v1844 = vmul.f32 %v1233, %v1772
    %v1845 = vmul.f32 %v1238, %v1773
    %v1846 = vmul.f32 %v1241, %v1774
    %v1847 = vmul.f32 %v1246, %v1775
    %v1848 = vmul.f32 %v1249, %v1776
    %v1849 = vmul.f32 %v1254, %v1777
    %v1850 = vmul.f32 %v1257, %v1778
    %v1851 = vmul.f32 %v1262, %v1779
    %v1852 = vmul.f32 %v1265, %v1780
    %v1853 = vmul.f32 %v1270, %v1781
    %v1854 = vmul.f32 %v1273, %v1782
    %vm1855 = vcmask 261120
    %v1856 = vsel %vm1855, %v1783, 0.0
    %v1857 = vrot.slane %v1856, 4
    %v1858 = vadd.f32 %v1856, %v1857
    %v1859 = vrot.slane %v1858, 2
    %v1860 = vadd.f32 %v1858, %v1859
    %v1861 = vrot.slane %v1860, 1
    %v1862 = vadd.f32 %v1860, %v1861
    %v1863 = vsel %vm1855, %v1784, 0.0
    %v1864 = vrot.slane %v1863, 4
    %v1865 = vadd.f32 %v1863, %v1864
    %v1866 = vrot.slane %v1865, 2
    %v1867 = vadd.f32 %v1865, %v1866
    %v1868 = vrot.slane %v1867, 1
    %v1869 = vadd.f32 %v1867, %v1868
    %v1870 = vsel %vm1855, %v1785, 0.0
    %v1871 = vrot.slane %v1870, 4
    %v1872 = vadd.f32 %v1870, %v1871
    %v1873 = vrot.slane %v1872, 2
    %v1874 = vadd.f32 %v1872, %v1873
    %v1875 = vrot.slane %v1874, 1
    %v1876 = vadd.f32 %v1874, %v1875
    %v1877 = vsel %vm1855, %v1786, 0.0
    %v1878 = vrot.slane %v1877, 4
    %v1879 = vadd.f32 %v1877, %v1878
    %v1880 = vrot.slane %v1879, 2
    %v1881 = vadd.f32 %v1879, %v1880
    %v1882 = vrot.slane %v1881, 1
    %v1883 = vadd.f32 %v1881, %v1882
    %v1884 = vsel %vm1855, %v1787, 0.0
    %v1885 = vrot.slane %v1884, 4
    %v1886 = vadd.f32 %v1884, %v1885
    %v1887 = vrot.slane %v1886, 2
    %v1888 = vadd.f32 %v1886, %v1887
    %v1889 = vrot.slane %v1888, 1
    %v1890 = vadd.f32 %v1888, %v1889
    %v1891 = vsel %vm1855, %v1788, 0.0
    %v1892 = vrot.slane %v1891, 4
    %v1893 = vadd.f32 %v1891, %v1892
    %v1894 = vrot.slane %v1893, 2
    %v1895 = vadd.f32 %v1893, %v1894
    %v1896 = vrot.slane %v1895, 1
    %v1897 = vadd.f32 %v1895, %v1896
    %v1898 = vsel %vm1855, %v1789, 0.0
    %v1899 = vrot.slane %v1898, 4
    %v1900 = vadd.f32 %v1898, %v1899
    %v1901 = vrot.slane %v1900, 2
    %v1902 = vadd.f32 %v1900, %v1901
    %v1903 = vrot.slane %v1902, 1
    %v1904 = vadd.f32 %v1902, %v1903
    %v1905 = vsel %vm1855, %v1790, 0.0
    %v1906 = vrot.slane %v1905, 4
    %v1907 = vadd.f32 %v1905, %v1906
    %v1908 = vrot.slane %v1907, 2
    %v1909 = vadd.f32 %v1907, %v1908
    %v1910 = vrot.slane %v1909, 1
    %v1911 = vadd.f32 %v1909, %v1910
    %v1912 = vsel %vm1855, %v1791, 0.0
    %v1913 = vrot.slane %v1912, 4
    %v1914 = vadd.f32 %v1912, %v1913
    %v1915 = vrot.slane %v1914, 2
    %v1916 = vadd.f32 %v1914, %v1915
    %v1917 = vrot.slane %v1916, 1
    %v1918 = vadd.f32 %v1916, %v1917
    %v1919 = vsel %vm1855, %v1792, 0.0
    %v1920 = vrot.slane %v1919, 4
    %v1921 = vadd.f32 %v1919, %v1920
    %v1922 = vrot.slane %v1921, 2
    %v1923 = vadd.f32 %v1921, %v1922
    %v1924 = vrot.slane %v1923, 1
    %v1925 = vadd.f32 %v1923, %v1924
    %v1926 = vsel %vm1855, %v1793, 0.0
    %v1927 = vrot.slane %v1926, 4
    %v1928 = vadd.f32 %v1926, %v1927
    %v1929 = vrot.slane %v1928, 2
    %v1930 = vadd.f32 %v1928, %v1929
    %v1931 = vrot.slane %v1930, 1
    %v1932 = vadd.f32 %v1930, %v1931
    %v1933 = vsel %vm1855, %v1794, 0.0
    %v1934 = vrot.slane %v1933, 4
    %v1935 = vadd.f32 %v1933, %v1934
    %v1936 = vrot.slane %v1935, 2
    %v1937 = vadd.f32 %v1935, %v1936
    %v1938 = vrot.slane %v1937, 1
    %v1939 = vadd.f32 %v1937, %v1938
    %v1940 = vsel %vm1855, %v1795, 0.0
    %v1941 = vrot.slane %v1940, 4
    %v1942 = vadd.f32 %v1940, %v1941
    %v1943 = vrot.slane %v1942, 2
    %v1944 = vadd.f32 %v1942, %v1943
    %v1945 = vrot.slane %v1944, 1
    %v1946 = vadd.f32 %v1944, %v1945
    %v1947 = vsel %vm1855, %v1796, 0.0
    %v1948 = vrot.slane %v1947, 4
    %v1949 = vadd.f32 %v1947, %v1948
    %v1950 = vrot.slane %v1949, 2
    %v1951 = vadd.f32 %v1949, %v1950
    %v1952 = vrot.slane %v1951, 1
    %v1953 = vadd.f32 %v1951, %v1952
    %v1954 = vsel %vm1855, %v1797, 0.0
    %v1955 = vrot.slane %v1954, 4
    %v1956 = vadd.f32 %v1954, %v1955
    %v1957 = vrot.slane %v1956, 2
    %v1958 = vadd.f32 %v1956, %v1957
    %v1959 = vrot.slane %v1958, 1
    %v1960 = vadd.f32 %v1958, %v1959
    %v1961 = vsel %vm1855, %v1798, 0.0
    %v1962 = vrot.slane %v1961, 4
    %v1963 = vadd.f32 %v1961, %v1962
    %v1964 = vrot.slane %v1963, 2
    %v1965 = vadd.f32 %v1963, %v1964
    %v1966 = vrot.slane %v1965, 1
    %v1967 = vadd.f32 %v1965, %v1966
    %v1968 = vsel %vm1855, %v1799, 0.0
    %v1969 = vrot.slane %v1968, 4
    %v1970 = vadd.f32 %v1968, %v1969
    %v1971 = vrot.slane %v1970, 2
    %v1972 = vadd.f32 %v1970, %v1971
    %v1973 = vrot.slane %v1972, 1
    %v1974 = vadd.f32 %v1972, %v1973
    %v1975 = vsel %vm1855, %v1800, 0.0
    %v1976 = vrot.slane %v1975, 4
    %v1977 = vadd.f32 %v1975, %v1976
    %v1978 = vrot.slane %v1977, 2
    %v1979 = vadd.f32 %v1977, %v1978
    %v1980 = vrot.slane %v1979, 1
    %v1981 = vadd.f32 %v1979, %v1980
    %v1982 = vsel %vm1855, %v1801, 0.0
    %v1983 = vrot.slane %v1982, 4
    %v1984 = vadd.f32 %v1982, %v1983
    %v1985 = vrot.slane %v1984, 2
    %v1986 = vadd.f32 %v1984, %v1985
    %v1987 = vrot.slane %v1986, 1
    %v1988 = vadd.f32 %v1986, %v1987
    %v1989 = vsel %vm1855, %v1802, 0.0
    %v1990 = vrot.slane %v1989, 4
    %v1991 = vadd.f32 %v1989, %v1990
    %v1992 = vrot.slane %v1991, 2
    %v1993 = vadd.f32 %v1991, %v1992
    %v1994 = vrot.slane %v1993, 1
    %v1995 = vadd.f32 %v1993, %v1994
    %v1996 = vsel %vm1855, %v1803, 0.0
    %v1997 = vrot.slane %v1996, 4
    %v1998 = vadd.f32 %v1996, %v1997
    %v1999 = vrot.slane %v1998, 2
    %v2000 = vadd.f32 %v1998, %v1999
    %v2001 = vrot.slane %v2000, 1
    %v2002 = vadd.f32 %v2000, %v2001
    %v2003 = vsel %vm1855, %v1804, 0.0
    %v2004 = vrot.slane %v2003, 4
    %v2005 = vadd.f32 %v2003, %v2004
    %v2006 = vrot.slane %v2005, 2
    %v2007 = vadd.f32 %v2005, %v2006
    %v2008 = vrot.slane %v2007, 1
    %v2009 = vadd.f32 %v2007, %v2008
    %v2010 = vsel %vm1855, %v1805, 0.0
    %v2011 = vrot.slane %v2010, 4
    %v2012 = vadd.f32 %v2010, %v2011
    %v2013 = vrot.slane %v2012, 2
    %v2014 = vadd.f32 %v2012, %v2013
    %v2015 = vrot.slane %v2014, 1
    %v2016 = vadd.f32 %v2014, %v2015
    %v2017 = vsel %vm1855, %v1806, 0.0
    %v2018 = vrot.slane %v2017, 4
    %v2019 = vadd.f32 %v2017, %v2018
    %v2020 = vrot.slane %v2019, 2
    %v2021 = vadd.f32 %v2019, %v2020
    %v2022 = vrot.slane %v2021, 1
    %v2023 = vadd.f32 %v2021, %v2022
    %v2024 = vsel %vm1855, %v1807, 0.0
    %v2025 = vrot.slane %v2024, 4
    %v2026 = vadd.f32 %v2024, %v2025
    %v2027 = vrot.slane %v2026, 2
    %v2028 = vadd.f32 %v2026, %v2027
    %v2029 = vrot.slane %v2028, 1
    %v2030 = vadd.f32 %v2028, %v2029
    %v2031 = vsel %vm1855, %v1808, 0.0
    %v2032 = vrot.slane %v2031, 4
    %v2033 = vadd.f32 %v2031, %v2032
    %v2034 = vrot.slane %v2033, 2
    %v2035 = vadd.f32 %v2033, %v2034
    %v2036 = vrot.slane %v2035, 1
    %v2037 = vadd.f32 %v2035, %v2036
    %v2038 = vsel %vm1855, %v1809, 0.0
    %v2039 = vrot.slane %v2038, 4
    %v2040 = vadd.f32 %v2038, %v2039
    %v2041 = vrot.slane %v2040, 2
    %v2042 = vadd.f32 %v2040, %v2041
    %v2043 = vrot.slane %v2042, 1
    %v2044 = vadd.f32 %v2042, %v2043
    %v2045 = vsel %vm1855, %v1810, 0.0
    %v2046 = vrot.slane %v2045, 4
    %v2047 = vadd.f32 %v2045, %v2046
    %v2048 = vrot.slane %v2047, 2
    %v2049 = vadd.f32 %v2047, %v2048
    %v2050 = vrot.slane %v2049, 1
    %v2051 = vadd.f32 %v2049, %v2050
    %v2052 = vsel %vm1855, %v1811, 0.0
    %v2053 = vrot.slane %v2052, 4
    %v2054 = vadd.f32 %v2052, %v2053
    %v2055 = vrot.slane %v2054, 2
    %v2056 = vadd.f32 %v2054, %v2055
    %v2057 = vrot.slane %v2056, 1
    %v2058 = vadd.f32 %v2056, %v2057
    %v2059 = vsel %vm1855, %v1812, 0.0
    %v2060 = vrot.slane %v2059, 4
    %v2061 = vadd.f32 %v2059, %v2060
    %v2062 = vrot.slane %v2061, 2
    %v2063 = vadd.f32 %v2061, %v2062
    %v2064 = vrot.slane %v2063, 1
    %v2065 = vadd.f32 %v2063, %v2064
    %v2066 = vsel %vm1855, %v1813, 0.0
    %v2067 = vrot.slane %v2066, 4
    %v2068 = vadd.f32 %v2066, %v2067
    %v2069 = vrot.slane %v2068, 2
    %v2070 = vadd.f32 %v2068, %v2069
    %v2071 = vrot.slane %v2070, 1
    %v2072 = vadd.f32 %v2070, %v2071
    %v2073 = vsel %vm1855, %v1814, 0.0
    %v2074 = vrot.slane %v2073, 4
    %v2075 = vadd.f32 %v2073, %v2074
    %v2076 = vrot.slane %v2075, 2
    %v2077 = vadd.f32 %v2075, %v2076
    %v2078 = vrot.slane %v2077, 1
    %v2079 = vadd.f32 %v2077, %v2078
    %v2080 = vsel %vm1855, %v1815, 0.0
    %v2081 = vrot.slane %v2080, 4
    %v2082 = vadd.f32 %v2080, %v2081
    %v2083 = vrot.slane %v2082, 2
    %v2084 = vadd.f32 %v2082, %v2083
    %v2085 = vrot.slane %v2084, 1
    %v2086 = vadd.f32 %v2084, %v2085
    %v2087 = vsel %vm1855, %v1816, 0.0
    %v2088 = vrot.slane %v2087, 4
    %v2089 = vadd.f32 %v2087, %v2088
    %v2090 = vrot.slane %v2089, 2
    %v2091 = vadd.f32 %v2089, %v2090
    %v2092 = vrot.slane %v2091, 1
    %v2093 = vadd.f32 %v2091, %v2092
    %v2094 = vsel %vm1855, %v1817, 0.0
    %v2095 = vrot.slane %v2094, 4
    %v2096 = vadd.f32 %v2094, %v2095
    %v2097 = vrot.slane %v2096, 2
    %v2098 = vadd.f32 %v2096, %v2097
    %v2099 = vrot.slane %v2098, 1
    %v2100 = vadd.f32 %v2098, %v2099
    %v2101 = vsel %vm1855, %v1818, 0.0
    %v2102 = vrot.slane %v2101, 4
    %v2103 = vadd.f32 %v2101, %v2102
    %v2104 = vrot.slane %v2103, 2
    %v2105 = vadd.f32 %v2103, %v2104
    %v2106 = vrot.slane %v2105, 1
    %v2107 = vadd.f32 %v2105, %v2106
    %v2108 = vsel %vm1855, %v1819, 0.0
    %v2109 = vrot.slane %v2108, 4
    %v2110 = vadd.f32 %v2108, %v2109
    %v2111 = vrot.slane %v2110, 2
    %v2112 = vadd.f32 %v2110, %v2111
    %v2113 = vrot.slane %v2112, 1
    %v2114 = vadd.f32 %v2112, %v2113
    %v2115 = vsel %vm1855, %v1820, 0.0
    %v2116 = vrot.slane %v2115, 4
    %v2117 = vadd.f32 %v2115, %v2116
    %v2118 = vrot.slane %v2117, 2
    %v2119 = vadd.f32 %v2117, %v2118
    %v2120 = vrot.slane %v2119, 1
    %v2121 = vadd.f32 %v2119, %v2120
    %v2122 = vsel %vm1855, %v1821, 0.0
    %v2123 = vrot.slane %v2122, 4
    %v2124 = vadd.f32 %v2122, %v2123
    %v2125 = vrot.slane %v2124, 2
    %v2126 = vadd.f32 %v2124, %v2125
    %v2127 = vrot.slane %v2126, 1
    %v2128 = vadd.f32 %v2126, %v2127
    %v2129 = vsel %vm1855, %v1822, 0.0
    %v2130 = vrot.slane %v2129, 4
    %v2131 = vadd.f32 %v2129, %v2130
    %v2132 = vrot.slane %v2131, 2
    %v2133 = vadd.f32 %v2131, %v2132
    %v2134 = vrot.slane %v2133, 1
    %v2135 = vadd.f32 %v2133, %v2134
    %v2136 = vsel %vm1855, %v1823, 0.0
    %v2137 = vrot.slane %v2136, 4
    %v2138 = vadd.f32 %v2136, %v2137
    %v2139 = vrot.slane %v2138, 2
    %v2140 = vadd.f32 %v2138, %v2139
    %v2141 = vrot.slane %v2140, 1
    %v2142 = vadd.f32 %v2140, %v2141
    %v2143 = vsel %vm1855, %v1824, 0.0
    %v2144 = vrot.slane %v2143, 4
    %v2145 = vadd.f32 %v2143, %v2144
    %v2146 = vrot.slane %v2145, 2
    %v2147 = vadd.f32 %v2145, %v2146
    %v2148 = vrot.slane %v2147, 1
    %v2149 = vadd.f32 %v2147, %v2148
    %v2150 = vsel %vm1855, %v1825, 0.0
    %v2151 = vrot.slane %v2150, 4
    %v2152 = vadd.f32 %v2150, %v2151
    %v2153 = vrot.slane %v2152, 2
    %v2154 = vadd.f32 %v2152, %v2153
    %v2155 = vrot.slane %v2154, 1
    %v2156 = vadd.f32 %v2154, %v2155
    %v2157 = vsel %vm1855, %v1826, 0.0
    %v2158 = vrot.slane %v2157, 4
    %v2159 = vadd.f32 %v2157, %v2158
    %v2160 = vrot.slane %v2159, 2
    %v2161 = vadd.f32 %v2159, %v2160
    %v2162 = vrot.slane %v2161, 1
    %v2163 = vadd.f32 %v2161, %v2162
    %v2164 = vsel %vm1855, %v1827, 0.0
    %v2165 = vrot.slane %v2164, 4
    %v2166 = vadd.f32 %v2164, %v2165
    %v2167 = vrot.slane %v2166, 2
    %v2168 = vadd.f32 %v2166, %v2167
    %v2169 = vrot.slane %v2168, 1
    %v2170 = vadd.f32 %v2168, %v2169
    %v2171 = vsel %vm1855, %v1828, 0.0
    %v2172 = vrot.slane %v2171, 4
    %v2173 = vadd.f32 %v2171, %v2172
    %v2174 = vrot.slane %v2173, 2
    %v2175 = vadd.f32 %v2173, %v2174
    %v2176 = vrot.slane %v2175, 1
    %v2177 = vadd.f32 %v2175, %v2176
    %v2178 = vsel %vm1855, %v1829, 0.0
    %v2179 = vrot.slane %v2178, 4
    %v2180 = vadd.f32 %v2178, %v2179
    %v2181 = vrot.slane %v2180, 2
    %v2182 = vadd.f32 %v2180, %v2181
    %v2183 = vrot.slane %v2182, 1
    %v2184 = vadd.f32 %v2182, %v2183
    %v2185 = vsel %vm1855, %v1830, 0.0
    %v2186 = vrot.slane %v2185, 4
    %v2187 = vadd.f32 %v2185, %v2186
    %v2188 = vrot.slane %v2187, 2
    %v2189 = vadd.f32 %v2187, %v2188
    %v2190 = vrot.slane %v2189, 1
    %v2191 = vadd.f32 %v2189, %v2190
    %v2192 = vsel %vm1855, %v1831, 0.0
    %v2193 = vrot.slane %v2192, 4
    %v2194 = vadd.f32 %v2192, %v2193
    %v2195 = vrot.slane %v2194, 2
    %v2196 = vadd.f32 %v2194, %v2195
    %v2197 = vrot.slane %v2196, 1
    %v2198 = vadd.f32 %v2196, %v2197
    %v2199 = vsel %vm1855, %v1832, 0.0
    %v2200 = vrot.slane %v2199, 4
    %v2201 = vadd.f32 %v2199, %v2200
    %v2202 = vrot.slane %v2201, 2
    %v2203 = vadd.f32 %v2201, %v2202
    %v2204 = vrot.slane %v2203, 1
    %v2205 = vadd.f32 %v2203, %v2204
    %v2206 = vsel %vm1855, %v1833, 0.0
    %v2207 = vrot.slane %v2206, 4
    %v2208 = vadd.f32 %v2206, %v2207
    %v2209 = vrot.slane %v2208, 2
    %v2210 = vadd.f32 %v2208, %v2209
    %v2211 = vrot.slane %v2210, 1
    %v2212 = vadd.f32 %v2210, %v2211
    %v2213 = vsel %vm1855, %v1834, 0.0
    %v2214 = vrot.slane %v2213, 4
    %v2215 = vadd.f32 %v2213, %v2214
    %v2216 = vrot.slane %v2215, 2
    %v2217 = vadd.f32 %v2215, %v2216
    %v2218 = vrot.slane %v2217, 1
    %v2219 = vadd.f32 %v2217, %v2218
    %v2220 = vsel %vm1855, %v1835, 0.0
    %v2221 = vrot.slane %v2220, 4
    %v2222 = vadd.f32 %v2220, %v2221
    %v2223 = vrot.slane %v2222, 2
    %v2224 = vadd.f32 %v2222, %v2223
    %v2225 = vrot.slane %v2224, 1
    %v2226 = vadd.f32 %v2224, %v2225
    %v2227 = vsel %vm1855, %v1836, 0.0
    %v2228 = vrot.slane %v2227, 4
    %v2229 = vadd.f32 %v2227, %v2228
    %v2230 = vrot.slane %v2229, 2
    %v2231 = vadd.f32 %v2229, %v2230
    %v2232 = vrot.slane %v2231, 1
    %v2233 = vadd.f32 %v2231, %v2232
    %v2234 = vsel %vm1855, %v1837, 0.0
    %v2235 = vrot.slane %v2234, 4
    %v2236 = vadd.f32 %v2234, %v2235
    %v2237 = vrot.slane %v2236, 2
    %v2238 = vadd.f32 %v2236, %v2237
    %v2239 = vrot.slane %v2238, 1
    %v2240 = vadd.f32 %v2238, %v2239
    %v2241 = vsel %vm1855, %v1838, 0.0
    %v2242 = vrot.slane %v2241, 4
    %v2243 = vadd.f32 %v2241, %v2242
    %v2244 = vrot.slane %v2243, 2
    %v2245 = vadd.f32 %v2243, %v2244
    %v2246 = vrot.slane %v2245, 1
    %v2247 = vadd.f32 %v2245, %v2246
    %v2248 = vsel %vm1855, %v1839, 0.0
    %v2249 = vrot.slane %v2248, 4
    %v2250 = vadd.f32 %v2248, %v2249
    %v2251 = vrot.slane %v2250, 2
    %v2252 = vadd.f32 %v2250, %v2251
    %v2253 = vrot.slane %v2252, 1
    %v2254 = vadd.f32 %v2252, %v2253
    %v2255 = vsel %vm1855, %v1840, 0.0
    %v2256 = vrot.slane %v2255, 4
    %v2257 = vadd.f32 %v2255, %v2256
    %v2258 = vrot.slane %v2257, 2
    %v2259 = vadd.f32 %v2257, %v2258
    %v2260 = vrot.slane %v2259, 1
    %v2261 = vadd.f32 %v2259, %v2260
    %v2262 = vsel %vm1855, %v1841, 0.0
    %v2263 = vrot.slane %v2262, 4
    %v2264 = vadd.f32 %v2262, %v2263
    %v2265 = vrot.slane %v2264, 2
    %v2266 = vadd.f32 %v2264, %v2265
    %v2267 = vrot.slane %v2266, 1
    %v2268 = vadd.f32 %v2266, %v2267
    %v2269 = vsel %vm1855, %v1842, 0.0
    %v2270 = vrot.slane %v2269, 4
    %v2271 = vadd.f32 %v2269, %v2270
    %v2272 = vrot.slane %v2271, 2
    %v2273 = vadd.f32 %v2271, %v2272
    %v2274 = vrot.slane %v2273, 1
    %v2275 = vadd.f32 %v2273, %v2274
    %v2276 = vsel %vm1855, %v1843, 0.0
    %v2277 = vrot.slane %v2276, 4
    %v2278 = vadd.f32 %v2276, %v2277
    %v2279 = vrot.slane %v2278, 2
    %v2280 = vadd.f32 %v2278, %v2279
    %v2281 = vrot.slane %v2280, 1
    %v2282 = vadd.f32 %v2280, %v2281
    %v2283 = vsel %vm1855, %v1844, 0.0
    %v2284 = vrot.slane %v2283, 4
    %v2285 = vadd.f32 %v2283, %v2284
    %v2286 = vrot.slane %v2285, 2
    %v2287 = vadd.f32 %v2285, %v2286
    %v2288 = vrot.slane %v2287, 1
    %v2289 = vadd.f32 %v2287, %v2288
    %v2290 = vsel %vm1855, %v1845, 0.0
    %v2291 = vrot.slane %v2290, 4
    %v2292 = vadd.f32 %v2290, %v2291
    %v2293 = vrot.slane %v2292, 2
    %v2294 = vadd.f32 %v2292, %v2293
    %v2295 = vrot.slane %v2294, 1
    %v2296 = vadd.f32 %v2294, %v2295
    %v2297 = vsel %vm1855, %v1846, 0.0
    %v2298 = vrot.slane %v2297, 4
    %v2299 = vadd.f32 %v2297, %v2298
    %v2300 = vrot.slane %v2299, 2
    %v2301 = vadd.f32 %v2299, %v2300
    %v2302 = vrot.slane %v2301, 1
    %v2303 = vadd.f32 %v2301, %v2302
    %v2304 = vsel %vm1855, %v1847, 0.0
    %v2305 = vrot.slane %v2304, 4
    %v2306 = vadd.f32 %v2304, %v2305
    %v2307 = vrot.slane %v2306, 2
    %v2308 = vadd.f32 %v2306, %v2307
    %v2309 = vrot.slane %v2308, 1
    %v2310 = vadd.f32 %v2308, %v2309
    %v2311 = vsel %vm1855, %v1848, 0.0
    %v2312 = vrot.slane %v2311, 4
    %v2313 = vadd.f32 %v2311, %v2312
    %v2314 = vrot.slane %v2313, 2
    %v2315 = vadd.f32 %v2313, %v2314
    %v2316 = vrot.slane %v2315, 1
    %v2317 = vadd.f32 %v2315, %v2316
    %v2318 = vsel %vm1855, %v1849, 0.0
    %v2319 = vrot.slane %v2318, 4
    %v2320 = vadd.f32 %v2318, %v2319
    %v2321 = vrot.slane %v2320, 2
    %v2322 = vadd.f32 %v2320, %v2321
    %v2323 = vrot.slane %v2322, 1
    %v2324 = vadd.f32 %v2322, %v2323
    %v2325 = vsel %vm1855, %v1850, 0.0
    %v2326 = vrot.slane %v2325, 4
    %v2327 = vadd.f32 %v2325, %v2326
    %v2328 = vrot.slane %v2327, 2
    %v2329 = vadd.f32 %v2327, %v2328
    %v2330 = vrot.slane %v2329, 1
    %v2331 = vadd.f32 %v2329, %v2330
    %v2332 = vsel %vm1855, %v1851, 0.0
    %v2333 = vrot.slane %v2332, 4
    %v2334 = vadd.f32 %v2332, %v2333
    %v2335 = vrot.slane %v2334, 2
    %v2336 = vadd.f32 %v2334, %v2335
    %v2337 = vrot.slane %v2336, 1
    %v2338 = vadd.f32 %v2336, %v2337
    %v2339 = vsel %vm1855, %v1852, 0.0
    %v2340 = vrot.slane %v2339, 4
    %v2341 = vadd.f32 %v2339, %v2340
    %v2342 = vrot.slane %v2341, 2
    %v2343 = vadd.f32 %v2341, %v2342
    %v2344 = vrot.slane %v2343, 1
    %v2345 = vadd.f32 %v2343, %v2344
    %v2346 = vsel %vm1855, %v1853, 0.0
    %v2347 = vrot.slane %v2346, 4
    %v2348 = vadd.f32 %v2346, %v2347
    %v2349 = vrot.slane %v2348, 2
    %v2350 = vadd.f32 %v2348, %v2349
    %v2351 = vrot.slane %v2350, 1
    %v2352 = vadd.f32 %v2350, %v2351
    %v2353 = vsel %vm1855, %v1854, 0.0
    %v2354 = vrot.slane %v2353, 4
    %v2355 = vadd.f32 %v2353, %v2354
    %v2356 = vrot.slane %v2355, 2
    %v2357 = vadd.f32 %v2355, %v2356
    %v2358 = vrot.slane %v2357, 1
    %v2359 = vadd.f32 %v2357, %v2358
    %v2360 = vld [vmem:[%s3] sm:$0xff]
    %v2361 = vld [vmem:[%s3 + $0x8] sm:$0xff]
    %v2362 = vld [vmem:[%s3 + $0x10] sm:$0xff]
    %v2363 = vld [vmem:[%s3 + $0x18] sm:$0xff]
    %v2364 = vld [vmem:[%s3 + $0x20] sm:$0xff]
    %v2365 = vld [vmem:[%s3 + $0x28] sm:$0xff]
    %v2366 = vld [vmem:[%s3 + $0x30] sm:$0xff]
    %v2367 = vld [vmem:[%s3 + $0x38] sm:$0xff]
    %v2368 = vld [vmem:[%s3 + $0x40] sm:$0xff]
    %v2378 = vrot.slane %v2360, 1
    %v2379 = vrot.slane %v2360, 2
    %v2380 = vrot.slane %v2360, 3
    %v2381 = vrot.slane %v2360, 4
    %v2382 = vrot.slane %v2360, 5
    %v2383 = vrot.slane %v2360, 6
    %v2384 = vrot.slane %v2360, 7
    %v2385 = vrot.slane %v2361, 1
    %v2386 = vrot.slane %v2361, 2
    %v2387 = vrot.slane %v2361, 3
    %v2388 = vrot.slane %v2361, 4
    %v2389 = vrot.slane %v2361, 5
    %v2390 = vrot.slane %v2361, 6
    %v2391 = vrot.slane %v2361, 7
    %v2392 = vrot.slane %v2362, 1
    %v2393 = vrot.slane %v2362, 2
    %v2394 = vrot.slane %v2362, 3
    %v2395 = vrot.slane %v2362, 4
    %v2396 = vrot.slane %v2362, 5
    %v2397 = vrot.slane %v2362, 6
    %v2398 = vrot.slane %v2362, 7
    %v2399 = vrot.slane %v2363, 1
    %v2400 = vrot.slane %v2363, 2
    %v2401 = vrot.slane %v2363, 3
    %v2402 = vrot.slane %v2363, 4
    %v2403 = vrot.slane %v2363, 5
    %v2404 = vrot.slane %v2363, 6
    %v2405 = vrot.slane %v2363, 7
    %v2406 = vrot.slane %v2364, 1
    %v2407 = vrot.slane %v2364, 2
    %v2408 = vrot.slane %v2364, 3
    %v2409 = vrot.slane %v2364, 4
    %v2410 = vrot.slane %v2364, 5
    %v2411 = vrot.slane %v2364, 6
    %v2412 = vrot.slane %v2364, 7
    %v2413 = vrot.slane %v2365, 1
    %v2414 = vrot.slane %v2365, 2
    %v2415 = vrot.slane %v2365, 3
    %v2416 = vrot.slane %v2365, 4
    %v2417 = vrot.slane %v2365, 5
    %v2418 = vrot.slane %v2365, 6
    %v2419 = vrot.slane %v2365, 7
    %v2420 = vrot.slane %v2366, 1
    %v2421 = vrot.slane %v2366, 2
    %v2422 = vrot.slane %v2366, 3
    %v2423 = vrot.slane %v2366, 4
    %v2424 = vrot.slane %v2366, 5
    %v2425 = vrot.slane %v2366, 6
    %v2426 = vrot.slane %v2366, 7
    %v2427 = vrot.slane %v2367, 1
    %v2428 = vrot.slane %v2367, 2
    %v2429 = vrot.slane %v2367, 3
    %v2430 = vrot.slane %v2367, 4
    %v2431 = vrot.slane %v2367, 5
    %v2432 = vrot.slane %v2367, 6
    %v2433 = vrot.slane %v2367, 7
    %v2434 = vrot.slane %v2368, 1
    %v2435 = vrot.slane %v2368, 2
    %v2436 = vrot.slane %v2368, 3
    %v2437 = vrot.slane %v2368, 4
    %v2438 = vrot.slane %v2368, 5
    %v2439 = vrot.slane %v2368, 6
    %v2440 = vrot.slane %v2368, 7
    %v2513 = vadd.f32 %v1862, %v2360
    %v2514 = vadd.f32 %v1869, %v2378
    %v2515 = vadd.f32 %v1876, %v2379
    %v2516 = vadd.f32 %v1883, %v2380
    %v2517 = vadd.f32 %v1890, %v2381
    %v2518 = vadd.f32 %v1897, %v2382
    %v2519 = vadd.f32 %v1904, %v2383
    %v2520 = vadd.f32 %v1911, %v2384
    %v2521 = vadd.f32 %v1918, %v2361
    %v2522 = vadd.f32 %v1925, %v2385
    %v2523 = vadd.f32 %v1932, %v2386
    %v2524 = vadd.f32 %v1939, %v2387
    %v2525 = vadd.f32 %v1946, %v2388
    %v2526 = vadd.f32 %v1953, %v2389
    %v2527 = vadd.f32 %v1960, %v2390
    %v2528 = vadd.f32 %v1967, %v2391
    %v2529 = vadd.f32 %v1974, %v2362
    %v2530 = vadd.f32 %v1981, %v2392
    %v2531 = vadd.f32 %v1988, %v2393
    %v2532 = vadd.f32 %v1995, %v2394
    %v2533 = vadd.f32 %v2002, %v2395
    %v2534 = vadd.f32 %v2009, %v2396
    %v2535 = vadd.f32 %v2016, %v2397
    %v2536 = vadd.f32 %v2023, %v2398
    %v2537 = vadd.f32 %v2030, %v2363
    %v2538 = vadd.f32 %v2037, %v2399
    %v2539 = vadd.f32 %v2044, %v2400
    %v2540 = vadd.f32 %v2051, %v2401
    %v2541 = vadd.f32 %v2058, %v2402
    %v2542 = vadd.f32 %v2065, %v2403
    %v2543 = vadd.f32 %v2072, %v2404
    %v2544 = vadd.f32 %v2079, %v2405
    %v2545 = vadd.f32 %v2086, %v2364
    %v2546 = vadd.f32 %v2093, %v2406
    %v2547 = vadd.f32 %v2100, %v2407
    %v2548 = vadd.f32 %v2107, %v2408
    %v2549 = vadd.f32 %v2114, %v2409
    %v2550 = vadd.f32 %v2121, %v2410
    %v2551 = vadd.f32 %v2128, %v2411
    %v2552 = vadd.f32 %v2135, %v2412
    %v2553 = vadd.f32 %v2142, %v2365
    %v2554 = vadd.f32 %v2149, %v2413
    %v2555 = vadd.f32 %v2156, %v2414
    %v2556 = vadd.f32 %v2163, %v2415
    %v2557 = vadd.f32 %v2170, %v2416
    %v2558 = vadd.f32 %v2177, %v2417
    %v2559 = vadd.f32 %v2184, %v2418
    %v2560 = vadd.f32 %v2191, %v2419
    %v2561 = vadd.f32 %v2198, %v2366
    %v2562 = vadd.f32 %v2205, %v2420
    %v2563 = vadd.f32 %v2212, %v2421
    %v2564 = vadd.f32 %v2219, %v2422
    %v2565 = vadd.f32 %v2226, %v2423
    %v2566 = vadd.f32 %v2233, %v2424
    %v2567 = vadd.f32 %v2240, %v2425
    %v2568 = vadd.f32 %v2247, %v2426
    %v2569 = vadd.f32 %v2254, %v2367
    %v2570 = vadd.f32 %v2261, %v2427
    %v2571 = vadd.f32 %v2268, %v2428
    %v2572 = vadd.f32 %v2275, %v2429
    %v2573 = vadd.f32 %v2282, %v2430
    %v2574 = vadd.f32 %v2289, %v2431
    %v2575 = vadd.f32 %v2296, %v2432
    %v2576 = vadd.f32 %v2303, %v2433
    %v2577 = vadd.f32 %v2310, %v2368
    %v2578 = vadd.f32 %v2317, %v2434
    %v2579 = vadd.f32 %v2324, %v2435
    %v2580 = vadd.f32 %v2331, %v2436
    %v2581 = vadd.f32 %v2338, %v2437
    %v2582 = vadd.f32 %v2345, %v2438
    %v2583 = vadd.f32 %v2352, %v2439
    %v2584 = vadd.f32 %v2359, %v2440
    %v2585 = vld [vmem:[%s2] sm:$0xff]
    %v2586 = vld [vmem:[%s2 + $0x8] sm:$0xff]
    %v2659 = vrot.slane %v2514, 7
    %vm2660 = vcmask 1041409
    %v2661 = vsel %vm2660, %v2659, %v2513
    %v2662 = vrot.slane %v2515, 6
    %vm2663 = vcmask 1042434
    %v2664 = vsel %vm2663, %v2662, %v2661
    %v2665 = vrot.slane %v2516, 5
    %vm2666 = vcmask 1043459
    %v2667 = vsel %vm2666, %v2665, %v2664
    %v2668 = vrot.slane %v2517, 4
    %vm2669 = vcmask 1044484
    %v2670 = vsel %vm2669, %v2668, %v2667
    %v2671 = vrot.slane %v2518, 3
    %vm2672 = vcmask 1045509
    %v2673 = vsel %vm2672, %v2671, %v2670
    %v2674 = vrot.slane %v2519, 2
    %vm2675 = vcmask 1046534
    %v2676 = vsel %vm2675, %v2674, %v2673
    %v2677 = vrot.slane %v2520, 1
    %vm2678 = vcmask 1047559
    %v2679 = vsel %vm2678, %v2677, %v2676
    %v2680 = vrot.slane %v2522, 7
    %v2681 = vsel %vm2660, %v2680, %v2521
    %v2682 = vrot.slane %v2523, 6
    %v2683 = vsel %vm2663, %v2682, %v2681
    %v2684 = vrot.slane %v2524, 5
    %v2685 = vsel %vm2666, %v2684, %v2683
    %v2686 = vrot.slane %v2525, 4
    %v2687 = vsel %vm2669, %v2686, %v2685
    %v2688 = vrot.slane %v2526, 3
    %v2689 = vsel %vm2672, %v2688, %v2687
    %v2690 = vrot.slane %v2527, 2
    %v2691 = vsel %vm2675, %v2690, %v2689
    %v2692 = vrot.slane %v2528, 1
    %v2693 = vsel %vm2678, %v2692, %v2691
    %v2694 = vrot.slane %v2530, 7
    %v2695 = vsel %vm2660, %v2694, %v2529
    %v2696 = vrot.slane %v2531, 6
    %v2697 = vsel %vm2663, %v2696, %v2695
    %v2698 = vrot.slane %v2532, 5
    %v2699 = vsel %vm2666, %v2698, %v2697
    %v2700 = vrot.slane %v2533, 4
    %v2701 = vsel %vm2669, %v2700, %v2699
    %v2702 = vrot.slane %v2534, 3
    %v2703 = vsel %vm2672, %v2702, %v2701
    %v2704 = vrot.slane %v2535, 2
    %v2705 = vsel %vm2675, %v2704, %v2703
    %v2706 = vrot.slane %v2536, 1
    %v2707 = vsel %vm2678, %v2706, %v2705
    %v2708 = vrot.slane %v2538, 7
    %v2709 = vsel %vm2660, %v2708, %v2537
    %v2710 = vrot.slane %v2539, 6
    %v2711 = vsel %vm2663, %v2710, %v2709
    %v2712 = vrot.slane %v2540, 5
    %v2713 = vsel %vm2666, %v2712, %v2711
    %v2714 = vrot.slane %v2541, 4
    %v2715 = vsel %vm2669, %v2714, %v2713
    %v2716 = vrot.slane %v2542, 3
    %v2717 = vsel %vm2672, %v2716, %v2715
    %v2718 = vrot.slane %v2543, 2
    %v2719 = vsel %vm2675, %v2718, %v2717
    %v2720 = vrot.slane %v2544, 1
    %v2721 = vsel %vm2678, %v2720, %v2719
    %v2722 = vrot.slane %v2546, 7
    %v2723 = vsel %vm2660, %v2722, %v2545
    %v2724 = vrot.slane %v2547, 6
    %v2725 = vsel %vm2663, %v2724, %v2723
    %v2726 = vrot.slane %v2548, 5
    %v2727 = vsel %vm2666, %v2726, %v2725
    %v2728 = vrot.slane %v2549, 4
    %v2729 = vsel %vm2669, %v2728, %v2727
    %v2730 = vrot.slane %v2550, 3
    %v2731 = vsel %vm2672, %v2730, %v2729
    %v2732 = vrot.slane %v2551, 2
    %v2733 = vsel %vm2675, %v2732, %v2731
    %v2734 = vrot.slane %v2552, 1
    %v2735 = vsel %vm2678, %v2734, %v2733
    %v2736 = vrot.slane %v2554, 7
    %v2737 = vsel %vm2660, %v2736, %v2553
    %v2738 = vrot.slane %v2555, 6
    %v2739 = vsel %vm2663, %v2738, %v2737
    %v2740 = vrot.slane %v2556, 5
    %v2741 = vsel %vm2666, %v2740, %v2739
    %v2742 = vrot.slane %v2557, 4
    %v2743 = vsel %vm2669, %v2742, %v2741
    %v2744 = vrot.slane %v2558, 3
    %v2745 = vsel %vm2672, %v2744, %v2743
    %v2746 = vrot.slane %v2559, 2
    %v2747 = vsel %vm2675, %v2746, %v2745
    %v2748 = vrot.slane %v2560, 1
    %v2749 = vsel %vm2678, %v2748, %v2747
    %v2750 = vrot.slane %v2562, 7
    %v2751 = vsel %vm2660, %v2750, %v2561
    %v2752 = vrot.slane %v2563, 6
    %v2753 = vsel %vm2663, %v2752, %v2751
    %v2754 = vrot.slane %v2564, 5
    %v2755 = vsel %vm2666, %v2754, %v2753
    %v2756 = vrot.slane %v2565, 4
    %v2757 = vsel %vm2669, %v2756, %v2755
    %v2758 = vrot.slane %v2566, 3
    %v2759 = vsel %vm2672, %v2758, %v2757
    %v2760 = vrot.slane %v2567, 2
    %v2761 = vsel %vm2675, %v2760, %v2759
    %v2762 = vrot.slane %v2568, 1
    %v2763 = vsel %vm2678, %v2762, %v2761
    %v2764 = vrot.slane %v2570, 7
    %v2765 = vsel %vm2660, %v2764, %v2569
    %v2766 = vrot.slane %v2571, 6
    %v2767 = vsel %vm2663, %v2766, %v2765
    %v2768 = vrot.slane %v2572, 5
    %v2769 = vsel %vm2666, %v2768, %v2767
    %v2770 = vrot.slane %v2573, 4
    %v2771 = vsel %vm2669, %v2770, %v2769
    %v2772 = vrot.slane %v2574, 3
    %v2773 = vsel %vm2672, %v2772, %v2771
    %v2774 = vrot.slane %v2575, 2
    %v2775 = vsel %vm2675, %v2774, %v2773
    %v2776 = vrot.slane %v2576, 1
    %v2777 = vsel %vm2678, %v2776, %v2775
    %v2778 = vrot.slane %v2578, 7
    %v2779 = vsel %vm2660, %v2778, %v2577
    %v2780 = vrot.slane %v2579, 6
    %v2781 = vsel %vm2663, %v2780, %v2779
    %v2782 = vrot.slane %v2580, 5
    %v2783 = vsel %vm2666, %v2782, %v2781
    %v2784 = vrot.slane %v2581, 4
    %v2785 = vsel %vm2669, %v2784, %v2783
    %v2786 = vrot.slane %v2582, 3
    %v2787 = vsel %vm2672, %v2786, %v2785
    %v2788 = vrot.slane %v2583, 2
    %v2789 = vsel %vm2675, %v2788, %v2787
    %v2790 = vrot.slane %v2584, 1
    %v2791 = vsel %vm2678, %v2790, %v2789
    %v2792 = vsel %vm1855, %v2679, 0
    %v2794 = vsel %vm1855, %v2693, 0
    %v2796 = vsel %vm1855, %v2707, 0
    %v2798 = vsel %vm1855, %v2721, 0
    %v2800 = vsel %vm1855, %v2735, 0
    %v2802 = vsel %vm1855, %v2749, 0
    %v2804 = vsel %vm1855, %v2763, 0
    %v2806 = vsel %vm1855, %v2777, 0
    %v2808 = vsel %vm1855, %v2791, 0
    %v2811 = vsel %vm1855, %v2585, 0
    %v2814 = vsel %vm1855, %v2586, 0
    %2816 = vmatprep.subr.mxu0 0.0
    %2817 = vmatpush1.xpose.msra.mxu0 %v2811
    %2818 = vmatprep.subr.mxu0 0.0
    %2819 = vmatpush1.xpose.msra.mxu0 %v2814
    %2820 = vmatprep.subr.mxu0 0.0
    %2821 = vmatpush1.xpose.msra.mxu0 0.0
    %2822 = vmatprep.subr.mxu0 0.0
    %2823 = vmatpush1.xpose.msra.mxu0 0.0
    %2824 = vmatprep.subr.mxu0 0.0
    %2825 = vmatpush1.xpose.msra.mxu0 0.0
    %2826 = vmatprep.subr.mxu0 0.0
    %2827 = vmatpush1.xpose.msra.mxu0 0.0
    %2828 = vmatprep.subr.mxu0 0.0
    %2829 = vmatpush1.xpose.msra.mxu0 0.0
    %2830 = vmatprep.subr.mxu0 0.0
    %2831 = vmatpush1.xpose.msra.mxu0 0.0
    %2832 = vmatprep.subr.mxu0 0.0
    %2833 = vmatpush1.xpose.msra.mxu0 0.0
    %2834 = vmatprep.subr.mxu0 0.0
    %2835 = vmatpush1.xpose.msra.mxu0 0.0
    %2836 = vmatprep.subr.mxu0 0.0
    %2837 = vmatpush1.xpose.msra.mxu0 0.0
    %2838 = vmatprep.subr.mxu0 0.0
    %2839 = vmatpush1.xpose.msra.mxu0 0.0
    %2840 = vmatprep.subr.mxu0 0.0
    %2841 = vmatpush1.xpose.msra.mxu0 0.0
    %2842 = vmatprep.subr.mxu0 0.0
    %2843 = vmatpush1.xpose.msra.mxu0 0.0
    %2844 = vmatprep.subr.mxu0 0.0
    %2845 = vmatpush1.xpose.msra.mxu0 0.0
    %2846 = vmatprep.subr.mxu0 0.0
    %2847 = vmatpush1.xpose.msra.mxu0 0.0
    %2848 = vmatprep.subr.mxu0 0.0
    %2849 = vmatpush1.xpose.msra.mxu0 0.0
    %2850 = vmatprep.subr.mxu0 0.0
    %2851 = vmatpush1.xpose.msra.mxu0 0.0
    %2852 = vmatprep.subr.mxu0 0.0
    %2853 = vmatpush1.xpose.msra.mxu0 0.0
    %2854 = vmatprep.subr.mxu0 0.0
    %2855 = vmatpush1.xpose.msra.mxu0 0.0
    %2856 = vmatprep.subr.mxu0 0.0
    %2857 = vmatpush1.xpose.msra.mxu0 0.0
    %2858 = vmatprep.subr.mxu0 0.0
    %2859 = vmatpush1.xpose.msra.mxu0 0.0
    %2860 = vmatprep.subr.mxu0 0.0
    %2861 = vmatpush1.xpose.msra.mxu0 0.0
    %2862 = vmatprep.subr.mxu0 0.0
    %2863 = vmatpush1.xpose.msra.mxu0 0.0
    %2864 = vmatprep.subr.mxu0 0.0
    %2865 = vmatpush1.xpose.msra.mxu0 0.0
    %2866 = vmatprep.subr.mxu0 0.0
    %2867 = vmatpush1.xpose.msra.mxu0 0.0
    %2868 = vmatprep.subr.mxu0 0.0
    %2869 = vmatpush1.xpose.msra.mxu0 0.0
    %2870 = vmatprep.subr.mxu0 0.0
    %2871 = vmatpush1.xpose.msra.mxu0 0.0
    %2872 = vmatprep.subr.mxu0 0.0
    %2873 = vmatpush1.xpose.msra.mxu0 0.0
    %2874 = vmatprep.subr.mxu0 0.0
    %2875 = vmatpush1.xpose.msra.mxu0 0.0
    %2876 = vmatprep.subr.mxu0 0.0
    %2877 = vmatpush1.xpose.msra.mxu0 0.0
    %2878 = vmatprep.subr.mxu0 0.0
    %2879 = vmatpush1.xpose.msra.mxu0 0.0
    %2880 = vmatprep.mubr.f32.mxu0 0.0
    %2881 = vmatmul.mubr.f32.gmra.mrb[0].mxu0 %v2792
    %v2882 = vpop.f32.mrb[0].mxu0
    %v2883 = vadd.f32 0.0, %v2882
    %v2884 = vpop.f32.mrb[0].mxu0
    %2885 = vmatprep.mubr.f32.mxu0 0.0
    %2886 = vmatmul.mubr.f32.gmra.mrb[0].mxu0 %v2794
    %v2887 = vpop.f32.mrb[0].mxu0
    %v2888 = vadd.f32 0.0, %v2887
    %v2889 = vpop.f32.mrb[0].mxu0
    %2890 = vmatprep.mubr.f32.mxu0 0.0
    %2891 = vmatmul.mubr.f32.gmra.mrb[0].mxu0 %v2796
    %v2892 = vpop.f32.mrb[0].mxu0
    %v2893 = vadd.f32 0.0, %v2892
    %v2894 = vpop.f32.mrb[0].mxu0
    %2895 = vmatprep.mubr.f32.mxu0 0.0
    %2896 = vmatmul.mubr.f32.gmra.mrb[0].mxu0 %v2798
    %v2897 = vpop.f32.mrb[0].mxu0
    %v2898 = vadd.f32 0.0, %v2897
    %v2899 = vpop.f32.mrb[0].mxu0
    %2900 = vmatprep.mubr.f32.mxu0 0.0
    %2901 = vmatmul.mubr.f32.gmra.mrb[0].mxu0 %v2800
    %v2902 = vpop.f32.mrb[0].mxu0
    %v2903 = vadd.f32 0.0, %v2902
    %v2904 = vpop.f32.mrb[0].mxu0
    %2905 = vmatprep.mubr.f32.mxu0 0.0
    %2906 = vmatmul.mubr.f32.gmra.mrb[0].mxu0 %v2802
    %v2907 = vpop.f32.mrb[0].mxu0
    %v2908 = vadd.f32 0.0, %v2907
    %v2909 = vpop.f32.mrb[0].mxu0
    %2910 = vmatprep.mubr.f32.mxu0 0.0
    %2911 = vmatmul.mubr.f32.gmra.mrb[0].mxu0 %v2804
    %v2912 = vpop.f32.mrb[0].mxu0
    %v2913 = vadd.f32 0.0, %v2912
    %v2914 = vpop.f32.mrb[0].mxu0
    %2915 = vmatprep.mubr.f32.mxu0 0.0
    %2916 = vmatmul.mubr.f32.gmra.mrb[0].mxu0 %v2806
    %v2917 = vpop.f32.mrb[0].mxu0
    %v2918 = vadd.f32 0.0, %v2917
    %v2919 = vpop.f32.mrb[0].mxu0
    %2920 = vmatprep.mubr.f32.mxu0 0.0
    %2921 = vmatmul.mubr.f32.gmra.mrb[0].mxu0 %v2808
    %v2922 = vpop.f32.mrb[0].mxu0
    %v2923 = vadd.f32 0.0, %v2922
    %v2924 = vpop.f32.mrb[0].mxu0
    %2925 = vdwg.mxu0
    %v2926 = vmul.u32 %v1277, 4
    %vm2927 = vcmp.ge.s32.totalorder %v105, %v2926
    %v2928 = vadd.s32 %v2926, 4
    %vm2929 = vcmp.lt.s32.totalorder %v105, %v2928
    %vm2930 = vmand %vm2927, %vm2929
    %v2931 = vld [vmem:[%s4] sm:$0xff]
    %v2932 = vld [vmem:[%s4 + $0x8] sm:$0xff]
    %vm2933 = vcmask 130048
    %v2935 = vsel %vm2933, %v2888, 0
    %v2938 = vsel %vm2933, %v2893, 0
    %v2941 = vsel %vm2933, %v2898, 0
    %v2944 = vsel %vm2933, %v2903, 0
    %2946 = vmatprep.subr.mxu0 0.0
    %2947 = vmatpush1.msra.mxu0 %v2931
    %2948 = vmatprep.subr.mxu0 0.0
    %2949 = vmatpush1.msra.mxu0 %v2932
    %2950 = vmatprep.subr.mxu0 0.0
    %2951 = vmatpush1.msra.mxu0 0.0
    %2952 = vmatprep.subr.mxu0 0.0
    %2953 = vmatpush1.msra.mxu0 0.0
    %2954 = vmatprep.subr.mxu0 0.0
    %2955 = vmatpush1.msra.mxu0 0.0
    %2956 = vmatprep.subr.mxu0 0.0
    %2957 = vmatpush1.msra.mxu0 0.0
    %2958 = vmatprep.subr.mxu0 0.0
    %2959 = vmatpush1.msra.mxu0 0.0
    %2960 = vmatprep.subr.mxu0 0.0
    %2961 = vmatpush1.msra.mxu0 0.0
    %2962 = vmatprep.subr.mxu0 0.0
    %2963 = vmatpush1.msra.mxu0 0.0
    %2964 = vmatprep.subr.mxu0 0.0
    %2965 = vmatpush1.msra.mxu0 0.0
    %2966 = vmatprep.subr.mxu0 0.0
    %2967 = vmatpush1.msra.mxu0 0.0
    %2968 = vmatprep.subr.mxu0 0.0
    %2969 = vmatpush1.msra.mxu0 0.0
    %2970 = vmatprep.subr.mxu0 0.0
    %2971 = vmatpush1.msra.mxu0 0.0
    %2972 = vmatprep.subr.mxu0 0.0
    %2973 = vmatpush1.msra.mxu0 0.0
    %2974 = vmatprep.subr.mxu0 0.0
    %2975 = vmatpush1.msra.mxu0 0.0
    %2976 = vmatprep.subr.mxu0 0.0
    %2977 = vmatpush1.msra.mxu0 0.0
    %2978 = vmatprep.subr.mxu0 0.0
    %2979 = vmatpush1.msra.mxu0 0.0
    %2980 = vmatprep.subr.mxu0 0.0
    %2981 = vmatpush1.msra.mxu0 0.0
    %2982 = vmatprep.subr.mxu0 0.0
    %2983 = vmatpush1.msra.mxu0 0.0
    %2984 = vmatprep.subr.mxu0 0.0
    %2985 = vmatpush1.msra.mxu0 0.0
    %2986 = vmatprep.subr.mxu0 0.0
    %2987 = vmatpush1.msra.mxu0 0.0
    %2988 = vmatprep.subr.mxu0 0.0
    %2989 = vmatpush1.msra.mxu0 0.0
    %2990 = vmatprep.subr.mxu0 0.0
    %2991 = vmatpush1.msra.mxu0 0.0
    %2992 = vmatprep.subr.mxu0 0.0
    %2993 = vmatpush1.msra.mxu0 0.0
    %2994 = vmatprep.subr.mxu0 0.0
    %2995 = vmatpush1.msra.mxu0 0.0
    %2996 = vmatprep.subr.mxu0 0.0
    %2997 = vmatpush1.msra.mxu0 0.0
    %2998 = vmatprep.subr.mxu0 0.0
    %2999 = vmatpush1.msra.mxu0 0.0
    %3000 = vmatprep.subr.mxu0 0.0
    %3001 = vmatpush1.msra.mxu0 0.0
    %3002 = vmatprep.subr.mxu0 0.0
    %3003 = vmatpush1.msra.mxu0 0.0
    %3004 = vmatprep.subr.mxu0 0.0
    %3005 = vmatpush1.msra.mxu0 0.0
    %3006 = vmatprep.subr.mxu0 0.0
    %3007 = vmatpush1.msra.mxu0 0.0
    %3008 = vmatprep.subr.mxu0 0.0
    %3009 = vmatpush1.msra.mxu0 0.0
    %3010 = vmatprep.mubr.f32.mxu0 0.0
    %3011 = vmatmul.mubr.f32.gmra.mrb[0].mxu0 %v2935
    %v3012 = vpop.f32.mrb[0].mxu0
    %v3013 = vadd.f32 0.0, %v3012
    %v3014 = vpop.f32.mrb[0].mxu0
    %3015 = vmatprep.mubr.f32.mxu0 0.0
    %3016 = vmatmul.mubr.f32.gmra.mrb[0].mxu0 %v2938
    %v3017 = vpop.f32.mrb[0].mxu0
    %v3018 = vadd.f32 0.0, %v3017
    %v3019 = vpop.f32.mrb[0].mxu0
    %3020 = vmatprep.mubr.f32.mxu0 0.0
    %3021 = vmatmul.mubr.f32.gmra.mrb[0].mxu0 %v2941
    %v3022 = vpop.f32.mrb[0].mxu0
    %v3023 = vadd.f32 0.0, %v3022
    %v3024 = vpop.f32.mrb[0].mxu0
    %3025 = vmatprep.mubr.f32.mxu0 0.0
    %3026 = vmatmul.mubr.f32.gmra.mrb[0].mxu0 %v2944
    %v3027 = vpop.f32.mrb[0].mxu0
    %v3028 = vadd.f32 0.0, %v3027
    %v3029 = vpop.f32.mrb[0].mxu0
    %3030 = vdwg.mxu0
    %s3031 = scalar_lea.vmem %s4, 16
    %v3032 = vld [vmem:[%s3031] sm:$0xff]
    %v3033 = vld [vmem:[%s3031 + $0x8] sm:$0xff]
    %3034 = vmatprep.subr.mxu0 0.0
    %3035 = vmatpush1.msra.mxu0 %v3032
    %3036 = vmatprep.subr.mxu0 0.0
    %3037 = vmatpush1.msra.mxu0 %v3033
    %3038 = vmatprep.subr.mxu0 0.0
    %3039 = vmatpush1.msra.mxu0 0.0
    %3040 = vmatprep.subr.mxu0 0.0
    %3041 = vmatpush1.msra.mxu0 0.0
    %3042 = vmatprep.subr.mxu0 0.0
    %3043 = vmatpush1.msra.mxu0 0.0
    %3044 = vmatprep.subr.mxu0 0.0
    %3045 = vmatpush1.msra.mxu0 0.0
    %3046 = vmatprep.subr.mxu0 0.0
    %3047 = vmatpush1.msra.mxu0 0.0
    %3048 = vmatprep.subr.mxu0 0.0
    %3049 = vmatpush1.msra.mxu0 0.0
    %3050 = vmatprep.subr.mxu0 0.0
    %3051 = vmatpush1.msra.mxu0 0.0
    %3052 = vmatprep.subr.mxu0 0.0
    %3053 = vmatpush1.msra.mxu0 0.0
    %3054 = vmatprep.subr.mxu0 0.0
    %3055 = vmatpush1.msra.mxu0 0.0
    %3056 = vmatprep.subr.mxu0 0.0
    %3057 = vmatpush1.msra.mxu0 0.0
    %3058 = vmatprep.subr.mxu0 0.0
    %3059 = vmatpush1.msra.mxu0 0.0
    %3060 = vmatprep.subr.mxu0 0.0
    %3061 = vmatpush1.msra.mxu0 0.0
    %3062 = vmatprep.subr.mxu0 0.0
    %3063 = vmatpush1.msra.mxu0 0.0
    %3064 = vmatprep.subr.mxu0 0.0
    %3065 = vmatpush1.msra.mxu0 0.0
    %3066 = vmatprep.subr.mxu0 0.0
    %3067 = vmatpush1.msra.mxu0 0.0
    %3068 = vmatprep.subr.mxu0 0.0
    %3069 = vmatpush1.msra.mxu0 0.0
    %3070 = vmatprep.subr.mxu0 0.0
    %3071 = vmatpush1.msra.mxu0 0.0
    %3072 = vmatprep.subr.mxu0 0.0
    %3073 = vmatpush1.msra.mxu0 0.0
    %3074 = vmatprep.subr.mxu0 0.0
    %3075 = vmatpush1.msra.mxu0 0.0
    %3076 = vmatprep.subr.mxu0 0.0
    %3077 = vmatpush1.msra.mxu0 0.0
    %3078 = vmatprep.subr.mxu0 0.0
    %3079 = vmatpush1.msra.mxu0 0.0
    %3080 = vmatprep.subr.mxu0 0.0
    %3081 = vmatpush1.msra.mxu0 0.0
    %3082 = vmatprep.subr.mxu0 0.0
    %3083 = vmatpush1.msra.mxu0 0.0
    %3084 = vmatprep.subr.mxu0 0.0
    %3085 = vmatpush1.msra.mxu0 0.0
    %3086 = vmatprep.subr.mxu0 0.0
    %3087 = vmatpush1.msra.mxu0 0.0
    %3088 = vmatprep.subr.mxu0 0.0
    %3089 = vmatpush1.msra.mxu0 0.0
    %3090 = vmatprep.subr.mxu0 0.0
    %3091 = vmatpush1.msra.mxu0 0.0
    %3092 = vmatprep.subr.mxu0 0.0
    %3093 = vmatpush1.msra.mxu0 0.0
    %3094 = vmatprep.subr.mxu0 0.0
    %3095 = vmatpush1.msra.mxu0 0.0
    %3096 = vmatprep.subr.mxu0 0.0
    %3097 = vmatpush1.msra.mxu0 0.0
    %3098 = vmatprep.mubr.f32.mxu0 0.0
    %3099 = vmatmul.mubr.f32.gmra.mrb[0].mxu0 %v2935
    %v3100 = vpop.f32.mrb[0].mxu0
    %v3101 = vadd.f32 0.0, %v3100
    %v3102 = vpop.f32.mrb[0].mxu0
    %3103 = vmatprep.mubr.f32.mxu0 0.0
    %3104 = vmatmul.mubr.f32.gmra.mrb[0].mxu0 %v2938
    %v3105 = vpop.f32.mrb[0].mxu0
    %v3106 = vadd.f32 0.0, %v3105
    %v3107 = vpop.f32.mrb[0].mxu0
    %3108 = vmatprep.mubr.f32.mxu0 0.0
    %3109 = vmatmul.mubr.f32.gmra.mrb[0].mxu0 %v2941
    %v3110 = vpop.f32.mrb[0].mxu0
    %v3111 = vadd.f32 0.0, %v3110
    %v3112 = vpop.f32.mrb[0].mxu0
    %3113 = vmatprep.mubr.f32.mxu0 0.0
    %3114 = vmatmul.mubr.f32.gmra.mrb[0].mxu0 %v2944
    %v3115 = vpop.f32.mrb[0].mxu0
    %v3116 = vadd.f32 0.0, %v3115
    %v3117 = vpop.f32.mrb[0].mxu0
    %3118 = vdwg.mxu0
    %v3120 = vsel %vm2933, %v2883, 0
    %3122 = vmatprep.subr.mxu0 0.0
    %3123 = vmatpush1.xpose.msra.mxu0 %v2935
    %3124 = vmatprep.subr.mxu0 0.0
    %3125 = vmatpush1.xpose.msra.mxu0 %v2938
    %3126 = vmatprep.subr.mxu0 0.0
    %3127 = vmatpush1.xpose.msra.mxu0 %v2941
    %3128 = vmatprep.subr.mxu0 0.0
    %3129 = vmatpush1.xpose.msra.mxu0 %v2944
    %3130 = vmatprep.subr.mxu0 0.0
    %3131 = vmatpush1.xpose.msra.mxu0 0.0
    %3132 = vmatprep.subr.mxu0 0.0
    %3133 = vmatpush1.xpose.msra.mxu0 0.0
    %3134 = vmatprep.subr.mxu0 0.0
    %3135 = vmatpush1.xpose.msra.mxu0 0.0
    %3136 = vmatprep.subr.mxu0 0.0
    %3137 = vmatpush1.xpose.msra.mxu0 0.0
    %3138 = vmatprep.subr.mxu0 0.0
    %3139 = vmatpush1.xpose.msra.mxu0 0.0
    %3140 = vmatprep.subr.mxu0 0.0
    %3141 = vmatpush1.xpose.msra.mxu0 0.0
    %3142 = vmatprep.subr.mxu0 0.0
    %3143 = vmatpush1.xpose.msra.mxu0 0.0
    %3144 = vmatprep.subr.mxu0 0.0
    %3145 = vmatpush1.xpose.msra.mxu0 0.0
    %3146 = vmatprep.subr.mxu0 0.0
    %3147 = vmatpush1.xpose.msra.mxu0 0.0
    %3148 = vmatprep.subr.mxu0 0.0
    %3149 = vmatpush1.xpose.msra.mxu0 0.0
    %3150 = vmatprep.subr.mxu0 0.0
    %3151 = vmatpush1.xpose.msra.mxu0 0.0
    %3152 = vmatprep.subr.mxu0 0.0
    %3153 = vmatpush1.xpose.msra.mxu0 0.0
    %3154 = vmatprep.subr.mxu0 0.0
    %3155 = vmatpush1.xpose.msra.mxu0 0.0
    %3156 = vmatprep.subr.mxu0 0.0
    %3157 = vmatpush1.xpose.msra.mxu0 0.0
    %3158 = vmatprep.subr.mxu0 0.0
    %3159 = vmatpush1.xpose.msra.mxu0 0.0
    %3160 = vmatprep.subr.mxu0 0.0
    %3161 = vmatpush1.xpose.msra.mxu0 0.0
    %3162 = vmatprep.subr.mxu0 0.0
    %3163 = vmatpush1.xpose.msra.mxu0 0.0
    %3164 = vmatprep.subr.mxu0 0.0
    %3165 = vmatpush1.xpose.msra.mxu0 0.0
    %3166 = vmatprep.subr.mxu0 0.0
    %3167 = vmatpush1.xpose.msra.mxu0 0.0
    %3168 = vmatprep.subr.mxu0 0.0
    %3169 = vmatpush1.xpose.msra.mxu0 0.0
    %3170 = vmatprep.subr.mxu0 0.0
    %3171 = vmatpush1.xpose.msra.mxu0 0.0
    %3172 = vmatprep.subr.mxu0 0.0
    %3173 = vmatpush1.xpose.msra.mxu0 0.0
    %3174 = vmatprep.subr.mxu0 0.0
    %3175 = vmatpush1.xpose.msra.mxu0 0.0
    %3176 = vmatprep.subr.mxu0 0.0
    %3177 = vmatpush1.xpose.msra.mxu0 0.0
    %3178 = vmatprep.subr.mxu0 0.0
    %3179 = vmatpush1.xpose.msra.mxu0 0.0
    %3180 = vmatprep.subr.mxu0 0.0
    %3181 = vmatpush1.xpose.msra.mxu0 0.0
    %3182 = vmatprep.subr.mxu0 0.0
    %3183 = vmatpush1.xpose.msra.mxu0 0.0
    %3184 = vmatprep.subr.mxu0 0.0
    %3185 = vmatpush1.xpose.msra.mxu0 0.0
    %3186 = vmatprep.mubr.f32.mxu0 0.0
    %3187 = vmatmul.mubr.f32.gmra.mrb[0].mxu0 %v3120
    %v3188 = vpop.f32.mrb[0].mxu0
    %v3189 = vadd.f32 0.0, %v3188
    %v3190 = vpop.f32.mrb[0].mxu0
    %3191 = vdwg.mxu0
    %v3192 = vsel %vm2930, %v3189, -inf
    %v3193 = vsel %vm1855, %v3192, -inf
    %3194 = vmax.xlane.f32.xlu0 %v3193
    %v3195 = vpop.xlane.xlu0 %3194
    %v3196 = vsub.f32 %v3192, %v3195
    %v3197 = vmul.f32 %v3196, 1.442695
    %v3198 = vpow.pop %v3197
    %v3199 = vsel %vm1855, %v3198, 0.0
    %3200 = vadd.xlane.f32.xlu0 %v3199
    %v3201 = vpop.xlane.xlu0 %3200
    %v3202 = vrcp.pop %v3201
    %v3203 = vmul.f32 %v3198, %v3202
    %v3205 = vsel %vm1855, %v3203, 0
    %3207 = vmatprep.subr.mxu0 0.0
    %3208 = vmatpush1.msra.mxu0 %v2908
    %3209 = vmatprep.subr.mxu0 0.0
    %3210 = vmatpush1.msra.mxu0 %v2913
    %3211 = vmatprep.subr.mxu0 0.0
    %3212 = vmatpush1.msra.mxu0 %v2918
    %3213 = vmatprep.subr.mxu0 0.0
    %3214 = vmatpush1.msra.mxu0 %v2923
    %3215 = vmatprep.subr.mxu0 0.0
    %3216 = vmatpush1.msra.mxu0 0.0
    %3217 = vmatprep.subr.mxu0 0.0
    %3218 = vmatpush1.msra.mxu0 0.0
    %3219 = vmatprep.subr.mxu0 0.0
    %3220 = vmatpush1.msra.mxu0 0.0
    %3221 = vmatprep.subr.mxu0 0.0
    %3222 = vmatpush1.msra.mxu0 0.0
    %3223 = vmatprep.subr.mxu0 0.0
    %3224 = vmatpush1.msra.mxu0 0.0
    %3225 = vmatprep.subr.mxu0 0.0
    %3226 = vmatpush1.msra.mxu0 0.0
    %3227 = vmatprep.subr.mxu0 0.0
    %3228 = vmatpush1.msra.mxu0 0.0
    %3229 = vmatprep.subr.mxu0 0.0
    %3230 = vmatpush1.msra.mxu0 0.0
    %3231 = vmatprep.subr.mxu0 0.0
    %3232 = vmatpush1.msra.mxu0 0.0
    %3233 = vmatprep.subr.mxu0 0.0
    %3234 = vmatpush1.msra.mxu0 0.0
    %3235 = vmatprep.subr.mxu0 0.0
    %3236 = vmatpush1.msra.mxu0 0.0
    %3237 = vmatprep.subr.mxu0 0.0
    %3238 = vmatpush1.msra.mxu0 0.0
    %3239 = vmatprep.subr.mxu0 0.0
    %3240 = vmatpush1.msra.mxu0 0.0
    %3241 = vmatprep.subr.mxu0 0.0
    %3242 = vmatpush1.msra.mxu0 0.0
    %3243 = vmatprep.subr.mxu0 0.0
    %3244 = vmatpush1.msra.mxu0 0.0
    %3245 = vmatprep.subr.mxu0 0.0
    %3246 = vmatpush1.msra.mxu0 0.0
    %3247 = vmatprep.subr.mxu0 0.0
    %3248 = vmatpush1.msra.mxu0 0.0
    %3249 = vmatprep.subr.mxu0 0.0
    %3250 = vmatpush1.msra.mxu0 0.0
    %3251 = vmatprep.subr.mxu0 0.0
    %3252 = vmatpush1.msra.mxu0 0.0
    %3253 = vmatprep.subr.mxu0 0.0
    %3254 = vmatpush1.msra.mxu0 0.0
    %3255 = vmatprep.subr.mxu0 0.0
    %3256 = vmatpush1.msra.mxu0 0.0
    %3257 = vmatprep.subr.mxu0 0.0
    %3258 = vmatpush1.msra.mxu0 0.0
    %3259 = vmatprep.subr.mxu0 0.0
    %3260 = vmatpush1.msra.mxu0 0.0
    %3261 = vmatprep.subr.mxu0 0.0
    %3262 = vmatpush1.msra.mxu0 0.0
    %3263 = vmatprep.subr.mxu0 0.0
    %3264 = vmatpush1.msra.mxu0 0.0
    %3265 = vmatprep.subr.mxu0 0.0
    %3266 = vmatpush1.msra.mxu0 0.0
    %3267 = vmatprep.subr.mxu0 0.0
    %3268 = vmatpush1.msra.mxu0 0.0
    %3269 = vmatprep.subr.mxu0 0.0
    %3270 = vmatpush1.msra.mxu0 0.0
    %3271 = vmatprep.mubr.f32.mxu0 0.0
    %3272 = vmatmul.mubr.f32.gmra.mrb[0].mxu0 %v3205
    %v3273 = vpop.f32.mrb[0].mxu0
    %v3274 = vadd.f32 0.0, %v3273
    %v3275 = vpop.f32.mrb[0].mxu0
    %3276 = vdwg.mxu0
    %v3277 = vadd.f32 %v2883, %v3274
    %v3279 = vsel %vm2933, %v3277, 0
    %v3282 = vsel %vm2933, %v3013, 0
    %v3285 = vsel %vm2933, %v3018, 0
    %v3288 = vsel %vm2933, %v3023, 0
    %v3291 = vsel %vm2933, %v3028, 0
    %3293 = vmatprep.subr.mxu0 0.0
    %3294 = vmatpush1.xpose.msra.mxu0 %v3282
    %3295 = vmatprep.subr.mxu0 0.0
    %3296 = vmatpush1.xpose.msra.mxu0 %v3285
    %3297 = vmatprep.subr.mxu0 0.0
    %3298 = vmatpush1.xpose.msra.mxu0 %v3288
    %3299 = vmatprep.subr.mxu0 0.0
    %3300 = vmatpush1.xpose.msra.mxu0 %v3291
    %3301 = vmatprep.subr.mxu0 0.0
    %3302 = vmatpush1.xpose.msra.mxu0 0.0
    %3303 = vmatprep.subr.mxu0 0.0
    %3304 = vmatpush1.xpose.msra.mxu0 0.0
    %3305 = vmatprep.subr.mxu0 0.0
    %3306 = vmatpush1.xpose.msra.mxu0 0.0
    %3307 = vmatprep.subr.mxu0 0.0
    %3308 = vmatpush1.xpose.msra.mxu0 0.0
    %3309 = vmatprep.subr.mxu0 0.0
    %3310 = vmatpush1.xpose.msra.mxu0 0.0
    %3311 = vmatprep.subr.mxu0 0.0
    %3312 = vmatpush1.xpose.msra.mxu0 0.0
    %3313 = vmatprep.subr.mxu0 0.0
    %3314 = vmatpush1.xpose.msra.mxu0 0.0
    %3315 = vmatprep.subr.mxu0 0.0
    %3316 = vmatpush1.xpose.msra.mxu0 0.0
    %3317 = vmatprep.subr.mxu0 0.0
    %3318 = vmatpush1.xpose.msra.mxu0 0.0
    %3319 = vmatprep.subr.mxu0 0.0
    %3320 = vmatpush1.xpose.msra.mxu0 0.0
    %3321 = vmatprep.subr.mxu0 0.0
    %3322 = vmatpush1.xpose.msra.mxu0 0.0
    %3323 = vmatprep.subr.mxu0 0.0
    %3324 = vmatpush1.xpose.msra.mxu0 0.0
    %3325 = vmatprep.subr.mxu0 0.0
    %3326 = vmatpush1.xpose.msra.mxu0 0.0
    %3327 = vmatprep.subr.mxu0 0.0
    %3328 = vmatpush1.xpose.msra.mxu0 0.0
    %3329 = vmatprep.subr.mxu0 0.0
    %3330 = vmatpush1.xpose.msra.mxu0 0.0
    %3331 = vmatprep.subr.mxu0 0.0
    %3332 = vmatpush1.xpose.msra.mxu0 0.0
    %3333 = vmatprep.subr.mxu0 0.0
    %3334 = vmatpush1.xpose.msra.mxu0 0.0
    %3335 = vmatprep.subr.mxu0 0.0
    %3336 = vmatpush1.xpose.msra.mxu0 0.0
    %3337 = vmatprep.subr.mxu0 0.0
    %3338 = vmatpush1.xpose.msra.mxu0 0.0
    %3339 = vmatprep.subr.mxu0 0.0
    %3340 = vmatpush1.xpose.msra.mxu0 0.0
    %3341 = vmatprep.subr.mxu0 0.0
    %3342 = vmatpush1.xpose.msra.mxu0 0.0
    %3343 = vmatprep.subr.mxu0 0.0
    %3344 = vmatpush1.xpose.msra.mxu0 0.0
    %3345 = vmatprep.subr.mxu0 0.0
    %3346 = vmatpush1.xpose.msra.mxu0 0.0
    %3347 = vmatprep.subr.mxu0 0.0
    %3348 = vmatpush1.xpose.msra.mxu0 0.0
    %3349 = vmatprep.subr.mxu0 0.0
    %3350 = vmatpush1.xpose.msra.mxu0 0.0
    %3351 = vmatprep.subr.mxu0 0.0
    %3352 = vmatpush1.xpose.msra.mxu0 0.0
    %3353 = vmatprep.subr.mxu0 0.0
    %3354 = vmatpush1.xpose.msra.mxu0 0.0
    %3355 = vmatprep.subr.mxu0 0.0
    %3356 = vmatpush1.xpose.msra.mxu0 0.0
    %3357 = vmatprep.mubr.f32.mxu0 0.0
    %3358 = vmatmul.mubr.f32.gmra.mrb[0].mxu0 %v3279
    %v3359 = vpop.f32.mrb[0].mxu0
    %v3360 = vadd.f32 0.0, %v3359
    %v3361 = vpop.f32.mrb[0].mxu0
    %3362 = vdwg.mxu0
    %v3363 = vsel %vm2930, %v3360, -inf
    %v3364 = vsel %vm1855, %v3363, -inf
    %3365 = vmax.xlane.f32.xlu0 %v3364
    %v3366 = vpop.xlane.xlu0 %3365
    %v3367 = vsub.f32 %v3363, %v3366
    %v3368 = vmul.f32 %v3367, 1.442695
    %v3369 = vpow.pop %v3368
    %v3370 = vsel %vm1855, %v3369, 0.0
    %3371 = vadd.xlane.f32.xlu0 %v3370
    %v3372 = vpop.xlane.xlu0 %3371
    %v3373 = vrcp.pop %v3372
    %v3374 = vmul.f32 %v3369, %v3373
    %v3376 = vsel %vm1855, %v3374, 0
    %3378 = vmatprep.subr.mxu0 0.0
    %3379 = vmatpush1.msra.mxu0 %v2908
    %3380 = vmatprep.subr.mxu0 0.0
    %3381 = vmatpush1.msra.mxu0 %v2913
    %3382 = vmatprep.subr.mxu0 0.0
    %3383 = vmatpush1.msra.mxu0 %v2918
    %3384 = vmatprep.subr.mxu0 0.0
    %3385 = vmatpush1.msra.mxu0 %v2923
    %3386 = vmatprep.subr.mxu0 0.0
    %3387 = vmatpush1.msra.mxu0 0.0
    %3388 = vmatprep.subr.mxu0 0.0
    %3389 = vmatpush1.msra.mxu0 0.0
    %3390 = vmatprep.subr.mxu0 0.0
    %3391 = vmatpush1.msra.mxu0 0.0
    %3392 = vmatprep.subr.mxu0 0.0
    %3393 = vmatpush1.msra.mxu0 0.0
    %3394 = vmatprep.subr.mxu0 0.0
    %3395 = vmatpush1.msra.mxu0 0.0
    %3396 = vmatprep.subr.mxu0 0.0
    %3397 = vmatpush1.msra.mxu0 0.0
    %3398 = vmatprep.subr.mxu0 0.0
    %3399 = vmatpush1.msra.mxu0 0.0
    %3400 = vmatprep.subr.mxu0 0.0
    %3401 = vmatpush1.msra.mxu0 0.0
    %3402 = vmatprep.subr.mxu0 0.0
    %3403 = vmatpush1.msra.mxu0 0.0
    %3404 = vmatprep.subr.mxu0 0.0
    %3405 = vmatpush1.msra.mxu0 0.0
    %3406 = vmatprep.subr.mxu0 0.0
    %3407 = vmatpush1.msra.mxu0 0.0
    %3408 = vmatprep.subr.mxu0 0.0
    %3409 = vmatpush1.msra.mxu0 0.0
    %3410 = vmatprep.subr.mxu0 0.0
    %3411 = vmatpush1.msra.mxu0 0.0
    %3412 = vmatprep.subr.mxu0 0.0
    %3413 = vmatpush1.msra.mxu0 0.0
    %3414 = vmatprep.subr.mxu0 0.0
    %3415 = vmatpush1.msra.mxu0 0.0
    %3416 = vmatprep.subr.mxu0 0.0
    %3417 = vmatpush1.msra.mxu0 0.0
    %3418 = vmatprep.subr.mxu0 0.0
    %3419 = vmatpush1.msra.mxu0 0.0
    %3420 = vmatprep.subr.mxu0 0.0
    %3421 = vmatpush1.msra.mxu0 0.0
    %3422 = vmatprep.subr.mxu0 0.0
    %3423 = vmatpush1.msra.mxu0 0.0
    %3424 = vmatprep.subr.mxu0 0.0
    %3425 = vmatpush1.msra.mxu0 0.0
    %3426 = vmatprep.subr.mxu0 0.0
    %3427 = vmatpush1.msra.mxu0 0.0
    %3428 = vmatprep.subr.mxu0 0.0
    %3429 = vmatpush1.msra.mxu0 0.0
    %3430 = vmatprep.subr.mxu0 0.0
    %3431 = vmatpush1.msra.mxu0 0.0
    %3432 = vmatprep.subr.mxu0 0.0
    %3433 = vmatpush1.msra.mxu0 0.0
    %3434 = vmatprep.subr.mxu0 0.0
    %3435 = vmatpush1.msra.mxu0 0.0
    %3436 = vmatprep.subr.mxu0 0.0
    %3437 = vmatpush1.msra.mxu0 0.0
    %3438 = vmatprep.subr.mxu0 0.0
    %3439 = vmatpush1.msra.mxu0 0.0
    %3440 = vmatprep.subr.mxu0 0.0
    %3441 = vmatpush1.msra.mxu0 0.0
    %3442 = vmatprep.mubr.f32.mxu0 0.0
    %3443 = vmatmul.mubr.f32.gmra.mrb[0].mxu0 %v3376
    %v3444 = vpop.f32.mrb[0].mxu0
    %v3445 = vadd.f32 0.0, %v3444
    %v3446 = vpop.f32.mrb[0].mxu0
    %3447 = vdwg.mxu0
    %v3449 = vsel %vm2933, %v2931, 0
    %v3452 = vsel %vm2933, %v2932, 0
    %3454 = vmatprep.subr.mxu0 0.0
    %3455 = vmatpush1.xpose.msra.mxu0 %v3449
    %3456 = vmatprep.subr.mxu0 0.0
    %3457 = vmatpush1.xpose.msra.mxu0 %v3452
    %3458 = vmatprep.subr.mxu0 0.0
    %3459 = vmatpush1.xpose.msra.mxu0 0.0
    %3460 = vmatprep.subr.mxu0 0.0
    %3461 = vmatpush1.xpose.msra.mxu0 0.0
    %3462 = vmatprep.subr.mxu0 0.0
    %3463 = vmatpush1.xpose.msra.mxu0 0.0
    %3464 = vmatprep.subr.mxu0 0.0
    %3465 = vmatpush1.xpose.msra.mxu0 0.0
    %3466 = vmatprep.subr.mxu0 0.0
    %3467 = vmatpush1.xpose.msra.mxu0 0.0
    %3468 = vmatprep.subr.mxu0 0.0
    %3469 = vmatpush1.xpose.msra.mxu0 0.0
    %3470 = vmatprep.subr.mxu0 0.0
    %3471 = vmatpush1.xpose.msra.mxu0 0.0
    %3472 = vmatprep.subr.mxu0 0.0
    %3473 = vmatpush1.xpose.msra.mxu0 0.0
    %3474 = vmatprep.subr.mxu0 0.0
    %3475 = vmatpush1.xpose.msra.mxu0 0.0
    %3476 = vmatprep.subr.mxu0 0.0
    %3477 = vmatpush1.xpose.msra.mxu0 0.0
    %3478 = vmatprep.subr.mxu0 0.0
    %3479 = vmatpush1.xpose.msra.mxu0 0.0
    %3480 = vmatprep.subr.mxu0 0.0
    %3481 = vmatpush1.xpose.msra.mxu0 0.0
    %3482 = vmatprep.subr.mxu0 0.0
    %3483 = vmatpush1.xpose.msra.mxu0 0.0
    %3484 = vmatprep.subr.mxu0 0.0
    %3485 = vmatpush1.xpose.msra.mxu0 0.0
    %3486 = vmatprep.subr.mxu0 0.0
    %3487 = vmatpush1.xpose.msra.mxu0 0.0
    %3488 = vmatprep.subr.mxu0 0.0
    %3489 = vmatpush1.xpose.msra.mxu0 0.0
    %3490 = vmatprep.subr.mxu0 0.0
    %3491 = vmatpush1.xpose.msra.mxu0 0.0
    %3492 = vmatprep.subr.mxu0 0.0
    %3493 = vmatpush1.xpose.msra.mxu0 0.0
    %3494 = vmatprep.subr.mxu0 0.0
    %3495 = vmatpush1.xpose.msra.mxu0 0.0
    %3496 = vmatprep.subr.mxu0 0.0
    %3497 = vmatpush1.xpose.msra.mxu0 0.0
    %3498 = vmatprep.subr.mxu0 0.0
    %3499 = vmatpush1.xpose.msra.mxu0 0.0
    %3500 = vmatprep.subr.mxu0 0.0
    %3501 = vmatpush1.xpose.msra.mxu0 0.0
    %3502 = vmatprep.subr.mxu0 0.0
    %3503 = vmatpush1.xpose.msra.mxu0 0.0
    %3504 = vmatprep.subr.mxu0 0.0
    %3505 = vmatpush1.xpose.msra.mxu0 0.0
    %3506 = vmatprep.subr.mxu0 0.0
    %3507 = vmatpush1.xpose.msra.mxu0 0.0
    %3508 = vmatprep.subr.mxu0 0.0
    %3509 = vmatpush1.xpose.msra.mxu0 0.0
    %3510 = vmatprep.subr.mxu0 0.0
    %3511 = vmatpush1.xpose.msra.mxu0 0.0
    %3512 = vmatprep.subr.mxu0 0.0
    %3513 = vmatpush1.xpose.msra.mxu0 0.0
    %3514 = vmatprep.subr.mxu0 0.0
    %3515 = vmatpush1.xpose.msra.mxu0 0.0
    %3516 = vmatprep.subr.mxu0 0.0
    %3517 = vmatpush1.xpose.msra.mxu0 0.0
    %3518 = vmatprep.mubr.f32.mxu0 0.0
    %3519 = vmatmul.mubr.f32.gmra.mrb[0].mxu0 %v3279
    %v3520 = vpop.f32.mrb[0].mxu0
    %v3521 = vadd.f32 %v3445, %v3520
    %v3522 = vpop.f32.mrb[0].mxu0
    %3523 = vdwg.mxu0
    %v3525 = vsel %vm2933, %v3521, 0
    %v3528 = vsel %vm2933, %v3101, 0
    %v3531 = vsel %vm2933, %v3106, 0
    %v3534 = vsel %vm2933, %v3111, 0
    %v3537 = vsel %vm2933, %v3116, 0
    %3539 = vmatprep.subr.mxu0 0.0
    %3540 = vmatpush1.xpose.msra.mxu0 %v3528
    %3541 = vmatprep.subr.mxu0 0.0
    %3542 = vmatpush1.xpose.msra.mxu0 %v3531
    %3543 = vmatprep.subr.mxu0 0.0
    %3544 = vmatpush1.xpose.msra.mxu0 %v3534
    %3545 = vmatprep.subr.mxu0 0.0
    %3546 = vmatpush1.xpose.msra.mxu0 %v3537
    %3547 = vmatprep.subr.mxu0 0.0
    %3548 = vmatpush1.xpose.msra.mxu0 0.0
    %3549 = vmatprep.subr.mxu0 0.0
    %3550 = vmatpush1.xpose.msra.mxu0 0.0
    %3551 = vmatprep.subr.mxu0 0.0
    %3552 = vmatpush1.xpose.msra.mxu0 0.0
    %3553 = vmatprep.subr.mxu0 0.0
    %3554 = vmatpush1.xpose.msra.mxu0 0.0
    %3555 = vmatprep.subr.mxu0 0.0
    %3556 = vmatpush1.xpose.msra.mxu0 0.0
    %3557 = vmatprep.subr.mxu0 0.0
    %3558 = vmatpush1.xpose.msra.mxu0 0.0
    %3559 = vmatprep.subr.mxu0 0.0
    %3560 = vmatpush1.xpose.msra.mxu0 0.0
    %3561 = vmatprep.subr.mxu0 0.0
    %3562 = vmatpush1.xpose.msra.mxu0 0.0
    %3563 = vmatprep.subr.mxu0 0.0
    %3564 = vmatpush1.xpose.msra.mxu0 0.0
    %3565 = vmatprep.subr.mxu0 0.0
    %3566 = vmatpush1.xpose.msra.mxu0 0.0
    %3567 = vmatprep.subr.mxu0 0.0
    %3568 = vmatpush1.xpose.msra.mxu0 0.0
    %3569 = vmatprep.subr.mxu0 0.0
    %3570 = vmatpush1.xpose.msra.mxu0 0.0
    %3571 = vmatprep.subr.mxu0 0.0
    %3572 = vmatpush1.xpose.msra.mxu0 0.0
    %3573 = vmatprep.subr.mxu0 0.0
    %3574 = vmatpush1.xpose.msra.mxu0 0.0
    %3575 = vmatprep.subr.mxu0 0.0
    %3576 = vmatpush1.xpose.msra.mxu0 0.0
    %3577 = vmatprep.subr.mxu0 0.0
    %3578 = vmatpush1.xpose.msra.mxu0 0.0
    %3579 = vmatprep.subr.mxu0 0.0
    %3580 = vmatpush1.xpose.msra.mxu0 0.0
    %3581 = vmatprep.subr.mxu0 0.0
    %3582 = vmatpush1.xpose.msra.mxu0 0.0
    %3583 = vmatprep.subr.mxu0 0.0
    %3584 = vmatpush1.xpose.msra.mxu0 0.0
    %3585 = vmatprep.subr.mxu0 0.0
    %3586 = vmatpush1.xpose.msra.mxu0 0.0
    %3587 = vmatprep.subr.mxu0 0.0
    %3588 = vmatpush1.xpose.msra.mxu0 0.0
    %3589 = vmatprep.subr.mxu0 0.0
    %3590 = vmatpush1.xpose.msra.mxu0 0.0
    %3591 = vmatprep.subr.mxu0 0.0
    %3592 = vmatpush1.xpose.msra.mxu0 0.0
    %3593 = vmatprep.subr.mxu0 0.0
    %3594 = vmatpush1.xpose.msra.mxu0 0.0
    %3595 = vmatprep.subr.mxu0 0.0
    %3596 = vmatpush1.xpose.msra.mxu0 0.0
    %3597 = vmatprep.subr.mxu0 0.0
    %3598 = vmatpush1.xpose.msra.mxu0 0.0
    %3599 = vmatprep.subr.mxu0 0.0
    %3600 = vmatpush1.xpose.msra.mxu0 0.0
    %3601 = vmatprep.subr.mxu0 0.0
    %3602 = vmatpush1.xpose.msra.mxu0 0.0
    %3603 = vmatprep.mubr.f32.mxu0 0.0
    %3604 = vmatmul.mubr.f32.gmra.mrb[0].mxu0 %v3525
    %v3605 = vpop.f32.mrb[0].mxu0
    %v3606 = vadd.f32 0.0, %v3605
    %v3607 = vpop.f32.mrb[0].mxu0
    %3608 = vdwg.mxu0
    %v3609 = vsel %vm2930, %v3606, -inf
    %v3610 = vsel %vm1855, %v3609, -inf
    %3611 = vmax.xlane.f32.xlu0 %v3610
    %v3612 = vpop.xlane.xlu0 %3611
    %v3613 = vsub.f32 %v3609, %v3612
    %v3614 = vmul.f32 %v3613, 1.442695
    %v3615 = vpow.pop %v3614
    %v3616 = vsel %vm1855, %v3615, 0.0
    %3617 = vadd.xlane.f32.xlu0 %v3616
    %v3618 = vpop.xlane.xlu0 %3617
    %v3619 = vrcp.pop %v3618
    %v3620 = vmul.f32 %v3615, %v3619
    %v3622 = vsel %vm1855, %v3620, 0
    %3624 = vmatprep.subr.mxu0 0.0
    %3625 = vmatpush1.msra.mxu0 %v2908
    %3626 = vmatprep.subr.mxu0 0.0
    %3627 = vmatpush1.msra.mxu0 %v2913
    %3628 = vmatprep.subr.mxu0 0.0
    %3629 = vmatpush1.msra.mxu0 %v2918
    %3630 = vmatprep.subr.mxu0 0.0
    %3631 = vmatpush1.msra.mxu0 %v2923
    %3632 = vmatprep.subr.mxu0 0.0
    %3633 = vmatpush1.msra.mxu0 0.0
    %3634 = vmatprep.subr.mxu0 0.0
    %3635 = vmatpush1.msra.mxu0 0.0
    %3636 = vmatprep.subr.mxu0 0.0
    %3637 = vmatpush1.msra.mxu0 0.0
    %3638 = vmatprep.subr.mxu0 0.0
    %3639 = vmatpush1.msra.mxu0 0.0
    %3640 = vmatprep.subr.mxu0 0.0
    %3641 = vmatpush1.msra.mxu0 0.0
    %3642 = vmatprep.subr.mxu0 0.0
    %3643 = vmatpush1.msra.mxu0 0.0
    %3644 = vmatprep.subr.mxu0 0.0
    %3645 = vmatpush1.msra.mxu0 0.0
    %3646 = vmatprep.subr.mxu0 0.0
    %3647 = vmatpush1.msra.mxu0 0.0
    %3648 = vmatprep.subr.mxu0 0.0
    %3649 = vmatpush1.msra.mxu0 0.0
    %3650 = vmatprep.subr.mxu0 0.0
    %3651 = vmatpush1.msra.mxu0 0.0
    %3652 = vmatprep.subr.mxu0 0.0
    %3653 = vmatpush1.msra.mxu0 0.0
    %3654 = vmatprep.subr.mxu0 0.0
    %3655 = vmatpush1.msra.mxu0 0.0
    %3656 = vmatprep.subr.mxu0 0.0
    %3657 = vmatpush1.msra.mxu0 0.0
    %3658 = vmatprep.subr.mxu0 0.0
    %3659 = vmatpush1.msra.mxu0 0.0
    %3660 = vmatprep.subr.mxu0 0.0
    %3661 = vmatpush1.msra.mxu0 0.0
    %3662 = vmatprep.subr.mxu0 0.0
    %3663 = vmatpush1.msra.mxu0 0.0
    %3664 = vmatprep.subr.mxu0 0.0
    %3665 = vmatpush1.msra.mxu0 0.0
    %3666 = vmatprep.subr.mxu0 0.0
    %3667 = vmatpush1.msra.mxu0 0.0
    %3668 = vmatprep.subr.mxu0 0.0
    %3669 = vmatpush1.msra.mxu0 0.0
    %3670 = vmatprep.subr.mxu0 0.0
    %3671 = vmatpush1.msra.mxu0 0.0
    %3672 = vmatprep.subr.mxu0 0.0
    %3673 = vmatpush1.msra.mxu0 0.0
    %3674 = vmatprep.subr.mxu0 0.0
    %3675 = vmatpush1.msra.mxu0 0.0
    %3676 = vmatprep.subr.mxu0 0.0
    %3677 = vmatpush1.msra.mxu0 0.0
    %3678 = vmatprep.subr.mxu0 0.0
    %3679 = vmatpush1.msra.mxu0 0.0
    %3680 = vmatprep.subr.mxu0 0.0
    %3681 = vmatpush1.msra.mxu0 0.0
    %3682 = vmatprep.subr.mxu0 0.0
    %3683 = vmatpush1.msra.mxu0 0.0
    %3684 = vmatprep.subr.mxu0 0.0
    %3685 = vmatpush1.msra.mxu0 0.0
    %3686 = vmatprep.subr.mxu0 0.0
    %3687 = vmatpush1.msra.mxu0 0.0
    %3688 = vmatprep.mubr.f32.mxu0 0.0
    %3689 = vmatmul.mubr.f32.gmra.mrb[0].mxu0 %v3622
    %v3690 = vpop.f32.mrb[0].mxu0
    %v3691 = vadd.f32 0.0, %v3690
    %v3692 = vpop.f32.mrb[0].mxu0
    %3693 = vdwg.mxu0
    %v3695 = vsel %vm2933, %v3032, 0
    %v3698 = vsel %vm2933, %v3033, 0
    %3700 = vmatprep.subr.mxu0 0.0
    %3701 = vmatpush1.xpose.msra.mxu0 %v3695
    %3702 = vmatprep.subr.mxu0 0.0
    %3703 = vmatpush1.xpose.msra.mxu0 %v3698
    %3704 = vmatprep.subr.mxu0 0.0
    %3705 = vmatpush1.xpose.msra.mxu0 0.0
    %3706 = vmatprep.subr.mxu0 0.0
    %3707 = vmatpush1.xpose.msra.mxu0 0.0
    %3708 = vmatprep.subr.mxu0 0.0
    %3709 = vmatpush1.xpose.msra.mxu0 0.0
    %3710 = vmatprep.subr.mxu0 0.0
    %3711 = vmatpush1.xpose.msra.mxu0 0.0
    %3712 = vmatprep.subr.mxu0 0.0
    %3713 = vmatpush1.xpose.msra.mxu0 0.0
    %3714 = vmatprep.subr.mxu0 0.0
    %3715 = vmatpush1.xpose.msra.mxu0 0.0
    %3716 = vmatprep.subr.mxu0 0.0
    %3717 = vmatpush1.xpose.msra.mxu0 0.0
    %3718 = vmatprep.subr.mxu0 0.0
    %3719 = vmatpush1.xpose.msra.mxu0 0.0
    %3720 = vmatprep.subr.mxu0 0.0
    %3721 = vmatpush1.xpose.msra.mxu0 0.0
    %3722 = vmatprep.subr.mxu0 0.0
    %3723 = vmatpush1.xpose.msra.mxu0 0.0
    %3724 = vmatprep.subr.mxu0 0.0
    %3725 = vmatpush1.xpose.msra.mxu0 0.0
    %3726 = vmatprep.subr.mxu0 0.0
    %3727 = vmatpush1.xpose.msra.mxu0 0.0
    %3728 = vmatprep.subr.mxu0 0.0
    %3729 = vmatpush1.xpose.msra.mxu0 0.0
    %3730 = vmatprep.subr.mxu0 0.0
    %3731 = vmatpush1.xpose.msra.mxu0 0.0
    %3732 = vmatprep.subr.mxu0 0.0
    %3733 = vmatpush1.xpose.msra.mxu0 0.0
    %3734 = vmatprep.subr.mxu0 0.0
    %3735 = vmatpush1.xpose.msra.mxu0 0.0
    %3736 = vmatprep.subr.mxu0 0.0
    %3737 = vmatpush1.xpose.msra.mxu0 0.0
    %3738 = vmatprep.subr.mxu0 0.0
    %3739 = vmatpush1.xpose.msra.mxu0 0.0
    %3740 = vmatprep.subr.mxu0 0.0
    %3741 = vmatpush1.xpose.msra.mxu0 0.0
    %3742 = vmatprep.subr.mxu0 0.0
    %3743 = vmatpush1.xpose.msra.mxu0 0.0
    %3744 = vmatprep.subr.mxu0 0.0
    %3745 = vmatpush1.xpose.msra.mxu0 0.0
    %3746 = vmatprep.subr.mxu0 0.0
    %3747 = vmatpush1.xpose.msra.mxu0 0.0
    %3748 = vmatprep.subr.mxu0 0.0
    %3749 = vmatpush1.xpose.msra.mxu0 0.0
    %3750 = vmatprep.subr.mxu0 0.0
    %3751 = vmatpush1.xpose.msra.mxu0 0.0
    %3752 = vmatprep.subr.mxu0 0.0
    %3753 = vmatpush1.xpose.msra.mxu0 0.0
    %3754 = vmatprep.subr.mxu0 0.0
    %3755 = vmatpush1.xpose.msra.mxu0 0.0
    %3756 = vmatprep.subr.mxu0 0.0
    %3757 = vmatpush1.xpose.msra.mxu0 0.0
    %3758 = vmatprep.subr.mxu0 0.0
    %3759 = vmatpush1.xpose.msra.mxu0 0.0
    %3760 = vmatprep.subr.mxu0 0.0
    %3761 = vmatpush1.xpose.msra.mxu0 0.0
    %3762 = vmatprep.subr.mxu0 0.0
    %3763 = vmatpush1.xpose.msra.mxu0 0.0
    %3764 = vmatprep.mubr.f32.mxu0 0.0
    %3765 = vmatmul.mubr.f32.gmra.mrb[0].mxu0 %v3525
    %v3766 = vpop.f32.mrb[0].mxu0
    %v3767 = vadd.f32 %v3691, %v3766
    %v3768 = vpop.f32.mrb[0].mxu0
    %3769 = vdwg.mxu0
    %v3770 = vld [vmem:[%s5] sm:$0xff]
    %v3771 = vld [vmem:[%s5 + $0x8] sm:$0xff]
    %v3773 = vsel %vm2933, %v3767, 0
    %3775 = vmatprep.subr.mxu0 0.0
    %3776 = vmatpush1.msra.mxu0 %v3770
    %3777 = vmatprep.subr.mxu0 0.0
    %3778 = vmatpush1.msra.mxu0 %v3771
    %3779 = vmatprep.subr.mxu0 0.0
    %3780 = vmatpush1.msra.mxu0 0.0
    %3781 = vmatprep.subr.mxu0 0.0
    %3782 = vmatpush1.msra.mxu0 0.0
    %3783 = vmatprep.subr.mxu0 0.0
    %3784 = vmatpush1.msra.mxu0 0.0
    %3785 = vmatprep.subr.mxu0 0.0
    %3786 = vmatpush1.msra.mxu0 0.0
    %3787 = vmatprep.subr.mxu0 0.0
    %3788 = vmatpush1.msra.mxu0 0.0
    %3789 = vmatprep.subr.mxu0 0.0
    %3790 = vmatpush1.msra.mxu0 0.0
    %3791 = vmatprep.subr.mxu0 0.0
    %3792 = vmatpush1.msra.mxu0 0.0
    %3793 = vmatprep.subr.mxu0 0.0
    %3794 = vmatpush1.msra.mxu0 0.0
    %3795 = vmatprep.subr.mxu0 0.0
    %3796 = vmatpush1.msra.mxu0 0.0
    %3797 = vmatprep.subr.mxu0 0.0
    %3798 = vmatpush1.msra.mxu0 0.0
    %3799 = vmatprep.subr.mxu0 0.0
    %3800 = vmatpush1.msra.mxu0 0.0
    %3801 = vmatprep.subr.mxu0 0.0
    %3802 = vmatpush1.msra.mxu0 0.0
    %3803 = vmatprep.subr.mxu0 0.0
    %3804 = vmatpush1.msra.mxu0 0.0
    %3805 = vmatprep.subr.mxu0 0.0
    %3806 = vmatpush1.msra.mxu0 0.0
    %3807 = vmatprep.subr.mxu0 0.0
    %3808 = vmatpush1.msra.mxu0 0.0
    %3809 = vmatprep.subr.mxu0 0.0
    %3810 = vmatpush1.msra.mxu0 0.0
    %3811 = vmatprep.subr.mxu0 0.0
    %3812 = vmatpush1.msra.mxu0 0.0
    %3813 = vmatprep.subr.mxu0 0.0
    %3814 = vmatpush1.msra.mxu0 0.0
    %3815 = vmatprep.subr.mxu0 0.0
    %3816 = vmatpush1.msra.mxu0 0.0
    %3817 = vmatprep.subr.mxu0 0.0
    %3818 = vmatpush1.msra.mxu0 0.0
    %3819 = vmatprep.subr.mxu0 0.0
    %3820 = vmatpush1.msra.mxu0 0.0
    %3821 = vmatprep.subr.mxu0 0.0
    %3822 = vmatpush1.msra.mxu0 0.0
    %3823 = vmatprep.subr.mxu0 0.0
    %3824 = vmatpush1.msra.mxu0 0.0
    %3825 = vmatprep.subr.mxu0 0.0
    %3826 = vmatpush1.msra.mxu0 0.0
    %3827 = vmatprep.subr.mxu0 0.0
    %3828 = vmatpush1.msra.mxu0 0.0
    %3829 = vmatprep.subr.mxu0 0.0
    %3830 = vmatpush1.msra.mxu0 0.0
    %3831 = vmatprep.subr.mxu0 0.0
    %3832 = vmatpush1.msra.mxu0 0.0
    %3833 = vmatprep.subr.mxu0 0.0
    %3834 = vmatpush1.msra.mxu0 0.0
    %3835 = vmatprep.subr.mxu0 0.0
    %3836 = vmatpush1.msra.mxu0 0.0
    %3837 = vmatprep.subr.mxu0 0.0
    %3838 = vmatpush1.msra.mxu0 0.0
    %3839 = vmatprep.mubr.f32.mxu0 0.0
    %3840 = vmatmul.mubr.f32.gmra.mrb[0].mxu0 %v3773
    %v3841 = vpop.f32.mrb[0].mxu0
    %v3842 = vadd.f32 0.0, %v3841
    %v3843 = vpop.f32.mrb[0].mxu0
    %3844 = vdwg.mxu0
    %vm3845 = vcmp.lt.s32.totalorder %v105, 50
    %v3846 = vsel %vm3845, %v3842, -inf
    %3847 = vmax.xlane.f32.xlu0 %v3846
    %v3848 = vpop.xlane.xlu0 %3847
    %v3849 = vsub.f32 %v3846, %v3848
    %v3850 = vmul.f32 %v3849, 1.442695
    %v3851 = vpow.pop %v3850
    %3852 = vadd.xlane.f32.xlu0 %v3851
    %v3853 = vpop.xlane.xlu0 %3852
    %v3854 = vrcp.pop %v3853
    %v3855 = vmul.f32 %v3851, %v3854
    %3856 = vst [vmem:[#allocation2] sm:$0xff] %v3855
    %v3857 = vld [vmem:[%s6] sm:$0xff]
    %3858 = vset.pattern.permute.xlu0 0
    %3859 = vperm.xlu0 %3858, %v3857
    %v3860 = vpop.permute.xlu0 %3859
    %vm3861 = vcmp.eq.s32.totalorder %v105, %v3860
    %v3862 = vsel %vm3861, %v3849, 0.0
    %3863 = vadd.xlane.f32.xlu0 %v3862
    %v3864 = vpop.xlane.xlu0 %3863
    %v3865 = vlog2.pop %v3853
    %v3866 = vmul.f32 %v3865, 0.6931472
    %v3867 = vsub.f32 %v3866, %v3864
    %vm3868 = vcmask 7168
    %v3869 = vsel %vm3868, %v3867, 0.0
    %3870 = vadd.xlane.f32.xlu0 %v3869
    %v3871 = vpop.xlane.xlu0 %3870
    %v3872 = vrot.slane %v3871, 4
    %v3873 = vadd.f32 %v3871, %v3872
    %v3874 = vrot.slane %v3873, 2
    %v3875 = vadd.f32 %v3873, %v3874
    %v3876 = vrot.slane %v3875, 1
    %v3877 = vadd.f32 %v3875, %v3876
    %s3878 = vtos %v3877
    %s3879 = smul.f32 %s3878, 0.125
    %s3880 = scalar_lea.smem [#allocation5], 0
    %3881 = sst [smem:[%s3880]] %s3879
    %vm3882 = vcmp.ge.f32.partialorder %v3846, %v3848
    %v3883 = vsel %vm3882, %v1421, 128.0
    %3884 = vmin.xlane.f32.xlu0 %v3883
    %v3885 = vpop.xlane.xlu0 %3884
    %v3886 = vcvt.f32.s32.to.zero.pseudo %v3885
    %3887 = vst [vmem:[%s9] sm:$0xff] %v3886
    // Predicated region
    $region30: #{kvmemnet_forward.1} parent=1 // pred_check
      _
    $region31: #{kvmemnet_forward.1} parent=1 // pred_check_branch
      %3889 = sbr.rel (0) target = $region33
    $region32: #{kvmemnet_forward.1} parent=1 // pred_region
      %s3891 = ssub.s32 128, 128
      %3892 = vsyncadd [#allocation3], %s3891
      %s3894 = sshll.u32 [#allocation2], 4
      %s3895 = int_to_ptr.vmem [resolvable:$true] %s3894
      %3897 = dma.vmem_to_hbm [thread:$0]  %s3895, 128, %s7, [#allocation3]
    $region33: #{kvmemnet_forward.1} parent=1 // pred_fallthru
      _
    // Predicated region
    $region34: #{kvmemnet_forward.1} parent=1 // pred_check
      _
    $region35: #{kvmemnet_forward.1} parent=1 // pred_check_branch
      %3899 = sbr.rel (0) target = $region37
    $region36: #{kvmemnet_forward.1} parent=1 // pred_region
      %s3901 = ssub.s32 16, 16
      %3902 = vsyncadd [#allocation4], %s3901
      %3905 = dma.smem_to_hbm [#allocation5], 16, %s8, [#allocation4]
    $region37: #{kvmemnet_forward.1} parent=1 // pred_fallthru
      _
    // Predicated region
    $region38: #{kvmemnet_forward.1} parent=1 // pred_check
      _
    $region39: #{kvmemnet_forward.1} parent=1 // pred_check_branch
      %3907 = sbr.rel (0) target = $region41
    $region40: #{kvmemnet_forward.1} parent=1 // pred_region
      _
    $region41: #{kvmemnet_forward.1} parent=1 // pred_fallthru
      _
    // Predicated region
    $region42: #{kvmemnet_forward.1} parent=1 // pred_check
      _
    $region43: #{kvmemnet_forward.1} parent=1 // pred_check_branch
      %3909 = sbr.rel (0) target = $region45
    $region44: #{kvmemnet_forward.1} parent=1 // pred_region
      %3910 = dma.done [#allocation3], 128
    $region45: #{kvmemnet_forward.1} parent=1 // pred_fallthru
      _
    // Predicated region
    $region46: #{kvmemnet_forward.1} parent=1 // pred_check
      _
    $region47: #{kvmemnet_forward.1} parent=1 // pred_check_branch
      %3912 = sbr.rel (0) target = $region49
    $region48: #{kvmemnet_forward.1} parent=1 // pred_region
      %3913 = dma.done [#allocation4], 16
    $region49: #{kvmemnet_forward.1} parent=1 // pred_fallthru
      _
    // Predicated region
    $region50: #{kvmemnet_forward.1} parent=1 // pred_check
      _
    $region51: #{kvmemnet_forward.1} parent=1 // pred_check_branch
      %3915 = sbr.rel (0) target = $region53
    $region52: #{kvmemnet_forward.1} parent=1 // pred_region
      _
    $region53: #{kvmemnet_forward.1} parent=1 // pred_fallthru
      _
    %3916 = sfence
    %3917 = vsyncpa [#allocation3], 1
    %3918 = vsyncpa [#allocation4], 1

</llo_original>
